<compile_context>
chip_gen: v7x
topology: tpu7x:2x2x1
jax: 0.10.0
libtpu: 0.0.40
codegen_flags: <defaults>
</compile_context>

<pallas_src>
import jax
import jax.numpy as jnp
from jax.experimental import pallas as pl
from jax.experimental.pallas import tpu as pltpu


def cond_linear_block_kernel(x_ref, c_ref, w1_ref, b1_ref, w2_ref, b2_ref, o_ref):
    x = x_ref[...].astype(jnp.float32)                          # (TB, D), f32 for AdaIN

    # ---- fc1: bf16 x bf16 -> f32 accumulation on the MXU ----
    c1 = jnp.dot(c_ref[...], w1_ref[...],
                 preferred_element_type=jnp.float32) + b1_ref[...]     # (TB, D) f32

    # ---- AdaIN: centered two-pass mean / unbiased variance (numerically stable) ----
    nx = jnp.float32(x.shape[1])
    m_x = jnp.sum(x, axis=1, keepdims=True) / nx
    dx = x - m_x
    s_x = jnp.sqrt(jnp.sum(dx * dx, axis=1, keepdims=True) / (nx - 1.0))

    nc = jnp.float32(c1.shape[1])
    m_c = jnp.sum(c1, axis=1, keepdims=True) / nc
    dc = c1 - m_c
    s_c = jnp.sqrt(jnp.sum(dc * dc, axis=1, keepdims=True) / (nc - 1.0))

    # (x - m_x) / (s_x + eps) * s_c + m_c ; eps added to the *std* to match PyTorch.
    ratio = s_c * pl.reciprocal(s_x + 1e-5, approx=True)        # per-row; EUP slot
    h = dx * ratio + m_c

    # ---- LeakyReLU(0.2) ----
    h = jnp.maximum(h, 0.2 * h)

    # ---- fc2: bf16 x bf16 -> f32 on the MXU ----
    out = jnp.dot(h.astype(w2_ref.dtype), w2_ref[...],
                  preferred_element_type=jnp.float32) + b2_ref[...]
    o_ref[...] = out.astype(o_ref.dtype)


def _round_up(n, m):
    return ((n + m - 1) // m) * m


def _tpu_vmem_capacity_bytes():
    try:
        return int(pltpu.get_tpu_info().vmem_capacity_bytes)
    except Exception:
        return 64 << 20        # conservative fallback (v7x per-core VMEM)


def _pick_tb(B, D, C, budget_bytes, out_bytes, *, tb_max=1024):
    """Largest batch tile (multiple of 8, <= tb_max) whose working set fits the budget:
    single-buffered resident bf16 weights + f32 biases plus double-buffered streamed
    x (f32), c (bf16) and out tiles.  Keeps >= 2 grid steps when B allows so
    dimension_semantics=('parallel',) can split the batch across v7x's two TensorCores."""
    resident = (C * D + D * D) * 2 + 2 * D * 4                  # bf16 weights + f32 biases

    def need(tb):
        return resident + 2 * tb * (D * 4 + C * 2 + D * out_bytes)

    tb = min(_round_up(B, 8), tb_max)
    if B >= 16:                                                 # leave >= 2 grid steps
        tb = min(tb, _round_up((B + 1) // 2, 8))
    tb = max(tb, 8)
    while tb > 8 and need(tb) > budget_bytes:
        tb -= 8
    return tb


def conditional_linear_block(x, c, w1_t, b1, w2_t, b2, *, tb=None, out_dtype=None):
    """x: (B, out_ch) f32, c: (B, c_dim); w1_t: (c_dim, out_ch) bf16,
    w2_t: (out_ch, out_ch) bf16; b1/b2: (1, out_ch) f32.
    Pass out_dtype=jnp.bfloat16 to halve writeback traffic if the consumer tolerates it."""
    B, D = x.shape
    Bc, C = c.shape
    assert Bc == B
    assert D > 1 and C > 1, "unbiased std divides by (N-1); feature dims must be > 1"

    out_dtype = x.dtype if out_dtype is None else jnp.dtype(out_dtype)
    out_bytes = jnp.dtype(out_dtype).itemsize

    # c only feeds the bf16 GEMM -> stream it at bf16 (halves its HBM traffic).
    if c.dtype != jnp.bfloat16:
        c = c.astype(jnp.bfloat16)

    # VMEM budget derived from the actual chip, leaving headroom for Mosaic scratch.
    vmem_cap = _tpu_vmem_capacity_bytes()
    vmem_limit = max(min(vmem_cap - (16 << 20), 100 << 20), 32 << 20)
    budget = int(vmem_limit * 0.8)

    if tb is None:
        tb = _pick_tb(B, D, C, budget, out_bytes)
    assert tb > 0 and tb % 8 == 0, f"tile {tb} must be a positive multiple of 8"

    # Pad the batch up to a tile multiple (padded rows produce finite values that are
    # sliced off) instead of collapsing awkward B into one giant tile.
    Bp = _round_up(B, tb)
    if Bp != B:
        x = jnp.pad(x, ((0, Bp - B), (0, 0)))
        c = jnp.pad(c, ((0, Bp - B), (0, 0)))

    def run(single_buffer_weights):
        wkw = {"pipeline_mode": pl.Buffered(1)} if single_buffer_weights else {}
        grid_spec = pltpu.PrefetchScalarGridSpec(
            num_scalar_prefetch=0,
            grid=(Bp // tb,),
            in_specs=[
                pl.BlockSpec((tb, D), lambda i: (i, 0)),          # x    (streamed, f32)
                pl.BlockSpec((tb, C), lambda i: (i, 0)),          # c    (streamed, bf16)
                pl.BlockSpec((C, D), lambda i: (0, 0), **wkw),    # W1^T (resident, bf16)
                pl.BlockSpec((1, D), lambda i: (0, 0), **wkw),    # b1
                pl.BlockSpec((D, D), lambda i: (0, 0), **wkw),    # W2^T (resident, bf16)
                pl.BlockSpec((1, D), lambda i: (0, 0), **wkw),    # b2
            ],
            out_specs=pl.BlockSpec((tb, D), lambda i: (i, 0)),
        )
        return pl.pallas_call(
            cond_linear_block_kernel,
            out_shape=jax.ShapeDtypeStruct((Bp, D), out_dtype),
            grid_spec=grid_spec,
            compiler_params=pltpu.CompilerParams(
                dimension_semantics=("parallel",),                # batch rows independent
                vmem_limit_bytes=int(vmem_limit),
            ),
        )(x, c, w1_t, b1, w2_t, b2)

    try:
        out = run(True)        # single-buffer the constant-index resident weights
    except Exception:
        out = run(False)       # fall back to default pipeline buffering

    return out[:B] if Bp != B else out


# ---------------- parameter setup (plain JAX glue, done once) ----------------

def _spectral_normalize(w, key, n_iter=20, eps=1e-12):
    """Approximate torch spectral_norm: divide weight (out, in) by its top singular
    value estimated with deterministic power iteration."""
    out_dim, in_dim = w.shape
    u = jax.random.normal(key, (out_dim,), dtype=w.dtype)
    u = u / (jnp.linalg.norm(u) + eps)
    v = None
    for _ in range(n_iter):
        v = w.T @ u
        v = v / (jnp.linalg.norm(v) + eps)
        u = w @ v
        u = u / (jnp.linalg.norm(u) + eps)
    sigma = u @ (w @ v)
    return w / sigma


def init_params(key, out_ch, c_dim):
    k1, k2, k3, k4, k5, k6 = jax.random.split(key, 6)
    # torch nn.Linear init: U(-1/sqrt(fan_in), 1/sqrt(fan_in))
    bound1 = 1.0 / jnp.sqrt(c_dim)
    w1 = jax.random.uniform(k1, (out_ch, c_dim), jnp.float32, -bound1, bound1)
    b1 = jax.random.uniform(k2, (out_ch,), jnp.float32, -bound1, bound1)
    bound2 = 1.0 / jnp.sqrt(out_ch)
    w2 = jax.random.uniform(k3, (out_ch, out_ch), jnp.float32, -bound2, bound2)
    b2 = jax.random.uniform(k4, (out_ch,), jnp.float32, -bound2, bound2)

    w1 = _spectral_normalize(w1, k5)
    w2 = _spectral_normalize(w2, k6)

    # Pre-transpose to (in, out); store weights bf16 (MXU-native, parity deviation vs.
    # the f32 PyTorch reference covered by the relaxed tolerance); biases stay f32 rows.
    return (w1.T.astype(jnp.bfloat16), b1.reshape(1, -1),
            w2.T.astype(jnp.bfloat16), b2.reshape(1, -1))


def reference_forward(x, c, w1_t, b1, w2_t, b2):
    """Pure-JAX reference mirroring the PyTorch forward (weights upcast to f32)."""
    w1 = w1_t.astype(jnp.float32)
    w2 = w2_t.astype(jnp.float32)
    c1 = c @ w1 + b1
    m_x = jnp.mean(x, axis=1, keepdims=True)
    s_x = jnp.std(x, axis=1, keepdims=True, ddof=1)
    x_norm = (x - m_x) / (s_x + 1e-5)
    m_c = jnp.mean(c1, axis=1, keepdims=True)
    s_c = jnp.std(c1, axis=1, keepdims=True, ddof=1)
    h = x_norm * s_c + m_c
    h = jnp.where(h >= 0, h, 0.2 * h)
    return h @ w2 + b2


if __name__ == "__main__":
    # out_ch = 128 keeps the output lane-dense; B = 512 lets the auto-picker choose
    # tb = 256 (>= 256 per review) while still giving a 2-step 'parallel' grid.
    B, OUT_CH, C_DIM = 512, 128, 64

    key = jax.random.PRNGKey(0)
    kx, kc, kp = jax.random.split(key, 3)
    x = jax.random.normal(kx, (B, OUT_CH), jnp.float32)
    c = jax.random.normal(kc, (B, C_DIM), jnp.float32)

    w1_t, b1, w2_t, b2 = init_params(kp, OUT_CH, C_DIM)

    out = conditional_linear_block(x, c, w1_t, b1, w2_t, b2)
    out = jax.block_until_ready(out)

    ref = reference_forward(x, c, w1_t, b1, w2_t, b2)
    assert out.shape == (B, OUT_CH)
    # GEMM activations go through bf16 inside the kernel -> relaxed tolerance.
    assert jnp.allclose(out, ref, atol=2e-2, rtol=2e-2), "mismatch vs JAX reference"

    print("KERNEL_OK")
</pallas_src>

<mosaic_0001>
module attributes {stable_mosaic.version = 11 : i64} {
  func.func @cond_linear_block_kernel(%arg0: i32, %arg1: memref<256x128xf32, #tpu.memory_space<vmem>>, %arg2: memref<256x64xbf16, #tpu.memory_space<vmem>>, %arg3: memref<64x128xbf16, #tpu.memory_space<vmem>>, %arg4: memref<1x128xf32, #tpu.memory_space<vmem>>, %arg5: memref<128x128xbf16, #tpu.memory_space<vmem>>, %arg6: memref<1x128xf32, #tpu.memory_space<vmem>>, %arg7: memref<256x128xf32, #tpu.memory_space<vmem>>) attributes {dimension_semantics = [#tpu.dimension_semantics<parallel>], iteration_bounds = array<i64: 2>, scalar_prefetch = 0 : i64, scratch_operands = 0 : i64, tpu.core_type = #tpu.core_type<tc>, window_params = [{transform_indices = @transform_0, window_bounds = array<i64: 256, 128>}, {transform_indices = @transform_1, window_bounds = array<i64: 256, 64>}, {pipeline_mode = #tpu.pipeline_mode<synchronous>, transform_indices = @transform_2, window_bounds = array<i64: 64, 128>}, {pipeline_mode = #tpu.pipeline_mode<synchronous>, transform_indices = @transform_3, window_bounds = array<i64: 1, 128>}, {pipeline_mode = #tpu.pipeline_mode<synchronous>, transform_indices = @transform_4, window_bounds = array<i64: 128, 128>}, {pipeline_mode = #tpu.pipeline_mode<synchronous>, transform_indices = @transform_5, window_bounds = array<i64: 1, 128>}, {transform_indices = @transform_6, window_bounds = array<i64: 256, 128>}]} {
    %c0 = arith.constant 0 : index
    %c0_0 = arith.constant 0 : index
    %0 = vector.load %arg1[%c0, %c0_0] : memref<256x128xf32, #tpu.memory_space<vmem>>, vector<256x128xf32>
    %c0_1 = arith.constant 0 : index
    %c0_2 = arith.constant 0 : index
    %1 = vector.load %arg2[%c0_1, %c0_2] : memref<256x64xbf16, #tpu.memory_space<vmem>>, vector<256x64xbf16>
    %c0_3 = arith.constant 0 : index
    %c0_4 = arith.constant 0 : index
    %2 = vector.load %arg3[%c0_3, %c0_4] : memref<64x128xbf16, #tpu.memory_space<vmem>>, vector<64x128xbf16>
    %cst = arith.constant dense<0.000000e+00> : vector<256x128xf32>
    %3 = tpu.matmul %1, %2, %cst {dimension_numbers = #tpu.dot_dimension_numbers<[1], [0], [0], [1], [0, 0, 1, 1], [], []>} : vector<256x64xbf16>, vector<64x128xbf16>, vector<256x128xf32> -> vector<256x128xf32>
    %c0_5 = arith.constant 0 : index
    %c0_6 = arith.constant 0 : index
    %4 = vector.load %arg4[%c0_5, %c0_6] : memref<1x128xf32, #tpu.memory_space<vmem>>, vector<1x128xf32>
    %5 = vector.broadcast %4 : vector<1x128xf32> to vector<256x128xf32>
    %6 = arith.addf %3, %5 : vector<256x128xf32>
    %cst_7 = arith.constant dense<0.000000e+00> : vector<256xf32>
    %7 = vector.multi_reduction <add>, %0, %cst_7 [1] : vector<256x128xf32> to vector<256xf32>
    %8 = vector.shape_cast %7 : vector<256xf32> to vector<256x1xf32>
    %cst_8 = arith.constant 1.280000e+02 : f32
    %9 = vector.broadcast %cst_8 : f32 to vector<256x1xf32>
    %10 = arith.divf %8, %9 : vector<256x1xf32>
    %11 = vector.broadcast %10 : vector<256x1xf32> to vector<256x128xf32>
    %12 = arith.subf %0, %11 : vector<256x128xf32>
    %13 = arith.mulf %12, %12 : vector<256x128xf32>
    %cst_9 = arith.constant dense<0.000000e+00> : vector<256xf32>
    %14 = vector.multi_reduction <add>, %13, %cst_9 [1] : vector<256x128xf32> to vector<256xf32>
    %15 = vector.shape_cast %14 : vector<256xf32> to vector<256x1xf32>
    %cst_10 = arith.constant 1.280000e+02 : f32
    %cst_11 = arith.constant 1.000000e+00 : f32
    %16 = arith.subf %cst_10, %cst_11 : f32
    %17 = vector.broadcast %16 : f32 to vector<256x1xf32>
    %18 = arith.divf %15, %17 : vector<256x1xf32>
    %19 = math.sqrt %18 : vector<256x1xf32>
    %cst_12 = arith.constant dense<0.000000e+00> : vector<256xf32>
    %20 = vector.multi_reduction <add>, %6, %cst_12 [1] : vector<256x128xf32> to vector<256xf32>
    %21 = vector.shape_cast %20 : vector<256xf32> to vector<256x1xf32>
    %cst_13 = arith.constant 1.280000e+02 : f32
    %22 = vector.broadcast %cst_13 : f32 to vector<256x1xf32>
    %23 = arith.divf %21, %22 : vector<256x1xf32>
    %24 = vector.broadcast %23 : vector<256x1xf32> to vector<256x128xf32>
    %25 = arith.subf %6, %24 : vector<256x128xf32>
    %26 = arith.mulf %25, %25 : vector<256x128xf32>
    %cst_14 = arith.constant dense<0.000000e+00> : vector<256xf32>
    %27 = vector.multi_reduction <add>, %26, %cst_14 [1] : vector<256x128xf32> to vector<256xf32>
    %28 = vector.shape_cast %27 : vector<256xf32> to vector<256x1xf32>
    %cst_15 = arith.constant 1.280000e+02 : f32
    %cst_16 = arith.constant 1.000000e+00 : f32
    %29 = arith.subf %cst_15, %cst_16 : f32
    %30 = vector.broadcast %29 : f32 to vector<256x1xf32>
    %31 = arith.divf %28, %30 : vector<256x1xf32>
    %32 = math.sqrt %31 : vector<256x1xf32>
    %cst_17 = arith.constant 9.99999974E-6 : f32
    %33 = vector.broadcast %cst_17 : f32 to vector<256x1xf32>
    %34 = arith.addf %19, %33 : vector<256x1xf32>
    %35 = tpu.reciprocal %34 {approx = true} : vector<256x1xf32> -> vector<256x1xf32>
    %36 = arith.mulf %32, %35 : vector<256x1xf32>
    %37 = vector.broadcast %36 : vector<256x1xf32> to vector<256x128xf32>
    %38 = arith.mulf %12, %37 : vector<256x128xf32>
    %39 = vector.broadcast %23 : vector<256x1xf32> to vector<256x128xf32>
    %40 = arith.addf %38, %39 : vector<256x128xf32>
    %cst_18 = arith.constant 2.000000e-01 : f32
    %41 = vector.broadcast %cst_18 : f32 to vector<256x128xf32>
    %42 = arith.mulf %41, %40 : vector<256x128xf32>
    %43 = arith.maximumf %40, %42 : vector<256x128xf32>
    %44 = arith.truncf %43 : vector<256x128xf32> to vector<256x128xbf16>
    %c0_19 = arith.constant 0 : index
    %c0_20 = arith.constant 0 : index
    %45 = vector.load %arg5[%c0_19, %c0_20] : memref<128x128xbf16, #tpu.memory_space<vmem>>, vector<128x128xbf16>
    %cst_21 = arith.constant dense<0.000000e+00> : vector<256x128xf32>
    %46 = tpu.matmul %44, %45, %cst_21 {dimension_numbers = #tpu.dot_dimension_numbers<[1], [0], [0], [1], [0, 0, 1, 1], [], []>} : vector<256x128xbf16>, vector<128x128xbf16>, vector<256x128xf32> -> vector<256x128xf32>
    %c0_22 = arith.constant 0 : index
    %c0_23 = arith.constant 0 : index
    %47 = vector.load %arg6[%c0_22, %c0_23] : memref<1x128xf32, #tpu.memory_space<vmem>>, vector<1x128xf32>
    %48 = vector.broadcast %47 : vector<1x128xf32> to vector<256x128xf32>
    %49 = arith.addf %46, %48 : vector<256x128xf32>
    %c0_24 = arith.constant 0 : index
    %c0_25 = arith.constant 0 : index
    %50 = vector.load %arg7[%c0_24, %c0_25] : memref<256x128xf32, #tpu.memory_space<vmem>>, vector<256x128xf32>
    tpu.vector_store %arg7[%c0_24, %c0_25], %49 {strides = array<i32>} : memref<256x128xf32, #tpu.memory_space<vmem>>, vector<256x128xf32>,
    return
  }
  func.func @transform_0(%arg0: i32) -> (i32, i32) {
    %c0_i32 = arith.constant 0 : i32
    %c0_i32_0 = arith.constant 0 : i32
    return %arg0, %c0_i32 : i32, i32
  }
  func.func @transform_1(%arg0: i32) -> (i32, i32) {
    %c0_i32 = arith.constant 0 : i32
    %c0_i32_0 = arith.constant 0 : i32
    return %arg0, %c0_i32 : i32, i32
  }
  func.func @transform_2(%arg0: i32) -> (i32, i32) {
    %c0_i32 = arith.constant 0 : i32
    %c0_i32_0 = arith.constant 0 : i32
    %c0_i32_1 = arith.constant 0 : i32
    return %c0_i32, %c0_i32_0 : i32, i32
  }
  func.func @transform_3(%arg0: i32) -> (i32, i32) {
    %c0_i32 = arith.constant 0 : i32
    %c0_i32_0 = arith.constant 0 : i32
    %c0_i32_1 = arith.constant 0 : i32
    return %c0_i32, %c0_i32_0 : i32, i32
  }
  func.func @transform_4(%arg0: i32) -> (i32, i32) {
    %c0_i32 = arith.constant 0 : i32
    %c0_i32_0 = arith.constant 0 : i32
    %c0_i32_1 = arith.constant 0 : i32
    return %c0_i32, %c0_i32_0 : i32, i32
  }
  func.func @transform_5(%arg0: i32) -> (i32, i32) {
    %c0_i32 = arith.constant 0 : i32
    %c0_i32_0 = arith.constant 0 : i32
    %c0_i32_1 = arith.constant 0 : i32
    return %c0_i32, %c0_i32_0 : i32, i32
  }
  func.func @transform_6(%arg0: i32) -> (i32, i32) {
    %c0_i32 = arith.constant 0 : i32
    %c0_i32_0 = arith.constant 0 : i32
    return %arg0, %c0_i32 : i32, i32
  }
}

module attributes {stable_mosaic.version = 11 : i64} {
  func.func @cond_linear_block_kernel(%arg0: i32, %arg1: memref<256x128xf32, #tpu.memory_space<vmem>>, %arg2: memref<256x64xbf16, #tpu.memory_space<vmem>>, %arg3: memref<64x128xbf16, #tpu.memory_space<vmem>>, %arg4: memref<1x128xf32, #tpu.memory_space<vmem>>, %arg5: memref<128x128xbf16, #tpu.memory_space<vmem>>, %arg6: memref<1x128xf32, #tpu.memory_space<vmem>>, %arg7: memref<256x128xf32, #tpu.memory_space<vmem>>) attributes {dimension_semantics = [#tpu.dimension_semantics<parallel>], iteration_bounds = array<i64: 2>, scalar_prefetch = 0 : i64, scratch_operands = 0 : i64, tpu.core_type = #tpu.core_type<tc>, window_params = [{transform_indices = @transform_0, window_bounds = array<i64: 256, 128>}, {transform_indices = @transform_1, window_bounds = array<i64: 256, 64>}, {pipeline_mode = #tpu.pipeline_mode<synchronous>, transform_indices = @transform_2, window_bounds = array<i64: 64, 128>}, {pipeline_mode = #tpu.pipeline_mode<synchronous>, transform_indices = @transform_3, window_bounds = array<i64: 1, 128>}, {pipeline_mode = #tpu.pipeline_mode<synchronous>, transform_indices = @transform_4, window_bounds = array<i64: 128, 128>}, {pipeline_mode = #tpu.pipeline_mode<synchronous>, transform_indices = @transform_5, window_bounds = array<i64: 1, 128>}, {transform_indices = @transform_6, window_bounds = array<i64: 256, 128>}]} {
    %c0 = arith.constant 0 : index
    %c0_0 = arith.constant 0 : index
    %0 = vector.load %arg1[%c0, %c0_0] : memref<256x128xf32, #tpu.memory_space<vmem>>, vector<256x128xf32>
    %c0_1 = arith.constant 0 : index
    %c0_2 = arith.constant 0 : index
    %1 = vector.load %arg2[%c0_1, %c0_2] : memref<256x64xbf16, #tpu.memory_space<vmem>>, vector<256x64xbf16>
    %c0_3 = arith.constant 0 : index
    %c0_4 = arith.constant 0 : index
    %2 = vector.load %arg3[%c0_3, %c0_4] : memref<64x128xbf16, #tpu.memory_space<vmem>>, vector<64x128xbf16>
    %cst = arith.constant dense<0.000000e+00> : vector<256x128xf32>
    %3 = tpu.matmul %1, %2, %cst {dimension_numbers = #tpu.dot_dimension_numbers<[1], [0], [0], [1], [0, 0, 1, 1], [], []>} : vector<256x64xbf16>, vector<64x128xbf16>, vector<256x128xf32> -> vector<256x128xf32>
    %c0_5 = arith.constant 0 : index
    %c0_6 = arith.constant 0 : index
    %4 = vector.load %arg4[%c0_5, %c0_6] : memref<1x128xf32, #tpu.memory_space<vmem>>, vector<1x128xf32>
    %5 = vector.broadcast %4 : vector<1x128xf32> to vector<256x128xf32>
    %6 = arith.addf %3, %5 : vector<256x128xf32>
    %cst_7 = arith.constant dense<0.000000e+00> : vector<256xf32>
    %7 = vector.multi_reduction <add>, %0, %cst_7 [1] : vector<256x128xf32> to vector<256xf32>
    %8 = vector.shape_cast %7 : vector<256xf32> to vector<256x1xf32>
    %cst_8 = arith.constant 1.280000e+02 : f32
    %9 = vector.broadcast %cst_8 : f32 to vector<256x1xf32>
    %10 = arith.divf %8, %9 : vector<256x1xf32>
    %11 = vector.broadcast %10 : vector<256x1xf32> to vector<256x128xf32>
    %12 = arith.subf %0, %11 : vector<256x128xf32>
    %13 = arith.mulf %12, %12 : vector<256x128xf32>
    %cst_9 = arith.constant dense<0.000000e+00> : vector<256xf32>
    %14 = vector.multi_reduction <add>, %13, %cst_9 [1] : vector<256x128xf32> to vector<256xf32>
    %15 = vector.shape_cast %14 : vector<256xf32> to vector<256x1xf32>
    %cst_10 = arith.constant 1.280000e+02 : f32
    %cst_11 = arith.constant 1.000000e+00 : f32
    %16 = arith.subf %cst_10, %cst_11 : f32
    %17 = vector.broadcast %16 : f32 to vector<256x1xf32>
    %18 = arith.divf %15, %17 : vector<256x1xf32>
    %19 = math.sqrt %18 : vector<256x1xf32>
    %cst_12 = arith.constant dense<0.000000e+00> : vector<256xf32>
    %20 = vector.multi_reduction <add>, %6, %cst_12 [1] : vector<256x128xf32> to vector<256xf32>
    %21 = vector.shape_cast %20 : vector<256xf32> to vector<256x1xf32>
    %cst_13 = arith.constant 1.280000e+02 : f32
    %22 = vector.broadcast %cst_13 : f32 to vector<256x1xf32>
    %23 = arith.divf %21, %22 : vector<256x1xf32>
    %24 = vector.broadcast %23 : vector<256x1xf32> to vector<256x128xf32>
    %25 = arith.subf %6, %24 : vector<256x128xf32>
    %26 = arith.mulf %25, %25 : vector<256x128xf32>
    %cst_14 = arith.constant dense<0.000000e+00> : vector<256xf32>
    %27 = vector.multi_reduction <add>, %26, %cst_14 [1] : vector<256x128xf32> to vector<256xf32>
    %28 = vector.shape_cast %27 : vector<256xf32> to vector<256x1xf32>
    %cst_15 = arith.constant 1.280000e+02 : f32
    %cst_16 = arith.constant 1.000000e+00 : f32
    %29 = arith.subf %cst_15, %cst_16 : f32
    %30 = vector.broadcast %29 : f32 to vector<256x1xf32>
    %31 = arith.divf %28, %30 : vector<256x1xf32>
    %32 = math.sqrt %31 : vector<256x1xf32>
    %cst_17 = arith.constant 9.99999974E-6 : f32
    %33 = vector.broadcast %cst_17 : f32 to vector<256x1xf32>
    %34 = arith.addf %19, %33 : vector<256x1xf32>
    %35 = tpu.reciprocal %34 {approx = true} : vector<256x1xf32> -> vector<256x1xf32>
    %36 = arith.mulf %32, %35 : vector<256x1xf32>
    %37 = vector.broadcast %36 : vector<256x1xf32> to vector<256x128xf32>
    %38 = arith.mulf %12, %37 : vector<256x128xf32>
    %39 = vector.broadcast %23 : vector<256x1xf32> to vector<256x128xf32>
    %40 = arith.addf %38, %39 : vector<256x128xf32>
    %cst_18 = arith.constant 2.000000e-01 : f32
    %41 = vector.broadcast %cst_18 : f32 to vector<256x128xf32>
    %42 = arith.mulf %41, %40 : vector<256x128xf32>
    %43 = arith.maximumf %40, %42 : vector<256x128xf32>
    %44 = arith.truncf %43 : vector<256x128xf32> to vector<256x128xbf16>
    %c0_19 = arith.constant 0 : index
    %c0_20 = arith.constant 0 : index
    %45 = vector.load %arg5[%c0_19, %c0_20] : memref<128x128xbf16, #tpu.memory_space<vmem>>, vector<128x128xbf16>
    %cst_21 = arith.constant dense<0.000000e+00> : vector<256x128xf32>
    %46 = tpu.matmul %44, %45, %cst_21 {dimension_numbers = #tpu.dot_dimension_numbers<[1], [0], [0], [1], [0, 0, 1, 1], [], []>} : vector<256x128xbf16>, vector<128x128xbf16>, vector<256x128xf32> -> vector<256x128xf32>
    %c0_22 = arith.constant 0 : index
    %c0_23 = arith.constant 0 : index
    %47 = vector.load %arg6[%c0_22, %c0_23] : memref<1x128xf32, #tpu.memory_space<vmem>>, vector<1x128xf32>
    %48 = vector.broadcast %47 : vector<1x128xf32> to vector<256x128xf32>
    %49 = arith.addf %46, %48 : vector<256x128xf32>
    %c0_24 = arith.constant 0 : index
    %c0_25 = arith.constant 0 : index
    %50 = vector.load %arg7[%c0_24, %c0_25] : memref<256x128xf32, #tpu.memory_space<vmem>>, vector<256x128xf32>
    tpu.vector_store %arg7[%c0_24, %c0_25], %49 {strides = array<i32>} : memref<256x128xf32, #tpu.memory_space<vmem>>, vector<256x128xf32>,
    return
  }
  func.func @transform_0(%arg0: i32) -> (i32, i32) {
    %c0_i32 = arith.constant 0 : i32
    %c0_i32_0 = arith.constant 0 : i32
    return %arg0, %c0_i32 : i32, i32
  }
  func.func @transform_1(%arg0: i32) -> (i32, i32) {
    %c0_i32 = arith.constant 0 : i32
    %c0_i32_0 = arith.constant 0 : i32
    return %arg0, %c0_i32 : i32, i32
  }
  func.func @transform_2(%arg0: i32) -> (i32, i32) {
    %c0_i32 = arith.constant 0 : i32
    %c0_i32_0 = arith.constant 0 : i32
    %c0_i32_1 = arith.constant 0 : i32
    return %c0_i32, %c0_i32_0 : i32, i32
  }
  func.func @transform_3(%arg0: i32) -> (i32, i32) {
    %c0_i32 = arith.constant 0 : i32
    %c0_i32_0 = arith.constant 0 : i32
    %c0_i32_1 = arith.constant 0 : i32
    return %c0_i32, %c0_i32_0 : i32, i32
  }
  func.func @transform_4(%arg0: i32) -> (i32, i32) {
    %c0_i32 = arith.constant 0 : i32
    %c0_i32_0 = arith.constant 0 : i32
    %c0_i32_1 = arith.constant 0 : i32
    return %c0_i32, %c0_i32_0 : i32, i32
  }
  func.func @transform_5(%arg0: i32) -> (i32, i32) {
    %c0_i32 = arith.constant 0 : i32
    %c0_i32_0 = arith.constant 0 : i32
    %c0_i32_1 = arith.constant 0 : i32
    return %c0_i32, %c0_i32_0 : i32, i32
  }
  func.func @transform_6(%arg0: i32) -> (i32, i32) {
    %c0_i32 = arith.constant 0 : i32
    %c0_i32_0 = arith.constant 0 : i32
    return %arg0, %c0_i32 : i32, i32
  }
}

</mosaic_0001>

<llo_original>
// kernel: tpu_custom_call.1
$region0: #{tpu_custom_call.1}
  #allocation0 [shape = 'u32[]', space=smem, size = 0x4, offset = 0x4, fixed_abs, tag = 'smem constant byte address 0x4 - core index']
  #allocation1 [shape = 'u32[144,128]{1,0:T(1,128)}', space=vmem, size = 0x12000, scoped, tag = 'internal scratch']
  %s0 = inlined_call_operand.hbm [shape: f32[512,128], index: 0, kind: input, shape index: {}]
  %s1 = inlined_call_operand.vmem [shape: bf16[512,64], index: 1, kind: input, shape index: {}]
  %s2 = inlined_call_operand.vmem [shape: bf16[64,128], index: 2, kind: input, shape index: {}]
  %s3 = inlined_call_operand.vmem [shape: f32[1,128], index: 3, kind: input, shape index: {}]
  %s4 = inlined_call_operand.vmem [shape: bf16[128,128], index: 4, kind: input, shape index: {}]
  %s5 = inlined_call_operand.vmem [shape: f32[1,128], index: 5, kind: input, shape index: {}]
  %s6 = inlined_call_operand.hbm [shape: f32[512,128], index: 6, kind: output, shape index: {}]
  %s7 = sld [smem:[#allocation0]]
  $region61: #{tpu_custom_call.1} parent=0
    _
  %s9 = ssub.s32 1, %s7
  %s10 = scalar_select 0, %s9, %s7
  $region1: #{tpu_custom_call.1} parent=0
    #allocation2 [shape = 'u8[262144]{0}', space=vmem, size = 0x40000, scoped, tag = 'input window, operand 0']
    #allocation3 [shape = 's32[2]{0}', space=sflag, size = 0x8, scoped, tag = 'scoped memory for tpu_custom_call.1']
    #allocation4 [shape = 's32[2]{0}', space=sflag, size = 0x8, scoped, tag = 'scoped memory for tpu_custom_call.1']
    #allocation5 [shape = 'u8[262144]{0}', space=vmem, size = 0x40000, scoped, tag = 'output window, operand 0']
    %11 = vsyncpa [#allocation3], 0
    %s12 = scalar_lea.sflag [#allocation3], 1
    %13 = vsyncpa %s12, 0
    %14 = vsyncpa [#allocation4], 0
    %s15 = scalar_lea.sflag [#allocation4], 1
    %16 = vsyncpa %s15, 0
    loop: start=0, step=1, limit=4
    $region2: #{tpu_custom_call.1} parent=1 // loop_pre_header
      _
    $region3: #{tpu_custom_call.1} parent=1 // loop_header
      %s18 = sphi 0, %s22
      %p19 = scmp.ge.s32.totalorder %s18, 4
      %s28 = sphi 0, %s30
      %s31 = sphi 0, %s28
      %s32 = sphi 0, %s31
      %s48 = sphi 0, %s32
      %s54 = sphi 0, %s56
      %s57 = sphi 0, %s54
      %s58 = sphi 0, %s57
      %s74 = sphi 0, %s58
      %s78 = sphi 0, %s78
      %s80 = sphi 0, %s78
      %s81 = sphi 0, %s80
      %s95 = sphi 0, %s81
      %s99 = sphi 0, %s99
      %s101 = sphi 0, %s99
      %s102 = sphi 0, %s101
      %s116 = sphi 0, %s102
      %s120 = sphi 0, %s120
      %s122 = sphi 0, %s120
      %s123 = sphi 0, %s122
      %s137 = sphi 0, %s123
      %s141 = sphi 0, %s141
      %s143 = sphi 0, %s141
      %s144 = sphi 0, %s143
      %s158 = sphi 0, %s144
      %s164 = sphi 0, %s166
      %s167 = sphi 0, %s164
      %s168 = sphi 0, %s167
      %s184 = sphi 0, %s168
    $region4: #{tpu_custom_call.1} parent=1 // loop_header_branch
      %21 = sbr.rel (%p19) target = $region8
    $region5: #{tpu_custom_call.1} parent=1 // loop_body
      %s23 = ssub.s32 %s18, 1
      %s24 = ssub.s32 %s18, 2
      %s25 = sadd.s32 %s18, 1
      %s26 = ssub.s32 %s18, %s25
      %p27 = scmp.eq.s32.totalorder %s26, 0
      %s29 = sadd.s32 %s28, 1
      %s30 = scalar_select %p27, %s28, %s29
      %p33 = pneg %p27
      %p34 = scmp.eq.s32.totalorder %s18, 1
      %p35 = por %p33, %p34
      %p36 = scmp.ne.s32.totalorder %s28, %s31
      %p37 = scmp.eq.s32.totalorder %s18, 0
      %p38 = por %p36, %p37
      %p39 = scmp.ne.s32.totalorder %s28, %s31
      %p40 = scmp.eq.s32.totalorder %s23, 1
      %p41 = por %p39, %p40
      %p42 = scmp.ne.s32.totalorder %s31, %s32
      %p43 = scmp.eq.s32.totalorder %s23, 0
      %p44 = por %p42, %p43
      %p45 = scmp.ne.s32.totalorder %s31, %s32
      %p46 = scmp.eq.s32.totalorder %s24, 1
      %p47 = por %p45, %p46
      %p49 = scmp.ne.s32.totalorder %s32, %s48
      %p50 = scmp.eq.s32.totalorder %s24, 0
      %p51 = por %p49, %p50
      %s52 = ssub.s32 %s18, %s25
      %p53 = scmp.eq.s32.totalorder %s52, 0
      %s55 = sadd.s32 %s54, 1
      %s56 = scalar_select %p53, %s54, %s55
      %p59 = pneg %p53
      %p60 = scmp.eq.s32.totalorder %s18, 1
      %p61 = por %p59, %p60
      %p62 = scmp.ne.s32.totalorder %s54, %s57
      %p63 = scmp.eq.s32.totalorder %s18, 0
      %p64 = por %p62, %p63
      %p65 = scmp.ne.s32.totalorder %s54, %s57
      %p66 = scmp.eq.s32.totalorder %s23, 1
      %p67 = por %p65, %p66
      %p68 = scmp.ne.s32.totalorder %s57, %s58
      %p69 = scmp.eq.s32.totalorder %s23, 0
      %p70 = por %p68, %p69
      %p71 = scmp.ne.s32.totalorder %s57, %s58
      %p72 = scmp.eq.s32.totalorder %s24, 1
      %p73 = por %p71, %p72
      %p75 = scmp.ne.s32.totalorder %s58, %s74
      %p76 = scmp.eq.s32.totalorder %s24, 0
      %p77 = por %p75, %p76
      %s79 = sadd.s32 %s78, 1
      %p82 = scmp.eq.s32.totalorder %s18, 1
      %p83 = scmp.ne.s32.totalorder %s78, %s80
      %p84 = scmp.eq.s32.totalorder %s18, 0
      %p85 = por %p83, %p84
      %p86 = scmp.ne.s32.totalorder %s78, %s80
      %p87 = scmp.eq.s32.totalorder %s23, 1
      %p88 = por %p86, %p87
      %p89 = scmp.ne.s32.totalorder %s80, %s81
      %p90 = scmp.eq.s32.totalorder %s23, 0
      %p91 = por %p89, %p90
      %p92 = scmp.ne.s32.totalorder %s80, %s81
      %p93 = scmp.eq.s32.totalorder %s24, 1
      %p94 = por %p92, %p93
      %p96 = scmp.ne.s32.totalorder %s81, %s95
      %p97 = scmp.eq.s32.totalorder %s24, 0
      %p98 = por %p96, %p97
      %s100 = sadd.s32 %s99, 1
      %p103 = scmp.eq.s32.totalorder %s18, 1
      %p104 = scmp.ne.s32.totalorder %s99, %s101
      %p105 = scmp.eq.s32.totalorder %s18, 0
      %p106 = por %p104, %p105
      %p107 = scmp.ne.s32.totalorder %s99, %s101
      %p108 = scmp.eq.s32.totalorder %s23, 1
      %p109 = por %p107, %p108
      %p110 = scmp.ne.s32.totalorder %s101, %s102
      %p111 = scmp.eq.s32.totalorder %s23, 0
      %p112 = por %p110, %p111
      %p113 = scmp.ne.s32.totalorder %s101, %s102
      %p114 = scmp.eq.s32.totalorder %s24, 1
      %p115 = por %p113, %p114
      %p117 = scmp.ne.s32.totalorder %s102, %s116
      %p118 = scmp.eq.s32.totalorder %s24, 0
      %p119 = por %p117, %p118
      %s121 = sadd.s32 %s120, 1
      %p124 = scmp.eq.s32.totalorder %s18, 1
      %p125 = scmp.ne.s32.totalorder %s120, %s122
      %p126 = scmp.eq.s32.totalorder %s18, 0
      %p127 = por %p125, %p126
      %p128 = scmp.ne.s32.totalorder %s120, %s122
      %p129 = scmp.eq.s32.totalorder %s23, 1
      %p130 = por %p128, %p129
      %p131 = scmp.ne.s32.totalorder %s122, %s123
      %p132 = scmp.eq.s32.totalorder %s23, 0
      %p133 = por %p131, %p132
      %p134 = scmp.ne.s32.totalorder %s122, %s123
      %p135 = scmp.eq.s32.totalorder %s24, 1
      %p136 = por %p134, %p135
      %p138 = scmp.ne.s32.totalorder %s123, %s137
      %p139 = scmp.eq.s32.totalorder %s24, 0
      %p140 = por %p138, %p139
      %s142 = sadd.s32 %s141, 1
      %p145 = scmp.eq.s32.totalorder %s18, 1
      %p146 = scmp.ne.s32.totalorder %s141, %s143
      %p147 = scmp.eq.s32.totalorder %s18, 0
      %p148 = por %p146, %p147
      %p149 = scmp.ne.s32.totalorder %s141, %s143
      %p150 = scmp.eq.s32.totalorder %s23, 1
      %p151 = por %p149, %p150
      %p152 = scmp.ne.s32.totalorder %s143, %s144
      %p153 = scmp.eq.s32.totalorder %s23, 0
      %p154 = por %p152, %p153
      %p155 = scmp.ne.s32.totalorder %s143, %s144
      %p156 = scmp.eq.s32.totalorder %s24, 1
      %p157 = por %p155, %p156
      %p159 = scmp.ne.s32.totalorder %s144, %s158
      %p160 = scmp.eq.s32.totalorder %s24, 0
      %p161 = por %p159, %p160
      %s162 = ssub.s32 %s18, %s25
      %p163 = scmp.eq.s32.totalorder %s162, 0
      %s165 = sadd.s32 %s164, 1
      %s166 = scalar_select %p163, %s164, %s165
      %p169 = pneg %p163
      %p170 = scmp.eq.s32.totalorder %s18, 1
      %p171 = por %p169, %p170
      %p172 = scmp.ne.s32.totalorder %s164, %s167
      %p173 = scmp.eq.s32.totalorder %s18, 0
      %p174 = por %p172, %p173
      %p175 = scmp.ne.s32.totalorder %s164, %s167
      %p176 = scmp.eq.s32.totalorder %s23, 1
      %p177 = por %p175, %p176
      %p178 = scmp.ne.s32.totalorder %s167, %s168
      %p179 = scmp.eq.s32.totalorder %s23, 0
      %p180 = por %p178, %p179
      %p181 = scmp.ne.s32.totalorder %s167, %s168
      %p182 = scmp.eq.s32.totalorder %s24, 1
      %p183 = por %p181, %p182
      %p185 = scmp.ne.s32.totalorder %s168, %s184
      %p186 = scmp.eq.s32.totalorder %s24, 0
      %p187 = por %p185, %p186
      %p188 = scmp.le.s32.totalorder 1, %s18
      %p189 = scmp.lt.s32.totalorder %s18, 3
      %p190 = pnand %p188, %p189
      %p191 = pneg %p190
      // Predicated region
      $region9: #{tpu_custom_call.1} parent=5 // pred_check
        _
      $region10: #{tpu_custom_call.1} parent=5 // pred_check_branch
        %193 = sbr.rel (%p190) target = $region12
      $region11: #{tpu_custom_call.1} parent=5 // pred_region
        %s194 = ssub.s32 %s18, 1
        // Predicated region
        $region13: #{tpu_custom_call.1} parent=11 // pred_check
          %p195 = pneg %p91
        $region14: #{tpu_custom_call.1} parent=11 // pred_check_branch
          %197 = sbr.rel (%p195) target = $region16
        $region15: #{tpu_custom_call.1} parent=11 // pred_region
          _
        $region16: #{tpu_custom_call.1} parent=11 // pred_fallthru
          _
        // Predicated region
        $region17: #{tpu_custom_call.1} parent=11 // pred_check
          %p198 = pneg %p112
        $region18: #{tpu_custom_call.1} parent=11 // pred_check_branch
          %200 = sbr.rel (%p198) target = $region20
        $region19: #{tpu_custom_call.1} parent=11 // pred_region
          _
        $region20: #{tpu_custom_call.1} parent=11 // pred_fallthru
          _
        // Predicated region
        $region21: #{tpu_custom_call.1} parent=11 // pred_check
          %p201 = pneg %p133
        $region22: #{tpu_custom_call.1} parent=11 // pred_check_branch
          %203 = sbr.rel (%p201) target = $region24
        $region23: #{tpu_custom_call.1} parent=11 // pred_region
          _
        $region24: #{tpu_custom_call.1} parent=11 // pred_fallthru
          _
        // Predicated region
        $region25: #{tpu_custom_call.1} parent=11 // pred_check
          %p204 = pneg %p154
        $region26: #{tpu_custom_call.1} parent=11 // pred_check_branch
          %206 = sbr.rel (%p204) target = $region28
        $region27: #{tpu_custom_call.1} parent=11 // pred_region
          _
        $region28: #{tpu_custom_call.1} parent=11 // pred_fallthru
          _
      $region12: #{tpu_custom_call.1} parent=5 // pred_fallthru
        _
      %p207 = scmp.lt.s32.totalorder %s18, 2
      // Predicated region
      $region29: #{tpu_custom_call.1} parent=5 // pred_check
        %p208 = pneg %p207
      $region30: #{tpu_custom_call.1} parent=5 // pred_check_branch
        %210 = sbr.rel (%p208) target = $region32
      $region31: #{tpu_custom_call.1} parent=5 // pred_region
        // Predicated region
        $region33: #{tpu_custom_call.1} parent=31 // pred_check
          %p211 = pneg %p38
        $region34: #{tpu_custom_call.1} parent=31 // pred_check_branch
          %213 = sbr.rel (%p211) target = $region36
        $region35: #{tpu_custom_call.1} parent=31 // pred_region
          %s214 = sand.u32 %s28, 1
          %s215 = scalar_lea.sflag [#allocation3], %s214
          %s216 = sand.u32 %s28, 1
          %s217 = smul.addr %s216, 256
          %s218 = scalar_lea.vmem [#allocation2], %s217
          %s219 = smul.u32 32, %s18
          %s221 = ssub.s32 4096, 4096
          %222 = vsyncadd %s215, %s221
          %s223 = smul.addr %s219, 128
          %s224 = scalar_lea.hbm %s0, %s223
          %s225 = sshll.u32 %s218, 4
          %s226 = int_to_ptr.vmem [resolvable:$true] %s225
          %231 = dma.hbm_to_vmem [thread:$0]  %s224, 4096, %s226, %s215, 128, 128, 8
        $region36: #{tpu_custom_call.1} parent=31 // pred_fallthru
          _
        // Predicated region
        $region37: #{tpu_custom_call.1} parent=31 // pred_check
          %p232 = pneg %p64
        $region38: #{tpu_custom_call.1} parent=31 // pred_check_branch
          %234 = sbr.rel (%p232) target = $region40
        $region39: #{tpu_custom_call.1} parent=31 // pred_region
          %s235 = smul.u32 32, %s18
          %p236 = scmp.lt.s32.totalorder %s235, 63
          %s237 = scalar_select %p236, %s235, 63
          %s238 = smul.addr %s237, 4
          %s239 = scalar_lea.vmem %s1, %s238
          %s240 = smul.u32 32, %s18
        $region40: #{tpu_custom_call.1} parent=31 // pred_fallthru
          _
      $region32: #{tpu_custom_call.1} parent=5 // pred_fallthru
        _
      %p241 = scmp.le.s32.totalorder 1, %s18
      %p242 = scmp.lt.s32.totalorder %s18, 3
      %p243 = pnand %p241, %p242
      %p244 = pneg %p243
      // Predicated region
      $region41: #{tpu_custom_call.1} parent=5 // pred_check
        _
      $region42: #{tpu_custom_call.1} parent=5 // pred_check_branch
        %246 = sbr.rel (%p243) target = $region44
      $region43: #{tpu_custom_call.1} parent=5 // pred_region
        %s247 = ssub.s32 %s18, 1
        %s248 = sand.u32 %s31, 1
        %s249 = scalar_lea.sflag [#allocation3], %s248
        %s250 = sand.u32 %s31, 1
        %s251 = smul.addr %s250, 256
        %s252 = scalar_lea.vmem [#allocation2], %s251
        // Predicated region
        $region45: #{tpu_custom_call.1} parent=43 // pred_check
          %p253 = pneg %p44
        $region46: #{tpu_custom_call.1} parent=43 // pred_check_branch
          %255 = sbr.rel (%p253) target = $region48
        $region47: #{tpu_custom_call.1} parent=43 // pred_region
          %256 = dma.done %s249, 4096
        $region48: #{tpu_custom_call.1} parent=43 // pred_fallthru
          _
        %s257 = sand.u32 %s31, 1
        %s258 = scalar_lea.sflag [#allocation3], %s257
        %s259 = sand.u32 %s31, 1
        %s260 = smul.addr %s259, 256
        %s261 = scalar_lea.vmem [#allocation2], %s260
        %p262 = pneg %p44
        %p263 = pneg %p41
        %s264 = smul.u32 32, %s23
        %p265 = scmp.lt.s32.totalorder %s264, 63
        %s266 = scalar_select %p265, %s264, 63
        %s267 = smul.addr %s266, 4
        %s268 = scalar_lea.vmem %s1, %s267
        %p269 = pneg %p70
        %p270 = pneg %p67
        %p271 = pneg %p91
        %p272 = pneg %p88
        %p273 = pneg %p112
        %p274 = pneg %p109
        %p275 = pneg %p133
        %p276 = pneg %p130
        %p277 = pneg %p154
        %p278 = pneg %p151
        %p279 = pneg %p180
        %p280 = pneg %p177
        %s281 = sand.u32 %s167, 1
        %s282 = scalar_lea.sflag [#allocation4], %s281
        %s283 = sand.u32 %s167, 1
        %s284 = smul.addr %s283, 256
        %s285 = scalar_lea.vmem [#allocation5], %s284
        %s286 = smul.u32 32, %s23
        %s287 = smul.u32 32, %s23
        %p288 = scmp.lt.s32.totalorder %s287, 63
        %s289 = scalar_select %p288, %s287, 63
        %s290 = smul.addr %s289, 4
        %s291 = scalar_lea.vmem %s1, %s290
        %s292 = smul.u32 32, %s23
        %s293 = smul.u32 32, %s23
        %v295 = vld [vmem:[%s252] sm:$0xff]
        %v296 = vld [vmem:[%s252 + $0x8] sm:$0xff]
        %v297 = vld [vmem:[%s252 + $0x10] sm:$0xff]
        %v298 = vld [vmem:[%s252 + $0x18] sm:$0xff]
        %v299 = vld [vmem:[%s252 + $0x20] sm:$0xff]
        %v300 = vld [vmem:[%s252 + $0x28] sm:$0xff]
        %v301 = vld [vmem:[%s252 + $0x30] sm:$0xff]
        %v302 = vld [vmem:[%s252 + $0x38] sm:$0xff]
        %v303 = vld [vmem:[%s252 + $0x40] sm:$0xff]
        %v304 = vld [vmem:[%s252 + $0x48] sm:$0xff]
        %v305 = vld [vmem:[%s252 + $0x50] sm:$0xff]
        %v306 = vld [vmem:[%s252 + $0x58] sm:$0xff]
        %v307 = vld [vmem:[%s252 + $0x60] sm:$0xff]
        %v308 = vld [vmem:[%s252 + $0x68] sm:$0xff]
        %v309 = vld [vmem:[%s252 + $0x70] sm:$0xff]
        %v310 = vld [vmem:[%s252 + $0x78] sm:$0xff]
        %v311 = vld [vmem:[%s252 + $0x80] sm:$0xff]
        %v312 = vld [vmem:[%s252 + $0x88] sm:$0xff]
        %v313 = vld [vmem:[%s252 + $0x90] sm:$0xff]
        %v314 = vld [vmem:[%s252 + $0x98] sm:$0xff]
        %v315 = vld [vmem:[%s252 + $0xa0] sm:$0xff]
        %v316 = vld [vmem:[%s252 + $0xa8] sm:$0xff]
        %v317 = vld [vmem:[%s252 + $0xb0] sm:$0xff]
        %v318 = vld [vmem:[%s252 + $0xb8] sm:$0xff]
        %v319 = vld [vmem:[%s252 + $0xc0] sm:$0xff]
        %v320 = vld [vmem:[%s252 + $0xc8] sm:$0xff]
        %v321 = vld [vmem:[%s252 + $0xd0] sm:$0xff]
        %v322 = vld [vmem:[%s252 + $0xd8] sm:$0xff]
        %v323 = vld [vmem:[%s252 + $0xe0] sm:$0xff]
        %v324 = vld [vmem:[%s252 + $0xe8] sm:$0xff]
        %v325 = vld [vmem:[%s252 + $0xf0] sm:$0xff]
        %v326 = vld [vmem:[%s252 + $0xf8] sm:$0xff]
        %v327 = vld [vmem:[%s291] sm:$0xf]
        %v328 = vld [vmem:[%s291 + $0x4] sm:$0xf]
        %v329 = vld [vmem:[%s291 + $0x8] sm:$0xf]
        %v330 = vld [vmem:[%s291 + $0xc] sm:$0xf]
        %v331 = vld [vmem:[%s291 + $0x10] sm:$0xf]
        %v332 = vld [vmem:[%s291 + $0x14] sm:$0xf]
        %v333 = vld [vmem:[%s291 + $0x18] sm:$0xf]
        %v334 = vld [vmem:[%s291 + $0x1c] sm:$0xf]
        %v335 = vld [vmem:[%s291 + $0x20] sm:$0xf]
        %v336 = vld [vmem:[%s291 + $0x24] sm:$0xf]
        %v337 = vld [vmem:[%s291 + $0x28] sm:$0xf]
        %v338 = vld [vmem:[%s291 + $0x2c] sm:$0xf]
        %v339 = vld [vmem:[%s291 + $0x30] sm:$0xf]
        %v340 = vld [vmem:[%s291 + $0x34] sm:$0xf]
        %v341 = vld [vmem:[%s291 + $0x38] sm:$0xf]
        %v342 = vld [vmem:[%s291 + $0x3c] sm:$0xf]
        %v343 = vld [vmem:[%s291 + $0x40] sm:$0xf]
        %v344 = vld [vmem:[%s291 + $0x44] sm:$0xf]
        %v345 = vld [vmem:[%s291 + $0x48] sm:$0xf]
        %v346 = vld [vmem:[%s291 + $0x4c] sm:$0xf]
        %v347 = vld [vmem:[%s291 + $0x50] sm:$0xf]
        %v348 = vld [vmem:[%s291 + $0x54] sm:$0xf]
        %v349 = vld [vmem:[%s291 + $0x58] sm:$0xf]
        %v350 = vld [vmem:[%s291 + $0x5c] sm:$0xf]
        %v351 = vld [vmem:[%s291 + $0x60] sm:$0xf]
        %v352 = vld [vmem:[%s291 + $0x64] sm:$0xf]
        %v353 = vld [vmem:[%s291 + $0x68] sm:$0xf]
        %v354 = vld [vmem:[%s291 + $0x6c] sm:$0xf]
        %v355 = vld [vmem:[%s291 + $0x70] sm:$0xf]
        %v356 = vld [vmem:[%s291 + $0x74] sm:$0xf]
        %v357 = vld [vmem:[%s291 + $0x78] sm:$0xf]
        %v358 = vld [vmem:[%s291 + $0x7c] sm:$0xf]
        %v359 = vld [vmem:[%s2] sm:$0xf]
        %v360 = vld [vmem:[%s2 + $0x4] sm:$0xf]
        %v361 = vld [vmem:[%s2 + $0x8] sm:$0xf]
        %v362 = vld [vmem:[%s2 + $0xc] sm:$0xf]
        %v363 = vld [vmem:[%s2 + $0x10] sm:$0xf]
        %v364 = vld [vmem:[%s2 + $0x14] sm:$0xf]
        %v365 = vld [vmem:[%s2 + $0x18] sm:$0xf]
        %v366 = vld [vmem:[%s2 + $0x1c] sm:$0xf]
        %v367 = vld [vmem:[%s3] sm:$0x1]
        %v369 = vlaneseq
        %v370 = vshrl.u32 %v369, 7
        %v371 = vsub.s32 0, %v370
        %v372 = vrot.slane %v367, %v371
        %v406 = vunpack.c.l.b16 %v327
        %v407 = vunpack.c.l.b16 %v328
        %v408 = vunpack.c.l.b16 %v329
        %v409 = vunpack.c.l.b16 %v330
        %v410 = vunpack.c.l.b16 %v331
        %v411 = vunpack.c.l.b16 %v332
        %v412 = vunpack.c.l.b16 %v333
        %v413 = vunpack.c.l.b16 %v334
        %v414 = vunpack.c.l.b16 %v335
        %v415 = vunpack.c.l.b16 %v336
        %v416 = vunpack.c.l.b16 %v337
        %v417 = vunpack.c.l.b16 %v338
        %v418 = vunpack.c.l.b16 %v339
        %v419 = vunpack.c.l.b16 %v340
        %v420 = vunpack.c.l.b16 %v341
        %v421 = vunpack.c.l.b16 %v342
        %v422 = vunpack.c.l.b16 %v343
        %v423 = vunpack.c.l.b16 %v344
        %v424 = vunpack.c.l.b16 %v345
        %v425 = vunpack.c.l.b16 %v346
        %v426 = vunpack.c.l.b16 %v347
        %v427 = vunpack.c.l.b16 %v348
        %v428 = vunpack.c.l.b16 %v349
        %v429 = vunpack.c.l.b16 %v350
        %v430 = vunpack.c.l.b16 %v351
        %v431 = vunpack.c.l.b16 %v352
        %v432 = vunpack.c.l.b16 %v353
        %v433 = vunpack.c.l.b16 %v354
        %v434 = vunpack.c.l.b16 %v355
        %v435 = vunpack.c.l.b16 %v356
        %v436 = vunpack.c.l.b16 %v357
        %v437 = vunpack.c.l.b16 %v358
        %v438 = vpack.c.b16 %v407, %v406
        %v439 = vpack.c.b16 %v409, %v408
        %v440 = vpack.c.b16 %v411, %v410
        %v441 = vpack.c.b16 %v413, %v412
        %v442 = vpack.c.b16 %v415, %v414
        %v443 = vpack.c.b16 %v417, %v416
        %v444 = vpack.c.b16 %v419, %v418
        %v445 = vpack.c.b16 %v421, %v420
        %v446 = vpack.c.b16 %v423, %v422
        %v447 = vpack.c.b16 %v425, %v424
        %v448 = vpack.c.b16 %v427, %v426
        %v449 = vpack.c.b16 %v429, %v428
        %v450 = vpack.c.b16 %v431, %v430
        %v451 = vpack.c.b16 %v433, %v432
        %v452 = vpack.c.b16 %v435, %v434
        %v453 = vpack.c.b16 %v437, %v436
        %v462 = vunpack.c.l.b16 %v359
        %v463 = vunpack.c.l.b16 %v360
        %v464 = vunpack.c.l.b16 %v361
        %v465 = vunpack.c.l.b16 %v362
        %v466 = vunpack.c.l.b16 %v363
        %v467 = vunpack.c.l.b16 %v364
        %v468 = vunpack.c.l.b16 %v365
        %v469 = vunpack.c.l.b16 %v366
        %v470 = vpack.c.b16 %v463, %v462
        %v471 = vpack.c.b16 %v465, %v464
        %v472 = vpack.c.b16 %v467, %v466
        %v473 = vpack.c.b16 %v469, %v468
        %vm478 = vcmask 523264
        %v480 = vsel %vm478, %v438, 0
        %v483 = vsel %vm478, %v439, 0
        %v486 = vsel %vm478, %v440, 0
        %v489 = vsel %vm478, %v441, 0
        %v492 = vsel %vm478, %v442, 0
        %v495 = vsel %vm478, %v443, 0
        %v498 = vsel %vm478, %v444, 0
        %v501 = vsel %vm478, %v445, 0
        %v504 = vsel %vm478, %v446, 0
        %v507 = vsel %vm478, %v447, 0
        %v510 = vsel %vm478, %v448, 0
        %v513 = vsel %vm478, %v449, 0
        %v516 = vsel %vm478, %v450, 0
        %v519 = vsel %vm478, %v451, 0
        %v522 = vsel %vm478, %v452, 0
        %v525 = vsel %vm478, %v453, 0
        %527 = vmatprep.subr.bf16.mxu0 0
        %528 = vmatpush1.bf16.msra.mxu0 %v470
        %529 = vmatprep.subr.bf16.mxu0 0
        %530 = vmatpush1.bf16.msra.mxu0 %v471
        %531 = vmatprep.subr.bf16.mxu0 0
        %532 = vmatpush1.bf16.msra.mxu0 %v472
        %533 = vmatprep.subr.bf16.mxu0 0
        %534 = vmatpush1.bf16.msra.mxu0 %v473
        %535 = vmatprep.subr.bf16.mxu0 0
        %536 = vmatpush1.bf16.msra.mxu0 0
        %537 = vmatprep.subr.bf16.mxu0 0
        %538 = vmatpush1.bf16.msra.mxu0 0
        %539 = vmatprep.subr.bf16.mxu0 0
        %540 = vmatpush1.bf16.msra.mxu0 0
        %541 = vmatprep.subr.bf16.mxu0 0
        %542 = vmatpush1.bf16.msra.mxu0 0
        %543 = vmatprep.subr.bf16.mxu0 0
        %544 = vmatpush1.bf16.msra.mxu0 0
        %545 = vmatprep.subr.bf16.mxu0 0
        %546 = vmatpush1.bf16.msra.mxu0 0
        %547 = vmatprep.subr.bf16.mxu0 0
        %548 = vmatpush1.bf16.msra.mxu0 0
        %549 = vmatprep.subr.bf16.mxu0 0
        %550 = vmatpush1.bf16.msra.mxu0 0
        %551 = vmatprep.subr.bf16.mxu0 0
        %552 = vmatpush1.bf16.msra.mxu0 0
        %553 = vmatprep.subr.bf16.mxu0 0
        %554 = vmatpush1.bf16.msra.mxu0 0
        %555 = vmatprep.subr.bf16.mxu0 0
        %556 = vmatpush1.bf16.msra.mxu0 0
        %557 = vmatprep.subr.bf16.mxu0 0
        %558 = vmatpush1.bf16.msra.mxu0 0
        %559 = vmatprep.mubr.bf16.mxu0 0
        %560 = vmatmul.mubr.bf16.gmra.mrb[0].mxu0 %v480
        %v561 = vpop.f32.mrb[0].mxu0
        %v562 = vadd.f32 %v372, %v561
        %v563 = vpop.f32.mrb[0].mxu0
        %v564 = vpop.f32.mrb[0].mxu0
        %v565 = vadd.f32 %v372, %v564
        %v566 = vpop.f32.mrb[0].mxu0
        %567 = vmatprep.mubr.bf16.mxu0 0
        %568 = vmatmul.mubr.bf16.gmra.mrb[0].mxu0 %v483
        %v569 = vpop.f32.mrb[0].mxu0
        %v570 = vadd.f32 %v372, %v569
        %v571 = vpop.f32.mrb[0].mxu0
        %v572 = vpop.f32.mrb[0].mxu0
        %v573 = vadd.f32 %v372, %v572
        %v574 = vpop.f32.mrb[0].mxu0
        %575 = vmatprep.mubr.bf16.mxu0 0
        %576 = vmatmul.mubr.bf16.gmra.mrb[0].mxu0 %v486
        %v577 = vpop.f32.mrb[0].mxu0
        %v578 = vadd.f32 %v372, %v577
        %v579 = vpop.f32.mrb[0].mxu0
        %v580 = vpop.f32.mrb[0].mxu0
        %v581 = vadd.f32 %v372, %v580
        %v582 = vpop.f32.mrb[0].mxu0
        %583 = vmatprep.mubr.bf16.mxu0 0
        %584 = vmatmul.mubr.bf16.gmra.mrb[0].mxu0 %v489
        %v585 = vpop.f32.mrb[0].mxu0
        %v586 = vadd.f32 %v372, %v585
        %v587 = vpop.f32.mrb[0].mxu0
        %v588 = vpop.f32.mrb[0].mxu0
        %v589 = vadd.f32 %v372, %v588
        %v590 = vpop.f32.mrb[0].mxu0
        %591 = vmatprep.mubr.bf16.mxu0 0
        %592 = vmatmul.mubr.bf16.gmra.mrb[0].mxu0 %v492
        %v593 = vpop.f32.mrb[0].mxu0
        %v594 = vadd.f32 %v372, %v593
        %v595 = vpop.f32.mrb[0].mxu0
        %v596 = vpop.f32.mrb[0].mxu0
        %v597 = vadd.f32 %v372, %v596
        %v598 = vpop.f32.mrb[0].mxu0
        %599 = vmatprep.mubr.bf16.mxu0 0
        %600 = vmatmul.mubr.bf16.gmra.mrb[0].mxu0 %v495
        %v601 = vpop.f32.mrb[0].mxu0
        %v602 = vadd.f32 %v372, %v601
        %v603 = vpop.f32.mrb[0].mxu0
        %v604 = vpop.f32.mrb[0].mxu0
        %v605 = vadd.f32 %v372, %v604
        %v606 = vpop.f32.mrb[0].mxu0
        %607 = vmatprep.mubr.bf16.mxu0 0
        %608 = vmatmul.mubr.bf16.gmra.mrb[0].mxu0 %v498
        %v609 = vpop.f32.mrb[0].mxu0
        %v610 = vadd.f32 %v372, %v609
        %v611 = vpop.f32.mrb[0].mxu0
        %v612 = vpop.f32.mrb[0].mxu0
        %v613 = vadd.f32 %v372, %v612
        %v614 = vpop.f32.mrb[0].mxu0
        %615 = vmatprep.mubr.bf16.mxu0 0
        %616 = vmatmul.mubr.bf16.gmra.mrb[0].mxu0 %v501
        %v617 = vpop.f32.mrb[0].mxu0
        %v618 = vadd.f32 %v372, %v617
        %v619 = vpop.f32.mrb[0].mxu0
        %v620 = vpop.f32.mrb[0].mxu0
        %v621 = vadd.f32 %v372, %v620
        %v622 = vpop.f32.mrb[0].mxu0
        %623 = vmatprep.mubr.bf16.mxu0 0
        %624 = vmatmul.mubr.bf16.gmra.mrb[0].mxu0 %v504
        %v625 = vpop.f32.mrb[0].mxu0
        %v626 = vadd.f32 %v372, %v625
        %v627 = vpop.f32.mrb[0].mxu0
        %v628 = vpop.f32.mrb[0].mxu0
        %v629 = vadd.f32 %v372, %v628
        %v630 = vpop.f32.mrb[0].mxu0
        %631 = vmatprep.mubr.bf16.mxu0 0
        %632 = vmatmul.mubr.bf16.gmra.mrb[0].mxu0 %v507
        %v633 = vpop.f32.mrb[0].mxu0
        %v634 = vadd.f32 %v372, %v633
        %v635 = vpop.f32.mrb[0].mxu0
        %v636 = vpop.f32.mrb[0].mxu0
        %v637 = vadd.f32 %v372, %v636
        %v638 = vpop.f32.mrb[0].mxu0
        %639 = vmatprep.mubr.bf16.mxu0 0
        %640 = vmatmul.mubr.bf16.gmra.mrb[0].mxu0 %v510
        %v641 = vpop.f32.mrb[0].mxu0
        %v642 = vadd.f32 %v372, %v641
        %v643 = vpop.f32.mrb[0].mxu0
        %v644 = vpop.f32.mrb[0].mxu0
        %v645 = vadd.f32 %v372, %v644
        %v646 = vpop.f32.mrb[0].mxu0
        %647 = vmatprep.mubr.bf16.mxu0 0
        %648 = vmatmul.mubr.bf16.gmra.mrb[0].mxu0 %v513
        %v649 = vpop.f32.mrb[0].mxu0
        %v650 = vadd.f32 %v372, %v649
        %v651 = vpop.f32.mrb[0].mxu0
        %v652 = vpop.f32.mrb[0].mxu0
        %v653 = vadd.f32 %v372, %v652
        %v654 = vpop.f32.mrb[0].mxu0
        %655 = vmatprep.mubr.bf16.mxu0 0
        %656 = vmatmul.mubr.bf16.gmra.mrb[0].mxu0 %v516
        %v657 = vpop.f32.mrb[0].mxu0
        %v658 = vadd.f32 %v372, %v657
        %v659 = vpop.f32.mrb[0].mxu0
        %v660 = vpop.f32.mrb[0].mxu0
        %v661 = vadd.f32 %v372, %v660
        %v662 = vpop.f32.mrb[0].mxu0
        %663 = vmatprep.mubr.bf16.mxu0 0
        %664 = vmatmul.mubr.bf16.gmra.mrb[0].mxu0 %v519
        %v665 = vpop.f32.mrb[0].mxu0
        %v666 = vadd.f32 %v372, %v665
        %v667 = vpop.f32.mrb[0].mxu0
        %v668 = vpop.f32.mrb[0].mxu0
        %v669 = vadd.f32 %v372, %v668
        %v670 = vpop.f32.mrb[0].mxu0
        %671 = vmatprep.mubr.bf16.mxu0 0
        %672 = vmatmul.mubr.bf16.gmra.mrb[0].mxu0 %v522
        %v673 = vpop.f32.mrb[0].mxu0
        %v674 = vadd.f32 %v372, %v673
        %v675 = vpop.f32.mrb[0].mxu0
        %v676 = vpop.f32.mrb[0].mxu0
        %v677 = vadd.f32 %v372, %v676
        %v678 = vpop.f32.mrb[0].mxu0
        %679 = vmatprep.mubr.bf16.mxu0 0
        %680 = vmatmul.mubr.bf16.gmra.mrb[0].mxu0 %v525
        %v681 = vpop.f32.mrb[0].mxu0
        %v682 = vadd.f32 %v372, %v681
        %v683 = vpop.f32.mrb[0].mxu0
        %v684 = vpop.f32.mrb[0].mxu0
        %v685 = vadd.f32 %v372, %v684
        %v686 = vpop.f32.mrb[0].mxu0
        %687 = vdwg.mxu0
        %688 = vadd.xlane.f32.xlu0 %v295
        %v689 = vpop.xlane.xlu0 %688
        %690 = vadd.xlane.f32.xlu0 %v296
        %v691 = vpop.xlane.xlu0 %690
        %692 = vadd.xlane.f32.xlu0 %v297
        %v693 = vpop.xlane.xlu0 %692
        %694 = vadd.xlane.f32.xlu0 %v298
        %v695 = vpop.xlane.xlu0 %694
        %696 = vadd.xlane.f32.xlu0 %v299
        %v697 = vpop.xlane.xlu0 %696
        %698 = vadd.xlane.f32.xlu0 %v300
        %v699 = vpop.xlane.xlu0 %698
        %700 = vadd.xlane.f32.xlu0 %v301
        %v701 = vpop.xlane.xlu0 %700
        %702 = vadd.xlane.f32.xlu0 %v302
        %v703 = vpop.xlane.xlu0 %702
        %704 = vadd.xlane.f32.xlu0 %v303
        %v705 = vpop.xlane.xlu0 %704
        %706 = vadd.xlane.f32.xlu0 %v304
        %v707 = vpop.xlane.xlu0 %706
        %708 = vadd.xlane.f32.xlu0 %v305
        %v709 = vpop.xlane.xlu0 %708
        %710 = vadd.xlane.f32.xlu0 %v306
        %v711 = vpop.xlane.xlu0 %710
        %712 = vadd.xlane.f32.xlu0 %v307
        %v713 = vpop.xlane.xlu0 %712
        %714 = vadd.xlane.f32.xlu0 %v308
        %v715 = vpop.xlane.xlu0 %714
        %716 = vadd.xlane.f32.xlu0 %v309
        %v717 = vpop.xlane.xlu0 %716
        %718 = vadd.xlane.f32.xlu0 %v310
        %v719 = vpop.xlane.xlu0 %718
        %720 = vadd.xlane.f32.xlu0 %v311
        %v721 = vpop.xlane.xlu0 %720
        %722 = vadd.xlane.f32.xlu0 %v312
        %v723 = vpop.xlane.xlu0 %722
        %724 = vadd.xlane.f32.xlu0 %v313
        %v725 = vpop.xlane.xlu0 %724
        %726 = vadd.xlane.f32.xlu0 %v314
        %v727 = vpop.xlane.xlu0 %726
        %728 = vadd.xlane.f32.xlu0 %v315
        %v729 = vpop.xlane.xlu0 %728
        %730 = vadd.xlane.f32.xlu0 %v316
        %v731 = vpop.xlane.xlu0 %730
        %732 = vadd.xlane.f32.xlu0 %v317
        %v733 = vpop.xlane.xlu0 %732
        %734 = vadd.xlane.f32.xlu0 %v318
        %v735 = vpop.xlane.xlu0 %734
        %736 = vadd.xlane.f32.xlu0 %v319
        %v737 = vpop.xlane.xlu0 %736
        %738 = vadd.xlane.f32.xlu0 %v320
        %v739 = vpop.xlane.xlu0 %738
        %740 = vadd.xlane.f32.xlu0 %v321
        %v741 = vpop.xlane.xlu0 %740
        %742 = vadd.xlane.f32.xlu0 %v322
        %v743 = vpop.xlane.xlu0 %742
        %744 = vadd.xlane.f32.xlu0 %v323
        %v745 = vpop.xlane.xlu0 %744
        %746 = vadd.xlane.f32.xlu0 %v324
        %v747 = vpop.xlane.xlu0 %746
        %748 = vadd.xlane.f32.xlu0 %v325
        %v749 = vpop.xlane.xlu0 %748
        %750 = vadd.xlane.f32.xlu0 %v326
        %v751 = vpop.xlane.xlu0 %750
        %v752 = vrcp.pop 128.0
        %v753 = vmul.f32 %v689, %v752
        %v754 = vmul.f32 %v691, %v752
        %v755 = vmul.f32 %v693, %v752
        %v756 = vmul.f32 %v695, %v752
        %v757 = vmul.f32 %v697, %v752
        %v758 = vmul.f32 %v699, %v752
        %v759 = vmul.f32 %v701, %v752
        %v760 = vmul.f32 %v703, %v752
        %v761 = vmul.f32 %v705, %v752
        %v762 = vmul.f32 %v707, %v752
        %v763 = vmul.f32 %v709, %v752
        %v764 = vmul.f32 %v711, %v752
        %v765 = vmul.f32 %v713, %v752
        %v766 = vmul.f32 %v715, %v752
        %v767 = vmul.f32 %v717, %v752
        %v768 = vmul.f32 %v719, %v752
        %v769 = vmul.f32 %v721, %v752
        %v770 = vmul.f32 %v723, %v752
        %v771 = vmul.f32 %v725, %v752
        %v772 = vmul.f32 %v727, %v752
        %v773 = vmul.f32 %v729, %v752
        %v774 = vmul.f32 %v731, %v752
        %v775 = vmul.f32 %v733, %v752
        %v776 = vmul.f32 %v735, %v752
        %v777 = vmul.f32 %v737, %v752
        %v778 = vmul.f32 %v739, %v752
        %v779 = vmul.f32 %v741, %v752
        %v780 = vmul.f32 %v743, %v752
        %v781 = vmul.f32 %v745, %v752
        %v782 = vmul.f32 %v747, %v752
        %v783 = vmul.f32 %v749, %v752
        %v784 = vmul.f32 %v751, %v752
        %v785 = vsub.f32 %v295, %v753
        %v786 = vsub.f32 %v296, %v754
        %v787 = vsub.f32 %v297, %v755
        %v788 = vsub.f32 %v298, %v756
        %v789 = vsub.f32 %v299, %v757
        %v790 = vsub.f32 %v300, %v758
        %v791 = vsub.f32 %v301, %v759
        %v792 = vsub.f32 %v302, %v760
        %v793 = vsub.f32 %v303, %v761
        %v794 = vsub.f32 %v304, %v762
        %v795 = vsub.f32 %v305, %v763
        %v796 = vsub.f32 %v306, %v764
        %v797 = vsub.f32 %v307, %v765
        %v798 = vsub.f32 %v308, %v766
        %v799 = vsub.f32 %v309, %v767
        %v800 = vsub.f32 %v310, %v768
        %v801 = vsub.f32 %v311, %v769
        %v802 = vsub.f32 %v312, %v770
        %v803 = vsub.f32 %v313, %v771
        %v804 = vsub.f32 %v314, %v772
        %v805 = vsub.f32 %v315, %v773
        %v806 = vsub.f32 %v316, %v774
        %v807 = vsub.f32 %v317, %v775
        %v808 = vsub.f32 %v318, %v776
        %v809 = vsub.f32 %v319, %v777
        %v810 = vsub.f32 %v320, %v778
        %v811 = vsub.f32 %v321, %v779
        %v812 = vsub.f32 %v322, %v780
        %v813 = vsub.f32 %v323, %v781
        %v814 = vsub.f32 %v324, %v782
        %v815 = vsub.f32 %v325, %v783
        %v816 = vsub.f32 %v326, %v784
        %v817 = vmul.f32 %v785, %v785
        %v818 = vmul.f32 %v786, %v786
        %v819 = vmul.f32 %v787, %v787
        %v820 = vmul.f32 %v788, %v788
        %v821 = vmul.f32 %v789, %v789
        %v822 = vmul.f32 %v790, %v790
        %v823 = vmul.f32 %v791, %v791
        %v824 = vmul.f32 %v792, %v792
        %v825 = vmul.f32 %v793, %v793
        %v826 = vmul.f32 %v794, %v794
        %v827 = vmul.f32 %v795, %v795
        %v828 = vmul.f32 %v796, %v796
        %v829 = vmul.f32 %v797, %v797
        %v830 = vmul.f32 %v798, %v798
        %v831 = vmul.f32 %v799, %v799
        %v832 = vmul.f32 %v800, %v800
        %v833 = vmul.f32 %v801, %v801
        %v834 = vmul.f32 %v802, %v802
        %v835 = vmul.f32 %v803, %v803
        %v836 = vmul.f32 %v804, %v804
        %v837 = vmul.f32 %v805, %v805
        %v838 = vmul.f32 %v806, %v806
        %v839 = vmul.f32 %v807, %v807
        %v840 = vmul.f32 %v808, %v808
        %v841 = vmul.f32 %v809, %v809
        %v842 = vmul.f32 %v810, %v810
        %v843 = vmul.f32 %v811, %v811
        %v844 = vmul.f32 %v812, %v812
        %v845 = vmul.f32 %v813, %v813
        %v846 = vmul.f32 %v814, %v814
        %v847 = vmul.f32 %v815, %v815
        %v848 = vmul.f32 %v816, %v816
        %849 = vadd.xlane.f32.xlu0 %v817
        %v850 = vpop.xlane.xlu0 %849
        %851 = vadd.xlane.f32.xlu0 %v818
        %v852 = vpop.xlane.xlu0 %851
        %853 = vadd.xlane.f32.xlu0 %v819
        %v854 = vpop.xlane.xlu0 %853
        %855 = vadd.xlane.f32.xlu0 %v820
        %v856 = vpop.xlane.xlu0 %855
        %857 = vadd.xlane.f32.xlu0 %v821
        %v858 = vpop.xlane.xlu0 %857
        %859 = vadd.xlane.f32.xlu0 %v822
        %v860 = vpop.xlane.xlu0 %859
        %861 = vadd.xlane.f32.xlu0 %v823
        %v862 = vpop.xlane.xlu0 %861
        %863 = vadd.xlane.f32.xlu0 %v824
        %v864 = vpop.xlane.xlu0 %863
        %865 = vadd.xlane.f32.xlu0 %v825
        %v866 = vpop.xlane.xlu0 %865
        %867 = vadd.xlane.f32.xlu0 %v826
        %v868 = vpop.xlane.xlu0 %867
        %869 = vadd.xlane.f32.xlu0 %v827
        %v870 = vpop.xlane.xlu0 %869
        %871 = vadd.xlane.f32.xlu0 %v828
        %v872 = vpop.xlane.xlu0 %871
        %873 = vadd.xlane.f32.xlu0 %v829
        %v874 = vpop.xlane.xlu0 %873
        %875 = vadd.xlane.f32.xlu0 %v830
        %v876 = vpop.xlane.xlu0 %875
        %877 = vadd.xlane.f32.xlu0 %v831
        %v878 = vpop.xlane.xlu0 %877
        %879 = vadd.xlane.f32.xlu0 %v832
        %v880 = vpop.xlane.xlu0 %879
        %881 = vadd.xlane.f32.xlu0 %v833
        %v882 = vpop.xlane.xlu0 %881
        %883 = vadd.xlane.f32.xlu0 %v834
        %v884 = vpop.xlane.xlu0 %883
        %885 = vadd.xlane.f32.xlu0 %v835
        %v886 = vpop.xlane.xlu0 %885
        %887 = vadd.xlane.f32.xlu0 %v836
        %v888 = vpop.xlane.xlu0 %887
        %889 = vadd.xlane.f32.xlu0 %v837
        %v890 = vpop.xlane.xlu0 %889
        %891 = vadd.xlane.f32.xlu0 %v838
        %v892 = vpop.xlane.xlu0 %891
        %893 = vadd.xlane.f32.xlu0 %v839
        %v894 = vpop.xlane.xlu0 %893
        %895 = vadd.xlane.f32.xlu0 %v840
        %v896 = vpop.xlane.xlu0 %895
        %897 = vadd.xlane.f32.xlu0 %v841
        %v898 = vpop.xlane.xlu0 %897
        %899 = vadd.xlane.f32.xlu0 %v842
        %v900 = vpop.xlane.xlu0 %899
        %901 = vadd.xlane.f32.xlu0 %v843
        %v902 = vpop.xlane.xlu0 %901
        %903 = vadd.xlane.f32.xlu0 %v844
        %v904 = vpop.xlane.xlu0 %903
        %905 = vadd.xlane.f32.xlu0 %v845
        %v906 = vpop.xlane.xlu0 %905
        %907 = vadd.xlane.f32.xlu0 %v846
        %v908 = vpop.xlane.xlu0 %907
        %909 = vadd.xlane.f32.xlu0 %v847
        %v910 = vpop.xlane.xlu0 %909
        %911 = vadd.xlane.f32.xlu0 %v848
        %v912 = vpop.xlane.xlu0 %911
        %v913 = vrcp.pop 127.0
        %v914 = vmul.f32 %v850, %v913
        %v915 = vmul.f32 %v852, %v913
        %v916 = vmul.f32 %v854, %v913
        %v917 = vmul.f32 %v856, %v913
        %v918 = vmul.f32 %v858, %v913
        %v919 = vmul.f32 %v860, %v913
        %v920 = vmul.f32 %v862, %v913
        %v921 = vmul.f32 %v864, %v913
        %v922 = vmul.f32 %v866, %v913
        %v923 = vmul.f32 %v868, %v913
        %v924 = vmul.f32 %v870, %v913
        %v925 = vmul.f32 %v872, %v913
        %v926 = vmul.f32 %v874, %v913
        %v927 = vmul.f32 %v876, %v913
        %v928 = vmul.f32 %v878, %v913
        %v929 = vmul.f32 %v880, %v913
        %v930 = vmul.f32 %v882, %v913
        %v931 = vmul.f32 %v884, %v913
        %v932 = vmul.f32 %v886, %v913
        %v933 = vmul.f32 %v888, %v913
        %v934 = vmul.f32 %v890, %v913
        %v935 = vmul.f32 %v892, %v913
        %v936 = vmul.f32 %v894, %v913
        %v937 = vmul.f32 %v896, %v913
        %v938 = vmul.f32 %v898, %v913
        %v939 = vmul.f32 %v900, %v913
        %v940 = vmul.f32 %v902, %v913
        %v941 = vmul.f32 %v904, %v913
        %v942 = vmul.f32 %v906, %v913
        %v943 = vmul.f32 %v908, %v913
        %v944 = vmul.f32 %v910, %v913
        %v945 = vmul.f32 %v912, %v913
        %v946 = vrsqrt.pop %v914
        %v947 = vmul.f32 %v914, %v946
        %vm948 = vcmp.eq.f32.partialorder %v914, inf
        %v949 = vsel %vm948, %v914, %v947
        %vm950 = vcmp.eq.f32.partialorder %v914, 0.0
        %v951 = vand.u32 %v914, 2147483648
        %v952 = vsel %vm950, %v951, %v949
        %v953 = vrsqrt.pop %v915
        %v954 = vmul.f32 %v915, %v953
        %vm955 = vcmp.eq.f32.partialorder %v915, inf
        %v956 = vsel %vm955, %v915, %v954
        %vm957 = vcmp.eq.f32.partialorder %v915, 0.0
        %v958 = vand.u32 %v915, 2147483648
        %v959 = vsel %vm957, %v958, %v956
        %v960 = vrsqrt.pop %v916
        %v961 = vmul.f32 %v916, %v960
        %vm962 = vcmp.eq.f32.partialorder %v916, inf
        %v963 = vsel %vm962, %v916, %v961
        %vm964 = vcmp.eq.f32.partialorder %v916, 0.0
        %v965 = vand.u32 %v916, 2147483648
        %v966 = vsel %vm964, %v965, %v963
        %v967 = vrsqrt.pop %v917
        %v968 = vmul.f32 %v917, %v967
        %vm969 = vcmp.eq.f32.partialorder %v917, inf
        %v970 = vsel %vm969, %v917, %v968
        %vm971 = vcmp.eq.f32.partialorder %v917, 0.0
        %v972 = vand.u32 %v917, 2147483648
        %v973 = vsel %vm971, %v972, %v970
        %v974 = vrsqrt.pop %v918
        %v975 = vmul.f32 %v918, %v974
        %vm976 = vcmp.eq.f32.partialorder %v918, inf
        %v977 = vsel %vm976, %v918, %v975
        %vm978 = vcmp.eq.f32.partialorder %v918, 0.0
        %v979 = vand.u32 %v918, 2147483648
        %v980 = vsel %vm978, %v979, %v977
        %v981 = vrsqrt.pop %v919
        %v982 = vmul.f32 %v919, %v981
        %vm983 = vcmp.eq.f32.partialorder %v919, inf
        %v984 = vsel %vm983, %v919, %v982
        %vm985 = vcmp.eq.f32.partialorder %v919, 0.0
        %v986 = vand.u32 %v919, 2147483648
        %v987 = vsel %vm985, %v986, %v984
        %v988 = vrsqrt.pop %v920
        %v989 = vmul.f32 %v920, %v988
        %vm990 = vcmp.eq.f32.partialorder %v920, inf
        %v991 = vsel %vm990, %v920, %v989
        %vm992 = vcmp.eq.f32.partialorder %v920, 0.0
        %v993 = vand.u32 %v920, 2147483648
        %v994 = vsel %vm992, %v993, %v991
        %v995 = vrsqrt.pop %v921
        %v996 = vmul.f32 %v921, %v995
        %vm997 = vcmp.eq.f32.partialorder %v921, inf
        %v998 = vsel %vm997, %v921, %v996
        %vm999 = vcmp.eq.f32.partialorder %v921, 0.0
        %v1000 = vand.u32 %v921, 2147483648
        %v1001 = vsel %vm999, %v1000, %v998
        %v1002 = vrsqrt.pop %v922
        %v1003 = vmul.f32 %v922, %v1002
        %vm1004 = vcmp.eq.f32.partialorder %v922, inf
        %v1005 = vsel %vm1004, %v922, %v1003
        %vm1006 = vcmp.eq.f32.partialorder %v922, 0.0
        %v1007 = vand.u32 %v922, 2147483648
        %v1008 = vsel %vm1006, %v1007, %v1005
        %v1009 = vrsqrt.pop %v923
        %v1010 = vmul.f32 %v923, %v1009
        %vm1011 = vcmp.eq.f32.partialorder %v923, inf
        %v1012 = vsel %vm1011, %v923, %v1010
        %vm1013 = vcmp.eq.f32.partialorder %v923, 0.0
        %v1014 = vand.u32 %v923, 2147483648
        %v1015 = vsel %vm1013, %v1014, %v1012
        %v1016 = vrsqrt.pop %v924
        %v1017 = vmul.f32 %v924, %v1016
        %vm1018 = vcmp.eq.f32.partialorder %v924, inf
        %v1019 = vsel %vm1018, %v924, %v1017
        %vm1020 = vcmp.eq.f32.partialorder %v924, 0.0
        %v1021 = vand.u32 %v924, 2147483648
        %v1022 = vsel %vm1020, %v1021, %v1019
        %v1023 = vrsqrt.pop %v925
        %v1024 = vmul.f32 %v925, %v1023
        %vm1025 = vcmp.eq.f32.partialorder %v925, inf
        %v1026 = vsel %vm1025, %v925, %v1024
        %vm1027 = vcmp.eq.f32.partialorder %v925, 0.0
        %v1028 = vand.u32 %v925, 2147483648
        %v1029 = vsel %vm1027, %v1028, %v1026
        %v1030 = vrsqrt.pop %v926
        %v1031 = vmul.f32 %v926, %v1030
        %vm1032 = vcmp.eq.f32.partialorder %v926, inf
        %v1033 = vsel %vm1032, %v926, %v1031
        %vm1034 = vcmp.eq.f32.partialorder %v926, 0.0
        %v1035 = vand.u32 %v926, 2147483648
        %v1036 = vsel %vm1034, %v1035, %v1033
        %v1037 = vrsqrt.pop %v927
        %v1038 = vmul.f32 %v927, %v1037
        %vm1039 = vcmp.eq.f32.partialorder %v927, inf
        %v1040 = vsel %vm1039, %v927, %v1038
        %vm1041 = vcmp.eq.f32.partialorder %v927, 0.0
        %v1042 = vand.u32 %v927, 2147483648
        %v1043 = vsel %vm1041, %v1042, %v1040
        %v1044 = vrsqrt.pop %v928
        %v1045 = vmul.f32 %v928, %v1044
        %vm1046 = vcmp.eq.f32.partialorder %v928, inf
        %v1047 = vsel %vm1046, %v928, %v1045
        %vm1048 = vcmp.eq.f32.partialorder %v928, 0.0
        %v1049 = vand.u32 %v928, 2147483648
        %v1050 = vsel %vm1048, %v1049, %v1047
        %v1051 = vrsqrt.pop %v929
        %v1052 = vmul.f32 %v929, %v1051
        %vm1053 = vcmp.eq.f32.partialorder %v929, inf
        %v1054 = vsel %vm1053, %v929, %v1052
        %vm1055 = vcmp.eq.f32.partialorder %v929, 0.0
        %v1056 = vand.u32 %v929, 2147483648
        %v1057 = vsel %vm1055, %v1056, %v1054
        %v1058 = vrsqrt.pop %v930
        %v1059 = vmul.f32 %v930, %v1058
        %vm1060 = vcmp.eq.f32.partialorder %v930, inf
        %v1061 = vsel %vm1060, %v930, %v1059
        %vm1062 = vcmp.eq.f32.partialorder %v930, 0.0
        %v1063 = vand.u32 %v930, 2147483648
        %v1064 = vsel %vm1062, %v1063, %v1061
        %v1065 = vrsqrt.pop %v931
        %v1066 = vmul.f32 %v931, %v1065
        %vm1067 = vcmp.eq.f32.partialorder %v931, inf
        %v1068 = vsel %vm1067, %v931, %v1066
        %vm1069 = vcmp.eq.f32.partialorder %v931, 0.0
        %v1070 = vand.u32 %v931, 2147483648
        %v1071 = vsel %vm1069, %v1070, %v1068
        %v1072 = vrsqrt.pop %v932
        %v1073 = vmul.f32 %v932, %v1072
        %vm1074 = vcmp.eq.f32.partialorder %v932, inf
        %v1075 = vsel %vm1074, %v932, %v1073
        %vm1076 = vcmp.eq.f32.partialorder %v932, 0.0
        %v1077 = vand.u32 %v932, 2147483648
        %v1078 = vsel %vm1076, %v1077, %v1075
        %v1079 = vrsqrt.pop %v933
        %v1080 = vmul.f32 %v933, %v1079
        %vm1081 = vcmp.eq.f32.partialorder %v933, inf
        %v1082 = vsel %vm1081, %v933, %v1080
        %vm1083 = vcmp.eq.f32.partialorder %v933, 0.0
        %v1084 = vand.u32 %v933, 2147483648
        %v1085 = vsel %vm1083, %v1084, %v1082
        %v1086 = vrsqrt.pop %v934
        %v1087 = vmul.f32 %v934, %v1086
        %vm1088 = vcmp.eq.f32.partialorder %v934, inf
        %v1089 = vsel %vm1088, %v934, %v1087
        %vm1090 = vcmp.eq.f32.partialorder %v934, 0.0
        %v1091 = vand.u32 %v934, 2147483648
        %v1092 = vsel %vm1090, %v1091, %v1089
        %v1093 = vrsqrt.pop %v935
        %v1094 = vmul.f32 %v935, %v1093
        %vm1095 = vcmp.eq.f32.partialorder %v935, inf
        %v1096 = vsel %vm1095, %v935, %v1094
        %vm1097 = vcmp.eq.f32.partialorder %v935, 0.0
        %v1098 = vand.u32 %v935, 2147483648
        %v1099 = vsel %vm1097, %v1098, %v1096
        %v1100 = vrsqrt.pop %v936
        %v1101 = vmul.f32 %v936, %v1100
        %vm1102 = vcmp.eq.f32.partialorder %v936, inf
        %v1103 = vsel %vm1102, %v936, %v1101
        %vm1104 = vcmp.eq.f32.partialorder %v936, 0.0
        %v1105 = vand.u32 %v936, 2147483648
        %v1106 = vsel %vm1104, %v1105, %v1103
        %v1107 = vrsqrt.pop %v937
        %v1108 = vmul.f32 %v937, %v1107
        %vm1109 = vcmp.eq.f32.partialorder %v937, inf
        %v1110 = vsel %vm1109, %v937, %v1108
        %vm1111 = vcmp.eq.f32.partialorder %v937, 0.0
        %v1112 = vand.u32 %v937, 2147483648
        %v1113 = vsel %vm1111, %v1112, %v1110
        %v1114 = vrsqrt.pop %v938
        %v1115 = vmul.f32 %v938, %v1114
        %vm1116 = vcmp.eq.f32.partialorder %v938, inf
        %v1117 = vsel %vm1116, %v938, %v1115
        %vm1118 = vcmp.eq.f32.partialorder %v938, 0.0
        %v1119 = vand.u32 %v938, 2147483648
        %v1120 = vsel %vm1118, %v1119, %v1117
        %v1121 = vrsqrt.pop %v939
        %v1122 = vmul.f32 %v939, %v1121
        %vm1123 = vcmp.eq.f32.partialorder %v939, inf
        %v1124 = vsel %vm1123, %v939, %v1122
        %vm1125 = vcmp.eq.f32.partialorder %v939, 0.0
        %v1126 = vand.u32 %v939, 2147483648
        %v1127 = vsel %vm1125, %v1126, %v1124
        %v1128 = vrsqrt.pop %v940
        %v1129 = vmul.f32 %v940, %v1128
        %vm1130 = vcmp.eq.f32.partialorder %v940, inf
        %v1131 = vsel %vm1130, %v940, %v1129
        %vm1132 = vcmp.eq.f32.partialorder %v940, 0.0
        %v1133 = vand.u32 %v940, 2147483648
        %v1134 = vsel %vm1132, %v1133, %v1131
        %v1135 = vrsqrt.pop %v941
        %v1136 = vmul.f32 %v941, %v1135
        %vm1137 = vcmp.eq.f32.partialorder %v941, inf
        %v1138 = vsel %vm1137, %v941, %v1136
        %vm1139 = vcmp.eq.f32.partialorder %v941, 0.0
        %v1140 = vand.u32 %v941, 2147483648
        %v1141 = vsel %vm1139, %v1140, %v1138
        %v1142 = vrsqrt.pop %v942
        %v1143 = vmul.f32 %v942, %v1142
        %vm1144 = vcmp.eq.f32.partialorder %v942, inf
        %v1145 = vsel %vm1144, %v942, %v1143
        %vm1146 = vcmp.eq.f32.partialorder %v942, 0.0
        %v1147 = vand.u32 %v942, 2147483648
        %v1148 = vsel %vm1146, %v1147, %v1145
        %v1149 = vrsqrt.pop %v943
        %v1150 = vmul.f32 %v943, %v1149
        %vm1151 = vcmp.eq.f32.partialorder %v943, inf
        %v1152 = vsel %vm1151, %v943, %v1150
        %vm1153 = vcmp.eq.f32.partialorder %v943, 0.0
        %v1154 = vand.u32 %v943, 2147483648
        %v1155 = vsel %vm1153, %v1154, %v1152
        %v1156 = vrsqrt.pop %v944
        %v1157 = vmul.f32 %v944, %v1156
        %vm1158 = vcmp.eq.f32.partialorder %v944, inf
        %v1159 = vsel %vm1158, %v944, %v1157
        %vm1160 = vcmp.eq.f32.partialorder %v944, 0.0
        %v1161 = vand.u32 %v944, 2147483648
        %v1162 = vsel %vm1160, %v1161, %v1159
        %v1163 = vrsqrt.pop %v945
        %v1164 = vmul.f32 %v945, %v1163
        %vm1165 = vcmp.eq.f32.partialorder %v945, inf
        %v1166 = vsel %vm1165, %v945, %v1164
        %vm1167 = vcmp.eq.f32.partialorder %v945, 0.0
        %v1168 = vand.u32 %v945, 2147483648
        %v1169 = vsel %vm1167, %v1168, %v1166
        %1170 = vadd.xlane.f32.xlu0 %v562
        %v1171 = vpop.xlane.xlu0 %1170
        %1172 = vadd.xlane.f32.xlu0 %v565
        %v1173 = vpop.xlane.xlu0 %1172
        %1174 = vadd.xlane.f32.xlu0 %v570
        %v1175 = vpop.xlane.xlu0 %1174
        %1176 = vadd.xlane.f32.xlu0 %v573
        %v1177 = vpop.xlane.xlu0 %1176
        %1178 = vadd.xlane.f32.xlu0 %v578
        %v1179 = vpop.xlane.xlu0 %1178
        %1180 = vadd.xlane.f32.xlu0 %v581
        %v1181 = vpop.xlane.xlu0 %1180
        %1182 = vadd.xlane.f32.xlu0 %v586
        %v1183 = vpop.xlane.xlu0 %1182
        %1184 = vadd.xlane.f32.xlu0 %v589
        %v1185 = vpop.xlane.xlu0 %1184
        %1186 = vadd.xlane.f32.xlu0 %v594
        %v1187 = vpop.xlane.xlu0 %1186
        %1188 = vadd.xlane.f32.xlu0 %v597
        %v1189 = vpop.xlane.xlu0 %1188
        %1190 = vadd.xlane.f32.xlu0 %v602
        %v1191 = vpop.xlane.xlu0 %1190
        %1192 = vadd.xlane.f32.xlu0 %v605
        %v1193 = vpop.xlane.xlu0 %1192
        %1194 = vadd.xlane.f32.xlu0 %v610
        %v1195 = vpop.xlane.xlu0 %1194
        %1196 = vadd.xlane.f32.xlu0 %v613
        %v1197 = vpop.xlane.xlu0 %1196
        %1198 = vadd.xlane.f32.xlu0 %v618
        %v1199 = vpop.xlane.xlu0 %1198
        %1200 = vadd.xlane.f32.xlu0 %v621
        %v1201 = vpop.xlane.xlu0 %1200
        %1202 = vadd.xlane.f32.xlu0 %v626
        %v1203 = vpop.xlane.xlu0 %1202
        %1204 = vadd.xlane.f32.xlu0 %v629
        %v1205 = vpop.xlane.xlu0 %1204
        %1206 = vadd.xlane.f32.xlu0 %v634
        %v1207 = vpop.xlane.xlu0 %1206
        %1208 = vadd.xlane.f32.xlu0 %v637
        %v1209 = vpop.xlane.xlu0 %1208
        %1210 = vadd.xlane.f32.xlu0 %v642
        %v1211 = vpop.xlane.xlu0 %1210
        %1212 = vadd.xlane.f32.xlu0 %v645
        %v1213 = vpop.xlane.xlu0 %1212
        %1214 = vadd.xlane.f32.xlu0 %v650
        %v1215 = vpop.xlane.xlu0 %1214
        %1216 = vadd.xlane.f32.xlu0 %v653
        %v1217 = vpop.xlane.xlu0 %1216
        %1218 = vadd.xlane.f32.xlu0 %v658
        %v1219 = vpop.xlane.xlu0 %1218
        %1220 = vadd.xlane.f32.xlu0 %v661
        %v1221 = vpop.xlane.xlu0 %1220
        %1222 = vadd.xlane.f32.xlu0 %v666
        %v1223 = vpop.xlane.xlu0 %1222
        %1224 = vadd.xlane.f32.xlu0 %v669
        %v1225 = vpop.xlane.xlu0 %1224
        %1226 = vadd.xlane.f32.xlu0 %v674
        %v1227 = vpop.xlane.xlu0 %1226
        %1228 = vadd.xlane.f32.xlu0 %v677
        %v1229 = vpop.xlane.xlu0 %1228
        %1230 = vadd.xlane.f32.xlu0 %v682
        %v1231 = vpop.xlane.xlu0 %1230
        %1232 = vadd.xlane.f32.xlu0 %v685
        %v1233 = vpop.xlane.xlu0 %1232
        %v1234 = vmul.f32 %v1171, %v752
        %v1235 = vmul.f32 %v1173, %v752
        %v1236 = vmul.f32 %v1175, %v752
        %v1237 = vmul.f32 %v1177, %v752
        %v1238 = vmul.f32 %v1179, %v752
        %v1239 = vmul.f32 %v1181, %v752
        %v1240 = vmul.f32 %v1183, %v752
        %v1241 = vmul.f32 %v1185, %v752
        %v1242 = vmul.f32 %v1187, %v752
        %v1243 = vmul.f32 %v1189, %v752
        %v1244 = vmul.f32 %v1191, %v752
        %v1245 = vmul.f32 %v1193, %v752
        %v1246 = vmul.f32 %v1195, %v752
        %v1247 = vmul.f32 %v1197, %v752
        %v1248 = vmul.f32 %v1199, %v752
        %v1249 = vmul.f32 %v1201, %v752
        %v1250 = vmul.f32 %v1203, %v752
        %v1251 = vmul.f32 %v1205, %v752
        %v1252 = vmul.f32 %v1207, %v752
        %v1253 = vmul.f32 %v1209, %v752
        %v1254 = vmul.f32 %v1211, %v752
        %v1255 = vmul.f32 %v1213, %v752
        %v1256 = vmul.f32 %v1215, %v752
        %v1257 = vmul.f32 %v1217, %v752
        %v1258 = vmul.f32 %v1219, %v752
        %v1259 = vmul.f32 %v1221, %v752
        %v1260 = vmul.f32 %v1223, %v752
        %v1261 = vmul.f32 %v1225, %v752
        %v1262 = vmul.f32 %v1227, %v752
        %v1263 = vmul.f32 %v1229, %v752
        %v1264 = vmul.f32 %v1231, %v752
        %v1265 = vmul.f32 %v1233, %v752
        %v1266 = vsub.f32 %v562, %v1234
        %v1267 = vsub.f32 %v565, %v1235
        %v1268 = vsub.f32 %v570, %v1236
        %v1269 = vsub.f32 %v573, %v1237
        %v1270 = vsub.f32 %v578, %v1238
        %v1271 = vsub.f32 %v581, %v1239
        %v1272 = vsub.f32 %v586, %v1240
        %v1273 = vsub.f32 %v589, %v1241
        %v1274 = vsub.f32 %v594, %v1242
        %v1275 = vsub.f32 %v597, %v1243
        %v1276 = vsub.f32 %v602, %v1244
        %v1277 = vsub.f32 %v605, %v1245
        %v1278 = vsub.f32 %v610, %v1246
        %v1279 = vsub.f32 %v613, %v1247
        %v1280 = vsub.f32 %v618, %v1248
        %v1281 = vsub.f32 %v621, %v1249
        %v1282 = vsub.f32 %v626, %v1250
        %v1283 = vsub.f32 %v629, %v1251
        %v1284 = vsub.f32 %v634, %v1252
        %v1285 = vsub.f32 %v637, %v1253
        %v1286 = vsub.f32 %v642, %v1254
        %v1287 = vsub.f32 %v645, %v1255
        %v1288 = vsub.f32 %v650, %v1256
        %v1289 = vsub.f32 %v653, %v1257
        %v1290 = vsub.f32 %v658, %v1258
        %v1291 = vsub.f32 %v661, %v1259
        %v1292 = vsub.f32 %v666, %v1260
        %v1293 = vsub.f32 %v669, %v1261
        %v1294 = vsub.f32 %v674, %v1262
        %v1295 = vsub.f32 %v677, %v1263
        %v1296 = vsub.f32 %v682, %v1264
        %v1297 = vsub.f32 %v685, %v1265
        %v1298 = vmul.f32 %v1266, %v1266
        %v1299 = vmul.f32 %v1267, %v1267
        %v1300 = vmul.f32 %v1268, %v1268
        %v1301 = vmul.f32 %v1269, %v1269
        %v1302 = vmul.f32 %v1270, %v1270
        %v1303 = vmul.f32 %v1271, %v1271
        %v1304 = vmul.f32 %v1272, %v1272
        %v1305 = vmul.f32 %v1273, %v1273
        %v1306 = vmul.f32 %v1274, %v1274
        %v1307 = vmul.f32 %v1275, %v1275
        %v1308 = vmul.f32 %v1276, %v1276
        %v1309 = vmul.f32 %v1277, %v1277
        %v1310 = vmul.f32 %v1278, %v1278
        %v1311 = vmul.f32 %v1279, %v1279
        %v1312 = vmul.f32 %v1280, %v1280
        %v1313 = vmul.f32 %v1281, %v1281
        %v1314 = vmul.f32 %v1282, %v1282
        %v1315 = vmul.f32 %v1283, %v1283
        %v1316 = vmul.f32 %v1284, %v1284
        %v1317 = vmul.f32 %v1285, %v1285
        %v1318 = vmul.f32 %v1286, %v1286
        %v1319 = vmul.f32 %v1287, %v1287
        %v1320 = vmul.f32 %v1288, %v1288
        %v1321 = vmul.f32 %v1289, %v1289
        %v1322 = vmul.f32 %v1290, %v1290
        %v1323 = vmul.f32 %v1291, %v1291
        %v1324 = vmul.f32 %v1292, %v1292
        %v1325 = vmul.f32 %v1293, %v1293
        %v1326 = vmul.f32 %v1294, %v1294
        %v1327 = vmul.f32 %v1295, %v1295
        %v1328 = vmul.f32 %v1296, %v1296
        %v1329 = vmul.f32 %v1297, %v1297
        %1330 = vadd.xlane.f32.xlu0 %v1298
        %v1331 = vpop.xlane.xlu0 %1330
        %1332 = vadd.xlane.f32.xlu0 %v1299
        %v1333 = vpop.xlane.xlu0 %1332
        %1334 = vadd.xlane.f32.xlu0 %v1300
        %v1335 = vpop.xlane.xlu0 %1334
        %1336 = vadd.xlane.f32.xlu0 %v1301
        %v1337 = vpop.xlane.xlu0 %1336
        %1338 = vadd.xlane.f32.xlu0 %v1302
        %v1339 = vpop.xlane.xlu0 %1338
        %1340 = vadd.xlane.f32.xlu0 %v1303
        %v1341 = vpop.xlane.xlu0 %1340
        %1342 = vadd.xlane.f32.xlu0 %v1304
        %v1343 = vpop.xlane.xlu0 %1342
        %1344 = vadd.xlane.f32.xlu0 %v1305
        %v1345 = vpop.xlane.xlu0 %1344
        %1346 = vadd.xlane.f32.xlu0 %v1306
        %v1347 = vpop.xlane.xlu0 %1346
        %1348 = vadd.xlane.f32.xlu0 %v1307
        %v1349 = vpop.xlane.xlu0 %1348
        %1350 = vadd.xlane.f32.xlu0 %v1308
        %v1351 = vpop.xlane.xlu0 %1350
        %1352 = vadd.xlane.f32.xlu0 %v1309
        %v1353 = vpop.xlane.xlu0 %1352
        %1354 = vadd.xlane.f32.xlu0 %v1310
        %v1355 = vpop.xlane.xlu0 %1354
        %1356 = vadd.xlane.f32.xlu0 %v1311
        %v1357 = vpop.xlane.xlu0 %1356
        %1358 = vadd.xlane.f32.xlu0 %v1312
        %v1359 = vpop.xlane.xlu0 %1358
        %1360 = vadd.xlane.f32.xlu0 %v1313
        %v1361 = vpop.xlane.xlu0 %1360
        %1362 = vadd.xlane.f32.xlu0 %v1314
        %v1363 = vpop.xlane.xlu0 %1362
        %1364 = vadd.xlane.f32.xlu0 %v1315
        %v1365 = vpop.xlane.xlu0 %1364
        %1366 = vadd.xlane.f32.xlu0 %v1316
        %v1367 = vpop.xlane.xlu0 %1366
        %1368 = vadd.xlane.f32.xlu0 %v1317
        %v1369 = vpop.xlane.xlu0 %1368
        %1370 = vadd.xlane.f32.xlu0 %v1318
        %v1371 = vpop.xlane.xlu0 %1370
        %1372 = vadd.xlane.f32.xlu0 %v1319
        %v1373 = vpop.xlane.xlu0 %1372
        %1374 = vadd.xlane.f32.xlu0 %v1320
        %v1375 = vpop.xlane.xlu0 %1374
        %1376 = vadd.xlane.f32.xlu0 %v1321
        %v1377 = vpop.xlane.xlu0 %1376
        %1378 = vadd.xlane.f32.xlu0 %v1322
        %v1379 = vpop.xlane.xlu0 %1378
        %1380 = vadd.xlane.f32.xlu0 %v1323
        %v1381 = vpop.xlane.xlu0 %1380
        %1382 = vadd.xlane.f32.xlu0 %v1324
        %v1383 = vpop.xlane.xlu0 %1382
        %1384 = vadd.xlane.f32.xlu0 %v1325
        %v1385 = vpop.xlane.xlu0 %1384
        %1386 = vadd.xlane.f32.xlu0 %v1326
        %v1387 = vpop.xlane.xlu0 %1386
        %1388 = vadd.xlane.f32.xlu0 %v1327
        %v1389 = vpop.xlane.xlu0 %1388
        %1390 = vadd.xlane.f32.xlu0 %v1328
        %v1391 = vpop.xlane.xlu0 %1390
        %1392 = vadd.xlane.f32.xlu0 %v1329
        %v1393 = vpop.xlane.xlu0 %1392
        %v1394 = vmul.f32 %v1331, %v913
        %v1395 = vmul.f32 %v1333, %v913
        %v1396 = vmul.f32 %v1335, %v913
        %v1397 = vmul.f32 %v1337, %v913
        %v1398 = vmul.f32 %v1339, %v913
        %v1399 = vmul.f32 %v1341, %v913
        %v1400 = vmul.f32 %v1343, %v913
        %v1401 = vmul.f32 %v1345, %v913
        %v1402 = vmul.f32 %v1347, %v913
        %v1403 = vmul.f32 %v1349, %v913
        %v1404 = vmul.f32 %v1351, %v913
        %v1405 = vmul.f32 %v1353, %v913
        %v1406 = vmul.f32 %v1355, %v913
        %v1407 = vmul.f32 %v1357, %v913
        %v1408 = vmul.f32 %v1359, %v913
        %v1409 = vmul.f32 %v1361, %v913
        %v1410 = vmul.f32 %v1363, %v913
        %v1411 = vmul.f32 %v1365, %v913
        %v1412 = vmul.f32 %v1367, %v913
        %v1413 = vmul.f32 %v1369, %v913
        %v1414 = vmul.f32 %v1371, %v913
        %v1415 = vmul.f32 %v1373, %v913
        %v1416 = vmul.f32 %v1375, %v913
        %v1417 = vmul.f32 %v1377, %v913
        %v1418 = vmul.f32 %v1379, %v913
        %v1419 = vmul.f32 %v1381, %v913
        %v1420 = vmul.f32 %v1383, %v913
        %v1421 = vmul.f32 %v1385, %v913
        %v1422 = vmul.f32 %v1387, %v913
        %v1423 = vmul.f32 %v1389, %v913
        %v1424 = vmul.f32 %v1391, %v913
        %v1425 = vmul.f32 %v1393, %v913
        %v1426 = vrsqrt.pop %v1394
        %v1427 = vmul.f32 %v1394, %v1426
        %vm1428 = vcmp.eq.f32.partialorder %v1394, inf
        %v1429 = vsel %vm1428, %v1394, %v1427
        %vm1430 = vcmp.eq.f32.partialorder %v1394, 0.0
        %v1431 = vand.u32 %v1394, 2147483648
        %v1432 = vsel %vm1430, %v1431, %v1429
        %v1433 = vrsqrt.pop %v1395
        %v1434 = vmul.f32 %v1395, %v1433
        %vm1435 = vcmp.eq.f32.partialorder %v1395, inf
        %v1436 = vsel %vm1435, %v1395, %v1434
        %vm1437 = vcmp.eq.f32.partialorder %v1395, 0.0
        %v1438 = vand.u32 %v1395, 2147483648
        %v1439 = vsel %vm1437, %v1438, %v1436
        %v1440 = vrsqrt.pop %v1396
        %v1441 = vmul.f32 %v1396, %v1440
        %vm1442 = vcmp.eq.f32.partialorder %v1396, inf
        %v1443 = vsel %vm1442, %v1396, %v1441
        %vm1444 = vcmp.eq.f32.partialorder %v1396, 0.0
        %v1445 = vand.u32 %v1396, 2147483648
        %v1446 = vsel %vm1444, %v1445, %v1443
        %v1447 = vrsqrt.pop %v1397
        %v1448 = vmul.f32 %v1397, %v1447
        %vm1449 = vcmp.eq.f32.partialorder %v1397, inf
        %v1450 = vsel %vm1449, %v1397, %v1448
        %vm1451 = vcmp.eq.f32.partialorder %v1397, 0.0
        %v1452 = vand.u32 %v1397, 2147483648
        %v1453 = vsel %vm1451, %v1452, %v1450
        %v1454 = vrsqrt.pop %v1398
        %v1455 = vmul.f32 %v1398, %v1454
        %vm1456 = vcmp.eq.f32.partialorder %v1398, inf
        %v1457 = vsel %vm1456, %v1398, %v1455
        %vm1458 = vcmp.eq.f32.partialorder %v1398, 0.0
        %v1459 = vand.u32 %v1398, 2147483648
        %v1460 = vsel %vm1458, %v1459, %v1457
        %v1461 = vrsqrt.pop %v1399
        %v1462 = vmul.f32 %v1399, %v1461
        %vm1463 = vcmp.eq.f32.partialorder %v1399, inf
        %v1464 = vsel %vm1463, %v1399, %v1462
        %vm1465 = vcmp.eq.f32.partialorder %v1399, 0.0
        %v1466 = vand.u32 %v1399, 2147483648
        %v1467 = vsel %vm1465, %v1466, %v1464
        %v1468 = vrsqrt.pop %v1400
        %v1469 = vmul.f32 %v1400, %v1468
        %vm1470 = vcmp.eq.f32.partialorder %v1400, inf
        %v1471 = vsel %vm1470, %v1400, %v1469
        %vm1472 = vcmp.eq.f32.partialorder %v1400, 0.0
        %v1473 = vand.u32 %v1400, 2147483648
        %v1474 = vsel %vm1472, %v1473, %v1471
        %v1475 = vrsqrt.pop %v1401
        %v1476 = vmul.f32 %v1401, %v1475
        %vm1477 = vcmp.eq.f32.partialorder %v1401, inf
        %v1478 = vsel %vm1477, %v1401, %v1476
        %vm1479 = vcmp.eq.f32.partialorder %v1401, 0.0
        %v1480 = vand.u32 %v1401, 2147483648
        %v1481 = vsel %vm1479, %v1480, %v1478
        %v1482 = vrsqrt.pop %v1402
        %v1483 = vmul.f32 %v1402, %v1482
        %vm1484 = vcmp.eq.f32.partialorder %v1402, inf
        %v1485 = vsel %vm1484, %v1402, %v1483
        %vm1486 = vcmp.eq.f32.partialorder %v1402, 0.0
        %v1487 = vand.u32 %v1402, 2147483648
        %v1488 = vsel %vm1486, %v1487, %v1485
        %v1489 = vrsqrt.pop %v1403
        %v1490 = vmul.f32 %v1403, %v1489
        %vm1491 = vcmp.eq.f32.partialorder %v1403, inf
        %v1492 = vsel %vm1491, %v1403, %v1490
        %vm1493 = vcmp.eq.f32.partialorder %v1403, 0.0
        %v1494 = vand.u32 %v1403, 2147483648
        %v1495 = vsel %vm1493, %v1494, %v1492
        %v1496 = vrsqrt.pop %v1404
        %v1497 = vmul.f32 %v1404, %v1496
        %vm1498 = vcmp.eq.f32.partialorder %v1404, inf
        %v1499 = vsel %vm1498, %v1404, %v1497
        %vm1500 = vcmp.eq.f32.partialorder %v1404, 0.0
        %v1501 = vand.u32 %v1404, 2147483648
        %v1502 = vsel %vm1500, %v1501, %v1499
        %v1503 = vrsqrt.pop %v1405
        %v1504 = vmul.f32 %v1405, %v1503
        %vm1505 = vcmp.eq.f32.partialorder %v1405, inf
        %v1506 = vsel %vm1505, %v1405, %v1504
        %vm1507 = vcmp.eq.f32.partialorder %v1405, 0.0
        %v1508 = vand.u32 %v1405, 2147483648
        %v1509 = vsel %vm1507, %v1508, %v1506
        %v1510 = vrsqrt.pop %v1406
        %v1511 = vmul.f32 %v1406, %v1510
        %vm1512 = vcmp.eq.f32.partialorder %v1406, inf
        %v1513 = vsel %vm1512, %v1406, %v1511
        %vm1514 = vcmp.eq.f32.partialorder %v1406, 0.0
        %v1515 = vand.u32 %v1406, 2147483648
        %v1516 = vsel %vm1514, %v1515, %v1513
        %v1517 = vrsqrt.pop %v1407
        %v1518 = vmul.f32 %v1407, %v1517
        %vm1519 = vcmp.eq.f32.partialorder %v1407, inf
        %v1520 = vsel %vm1519, %v1407, %v1518
        %vm1521 = vcmp.eq.f32.partialorder %v1407, 0.0
        %v1522 = vand.u32 %v1407, 2147483648
        %v1523 = vsel %vm1521, %v1522, %v1520
        %v1524 = vrsqrt.pop %v1408
        %v1525 = vmul.f32 %v1408, %v1524
        %vm1526 = vcmp.eq.f32.partialorder %v1408, inf
        %v1527 = vsel %vm1526, %v1408, %v1525
        %vm1528 = vcmp.eq.f32.partialorder %v1408, 0.0
        %v1529 = vand.u32 %v1408, 2147483648
        %v1530 = vsel %vm1528, %v1529, %v1527
        %v1531 = vrsqrt.pop %v1409
        %v1532 = vmul.f32 %v1409, %v1531
        %vm1533 = vcmp.eq.f32.partialorder %v1409, inf
        %v1534 = vsel %vm1533, %v1409, %v1532
        %vm1535 = vcmp.eq.f32.partialorder %v1409, 0.0
        %v1536 = vand.u32 %v1409, 2147483648
        %v1537 = vsel %vm1535, %v1536, %v1534
        %v1538 = vrsqrt.pop %v1410
        %v1539 = vmul.f32 %v1410, %v1538
        %vm1540 = vcmp.eq.f32.partialorder %v1410, inf
        %v1541 = vsel %vm1540, %v1410, %v1539
        %vm1542 = vcmp.eq.f32.partialorder %v1410, 0.0
        %v1543 = vand.u32 %v1410, 2147483648
        %v1544 = vsel %vm1542, %v1543, %v1541
        %v1545 = vrsqrt.pop %v1411
        %v1546 = vmul.f32 %v1411, %v1545
        %vm1547 = vcmp.eq.f32.partialorder %v1411, inf
        %v1548 = vsel %vm1547, %v1411, %v1546
        %vm1549 = vcmp.eq.f32.partialorder %v1411, 0.0
        %v1550 = vand.u32 %v1411, 2147483648
        %v1551 = vsel %vm1549, %v1550, %v1548
        %v1552 = vrsqrt.pop %v1412
        %v1553 = vmul.f32 %v1412, %v1552
        %vm1554 = vcmp.eq.f32.partialorder %v1412, inf
        %v1555 = vsel %vm1554, %v1412, %v1553
        %vm1556 = vcmp.eq.f32.partialorder %v1412, 0.0
        %v1557 = vand.u32 %v1412, 2147483648
        %v1558 = vsel %vm1556, %v1557, %v1555
        %v1559 = vrsqrt.pop %v1413
        %v1560 = vmul.f32 %v1413, %v1559
        %vm1561 = vcmp.eq.f32.partialorder %v1413, inf
        %v1562 = vsel %vm1561, %v1413, %v1560
        %vm1563 = vcmp.eq.f32.partialorder %v1413, 0.0
        %v1564 = vand.u32 %v1413, 2147483648
        %v1565 = vsel %vm1563, %v1564, %v1562
        %v1566 = vrsqrt.pop %v1414
        %v1567 = vmul.f32 %v1414, %v1566
        %vm1568 = vcmp.eq.f32.partialorder %v1414, inf
        %v1569 = vsel %vm1568, %v1414, %v1567
        %vm1570 = vcmp.eq.f32.partialorder %v1414, 0.0
        %v1571 = vand.u32 %v1414, 2147483648
        %v1572 = vsel %vm1570, %v1571, %v1569
        %v1573 = vrsqrt.pop %v1415
        %v1574 = vmul.f32 %v1415, %v1573
        %vm1575 = vcmp.eq.f32.partialorder %v1415, inf
        %v1576 = vsel %vm1575, %v1415, %v1574
        %vm1577 = vcmp.eq.f32.partialorder %v1415, 0.0
        %v1578 = vand.u32 %v1415, 2147483648
        %v1579 = vsel %vm1577, %v1578, %v1576
        %v1580 = vrsqrt.pop %v1416
        %v1581 = vmul.f32 %v1416, %v1580
        %vm1582 = vcmp.eq.f32.partialorder %v1416, inf
        %v1583 = vsel %vm1582, %v1416, %v1581
        %vm1584 = vcmp.eq.f32.partialorder %v1416, 0.0
        %v1585 = vand.u32 %v1416, 2147483648
        %v1586 = vsel %vm1584, %v1585, %v1583
        %v1587 = vrsqrt.pop %v1417
        %v1588 = vmul.f32 %v1417, %v1587
        %vm1589 = vcmp.eq.f32.partialorder %v1417, inf
        %v1590 = vsel %vm1589, %v1417, %v1588
        %vm1591 = vcmp.eq.f32.partialorder %v1417, 0.0
        %v1592 = vand.u32 %v1417, 2147483648
        %v1593 = vsel %vm1591, %v1592, %v1590
        %v1594 = vrsqrt.pop %v1418
        %v1595 = vmul.f32 %v1418, %v1594
        %vm1596 = vcmp.eq.f32.partialorder %v1418, inf
        %v1597 = vsel %vm1596, %v1418, %v1595
        %vm1598 = vcmp.eq.f32.partialorder %v1418, 0.0
        %v1599 = vand.u32 %v1418, 2147483648
        %v1600 = vsel %vm1598, %v1599, %v1597
        %v1601 = vrsqrt.pop %v1419
        %v1602 = vmul.f32 %v1419, %v1601
        %vm1603 = vcmp.eq.f32.partialorder %v1419, inf
        %v1604 = vsel %vm1603, %v1419, %v1602
        %vm1605 = vcmp.eq.f32.partialorder %v1419, 0.0
        %v1606 = vand.u32 %v1419, 2147483648
        %v1607 = vsel %vm1605, %v1606, %v1604
        %v1608 = vrsqrt.pop %v1420
        %v1609 = vmul.f32 %v1420, %v1608
        %vm1610 = vcmp.eq.f32.partialorder %v1420, inf
        %v1611 = vsel %vm1610, %v1420, %v1609
        %vm1612 = vcmp.eq.f32.partialorder %v1420, 0.0
        %v1613 = vand.u32 %v1420, 2147483648
        %v1614 = vsel %vm1612, %v1613, %v1611
        %v1615 = vrsqrt.pop %v1421
        %v1616 = vmul.f32 %v1421, %v1615
        %vm1617 = vcmp.eq.f32.partialorder %v1421, inf
        %v1618 = vsel %vm1617, %v1421, %v1616
        %vm1619 = vcmp.eq.f32.partialorder %v1421, 0.0
        %v1620 = vand.u32 %v1421, 2147483648
        %v1621 = vsel %vm1619, %v1620, %v1618
        %v1622 = vrsqrt.pop %v1422
        %v1623 = vmul.f32 %v1422, %v1622
        %vm1624 = vcmp.eq.f32.partialorder %v1422, inf
        %v1625 = vsel %vm1624, %v1422, %v1623
        %vm1626 = vcmp.eq.f32.partialorder %v1422, 0.0
        %v1627 = vand.u32 %v1422, 2147483648
        %v1628 = vsel %vm1626, %v1627, %v1625
        %v1629 = vrsqrt.pop %v1423
        %v1630 = vmul.f32 %v1423, %v1629
        %vm1631 = vcmp.eq.f32.partialorder %v1423, inf
        %v1632 = vsel %vm1631, %v1423, %v1630
        %vm1633 = vcmp.eq.f32.partialorder %v1423, 0.0
        %v1634 = vand.u32 %v1423, 2147483648
        %v1635 = vsel %vm1633, %v1634, %v1632
        %v1636 = vrsqrt.pop %v1424
        %v1637 = vmul.f32 %v1424, %v1636
        %vm1638 = vcmp.eq.f32.partialorder %v1424, inf
        %v1639 = vsel %vm1638, %v1424, %v1637
        %vm1640 = vcmp.eq.f32.partialorder %v1424, 0.0
        %v1641 = vand.u32 %v1424, 2147483648
        %v1642 = vsel %vm1640, %v1641, %v1639
        %v1643 = vrsqrt.pop %v1425
        %v1644 = vmul.f32 %v1425, %v1643
        %vm1645 = vcmp.eq.f32.partialorder %v1425, inf
        %v1646 = vsel %vm1645, %v1425, %v1644
        %vm1647 = vcmp.eq.f32.partialorder %v1425, 0.0
        %v1648 = vand.u32 %v1425, 2147483648
        %v1649 = vsel %vm1647, %v1648, %v1646
        %v1650 = vadd.f32 %v952, 1e-05
        %v1651 = vadd.f32 %v959, 1e-05
        %v1652 = vadd.f32 %v966, 1e-05
        %v1653 = vadd.f32 %v973, 1e-05
        %v1654 = vadd.f32 %v980, 1e-05
        %v1655 = vadd.f32 %v987, 1e-05
        %v1656 = vadd.f32 %v994, 1e-05
        %v1657 = vadd.f32 %v1001, 1e-05
        %v1658 = vadd.f32 %v1008, 1e-05
        %v1659 = vadd.f32 %v1015, 1e-05
        %v1660 = vadd.f32 %v1022, 1e-05
        %v1661 = vadd.f32 %v1029, 1e-05
        %v1662 = vadd.f32 %v1036, 1e-05
        %v1663 = vadd.f32 %v1043, 1e-05
        %v1664 = vadd.f32 %v1050, 1e-05
        %v1665 = vadd.f32 %v1057, 1e-05
        %v1666 = vadd.f32 %v1064, 1e-05
        %v1667 = vadd.f32 %v1071, 1e-05
        %v1668 = vadd.f32 %v1078, 1e-05
        %v1669 = vadd.f32 %v1085, 1e-05
        %v1670 = vadd.f32 %v1092, 1e-05
        %v1671 = vadd.f32 %v1099, 1e-05
        %v1672 = vadd.f32 %v1106, 1e-05
        %v1673 = vadd.f32 %v1113, 1e-05
        %v1674 = vadd.f32 %v1120, 1e-05
        %v1675 = vadd.f32 %v1127, 1e-05
        %v1676 = vadd.f32 %v1134, 1e-05
        %v1677 = vadd.f32 %v1141, 1e-05
        %v1678 = vadd.f32 %v1148, 1e-05
        %v1679 = vadd.f32 %v1155, 1e-05
        %v1680 = vadd.f32 %v1162, 1e-05
        %v1681 = vadd.f32 %v1169, 1e-05
        %v1682 = vrcp.pop %v1650
        %v1683 = vrcp.pop %v1651
        %v1684 = vrcp.pop %v1652
        %v1685 = vrcp.pop %v1653
        %v1686 = vrcp.pop %v1654
        %v1687 = vrcp.pop %v1655
        %v1688 = vrcp.pop %v1656
        %v1689 = vrcp.pop %v1657
        %v1690 = vrcp.pop %v1658
        %v1691 = vrcp.pop %v1659
        %v1692 = vrcp.pop %v1660
        %v1693 = vrcp.pop %v1661
        %v1694 = vrcp.pop %v1662
        %v1695 = vrcp.pop %v1663
        %v1696 = vrcp.pop %v1664
        %v1697 = vrcp.pop %v1665
        %v1698 = vrcp.pop %v1666
        %v1699 = vrcp.pop %v1667
        %v1700 = vrcp.pop %v1668
        %v1701 = vrcp.pop %v1669
        %v1702 = vrcp.pop %v1670
        %v1703 = vrcp.pop %v1671
        %v1704 = vrcp.pop %v1672
        %v1705 = vrcp.pop %v1673
        %v1706 = vrcp.pop %v1674
        %v1707 = vrcp.pop %v1675
        %v1708 = vrcp.pop %v1676
        %v1709 = vrcp.pop %v1677
        %v1710 = vrcp.pop %v1678
        %v1711 = vrcp.pop %v1679
        %v1712 = vrcp.pop %v1680
        %v1713 = vrcp.pop %v1681
        %v1714 = vmul.f32 %v1432, %v1682
        %v1715 = vmul.f32 %v1439, %v1683
        %v1716 = vmul.f32 %v1446, %v1684
        %v1717 = vmul.f32 %v1453, %v1685
        %v1718 = vmul.f32 %v1460, %v1686
        %v1719 = vmul.f32 %v1467, %v1687
        %v1720 = vmul.f32 %v1474, %v1688
        %v1721 = vmul.f32 %v1481, %v1689
        %v1722 = vmul.f32 %v1488, %v1690
        %v1723 = vmul.f32 %v1495, %v1691
        %v1724 = vmul.f32 %v1502, %v1692
        %v1725 = vmul.f32 %v1509, %v1693
        %v1726 = vmul.f32 %v1516, %v1694
        %v1727 = vmul.f32 %v1523, %v1695
        %v1728 = vmul.f32 %v1530, %v1696
        %v1729 = vmul.f32 %v1537, %v1697
        %v1730 = vmul.f32 %v1544, %v1698
        %v1731 = vmul.f32 %v1551, %v1699
        %v1732 = vmul.f32 %v1558, %v1700
        %v1733 = vmul.f32 %v1565, %v1701
        %v1734 = vmul.f32 %v1572, %v1702
        %v1735 = vmul.f32 %v1579, %v1703
        %v1736 = vmul.f32 %v1586, %v1704
        %v1737 = vmul.f32 %v1593, %v1705
        %v1738 = vmul.f32 %v1600, %v1706
        %v1739 = vmul.f32 %v1607, %v1707
        %v1740 = vmul.f32 %v1614, %v1708
        %v1741 = vmul.f32 %v1621, %v1709
        %v1742 = vmul.f32 %v1628, %v1710
        %v1743 = vmul.f32 %v1635, %v1711
        %v1744 = vmul.f32 %v1642, %v1712
        %v1745 = vmul.f32 %v1649, %v1713
        %v1746 = vmul.f32 %v785, %v1714
        %v1747 = vmul.f32 %v786, %v1715
        %v1748 = vmul.f32 %v787, %v1716
        %v1749 = vmul.f32 %v788, %v1717
        %v1750 = vmul.f32 %v789, %v1718
        %v1751 = vmul.f32 %v790, %v1719
        %v1752 = vmul.f32 %v791, %v1720
        %v1753 = vmul.f32 %v792, %v1721
        %v1754 = vmul.f32 %v793, %v1722
        %v1755 = vmul.f32 %v794, %v1723
        %v1756 = vmul.f32 %v795, %v1724
        %v1757 = vmul.f32 %v796, %v1725
        %v1758 = vmul.f32 %v797, %v1726
        %v1759 = vmul.f32 %v798, %v1727
        %v1760 = vmul.f32 %v799, %v1728
        %v1761 = vmul.f32 %v800, %v1729
        %v1762 = vmul.f32 %v801, %v1730
        %v1763 = vmul.f32 %v802, %v1731
        %v1764 = vmul.f32 %v803, %v1732
        %v1765 = vmul.f32 %v804, %v1733
        %v1766 = vmul.f32 %v805, %v1734
        %v1767 = vmul.f32 %v806, %v1735
        %v1768 = vmul.f32 %v807, %v1736
        %v1769 = vmul.f32 %v808, %v1737
        %v1770 = vmul.f32 %v809, %v1738
        %v1771 = vmul.f32 %v810, %v1739
        %v1772 = vmul.f32 %v811, %v1740
        %v1773 = vmul.f32 %v812, %v1741
        %v1774 = vmul.f32 %v813, %v1742
        %v1775 = vmul.f32 %v814, %v1743
        %v1776 = vmul.f32 %v815, %v1744
        %v1777 = vmul.f32 %v816, %v1745
        %v1778 = vadd.f32 %v1746, %v1234
        %v1779 = vadd.f32 %v1747, %v1235
        %v1780 = vadd.f32 %v1748, %v1236
        %v1781 = vadd.f32 %v1749, %v1237
        %v1782 = vadd.f32 %v1750, %v1238
        %v1783 = vadd.f32 %v1751, %v1239
        %v1784 = vadd.f32 %v1752, %v1240
        %v1785 = vadd.f32 %v1753, %v1241
        %v1786 = vadd.f32 %v1754, %v1242
        %v1787 = vadd.f32 %v1755, %v1243
        %v1788 = vadd.f32 %v1756, %v1244
        %v1789 = vadd.f32 %v1757, %v1245
        %v1790 = vadd.f32 %v1758, %v1246
        %v1791 = vadd.f32 %v1759, %v1247
        %v1792 = vadd.f32 %v1760, %v1248
        %v1793 = vadd.f32 %v1761, %v1249
        %v1794 = vadd.f32 %v1762, %v1250
        %v1795 = vadd.f32 %v1763, %v1251
        %v1796 = vadd.f32 %v1764, %v1252
        %v1797 = vadd.f32 %v1765, %v1253
        %v1798 = vadd.f32 %v1766, %v1254
        %v1799 = vadd.f32 %v1767, %v1255
        %v1800 = vadd.f32 %v1768, %v1256
        %v1801 = vadd.f32 %v1769, %v1257
        %v1802 = vadd.f32 %v1770, %v1258
        %v1803 = vadd.f32 %v1771, %v1259
        %v1804 = vadd.f32 %v1772, %v1260
        %v1805 = vadd.f32 %v1773, %v1261
        %v1806 = vadd.f32 %v1774, %v1262
        %v1807 = vadd.f32 %v1775, %v1263
        %v1808 = vadd.f32 %v1776, %v1264
        %v1809 = vadd.f32 %v1777, %v1265
        %v1810 = vmul.f32 %v1778, 0.2
        %v1811 = vmul.f32 %v1779, 0.2
        %v1812 = vmul.f32 %v1780, 0.2
        %v1813 = vmul.f32 %v1781, 0.2
        %v1814 = vmul.f32 %v1782, 0.2
        %v1815 = vmul.f32 %v1783, 0.2
        %v1816 = vmul.f32 %v1784, 0.2
        %v1817 = vmul.f32 %v1785, 0.2
        %v1818 = vmul.f32 %v1786, 0.2
        %v1819 = vmul.f32 %v1787, 0.2
        %v1820 = vmul.f32 %v1788, 0.2
        %v1821 = vmul.f32 %v1789, 0.2
        %v1822 = vmul.f32 %v1790, 0.2
        %v1823 = vmul.f32 %v1791, 0.2
        %v1824 = vmul.f32 %v1792, 0.2
        %v1825 = vmul.f32 %v1793, 0.2
        %v1826 = vmul.f32 %v1794, 0.2
        %v1827 = vmul.f32 %v1795, 0.2
        %v1828 = vmul.f32 %v1796, 0.2
        %v1829 = vmul.f32 %v1797, 0.2
        %v1830 = vmul.f32 %v1798, 0.2
        %v1831 = vmul.f32 %v1799, 0.2
        %v1832 = vmul.f32 %v1800, 0.2
        %v1833 = vmul.f32 %v1801, 0.2
        %v1834 = vmul.f32 %v1802, 0.2
        %v1835 = vmul.f32 %v1803, 0.2
        %v1836 = vmul.f32 %v1804, 0.2
        %v1837 = vmul.f32 %v1805, 0.2
        %v1838 = vmul.f32 %v1806, 0.2
        %v1839 = vmul.f32 %v1807, 0.2
        %v1840 = vmul.f32 %v1808, 0.2
        %v1841 = vmul.f32 %v1809, 0.2
        %v1842 = vmax.f32 %v1778, %v1810
        %v1843 = vmax.f32 %v1779, %v1811
        %v1844 = vmax.f32 %v1780, %v1812
        %v1845 = vmax.f32 %v1781, %v1813
        %v1846 = vmax.f32 %v1782, %v1814
        %v1847 = vmax.f32 %v1783, %v1815
        %v1848 = vmax.f32 %v1784, %v1816
        %v1849 = vmax.f32 %v1785, %v1817
        %v1850 = vmax.f32 %v1786, %v1818
        %v1851 = vmax.f32 %v1787, %v1819
        %v1852 = vmax.f32 %v1788, %v1820
        %v1853 = vmax.f32 %v1789, %v1821
        %v1854 = vmax.f32 %v1790, %v1822
        %v1855 = vmax.f32 %v1791, %v1823
        %v1856 = vmax.f32 %v1792, %v1824
        %v1857 = vmax.f32 %v1793, %v1825
        %v1858 = vmax.f32 %v1794, %v1826
        %v1859 = vmax.f32 %v1795, %v1827
        %v1860 = vmax.f32 %v1796, %v1828
        %v1861 = vmax.f32 %v1797, %v1829
        %v1862 = vmax.f32 %v1798, %v1830
        %v1863 = vmax.f32 %v1799, %v1831
        %v1864 = vmax.f32 %v1800, %v1832
        %v1865 = vmax.f32 %v1801, %v1833
        %v1866 = vmax.f32 %v1802, %v1834
        %v1867 = vmax.f32 %v1803, %v1835
        %v1868 = vmax.f32 %v1804, %v1836
        %v1869 = vmax.f32 %v1805, %v1837
        %v1870 = vmax.f32 %v1806, %v1838
        %v1871 = vmax.f32 %v1807, %v1839
        %v1872 = vmax.f32 %v1808, %v1840
        %v1873 = vmax.f32 %v1809, %v1841
        %v1874 = vpack.c.bf16 %v1843, %v1842
        %v1875 = vpack.c.bf16 %v1845, %v1844
        %v1876 = vpack.c.bf16 %v1847, %v1846
        %v1877 = vpack.c.bf16 %v1849, %v1848
        %v1878 = vpack.c.bf16 %v1851, %v1850
        %v1879 = vpack.c.bf16 %v1853, %v1852
        %v1880 = vpack.c.bf16 %v1855, %v1854
        %v1881 = vpack.c.bf16 %v1857, %v1856
        %v1882 = vpack.c.bf16 %v1859, %v1858
        %v1883 = vpack.c.bf16 %v1861, %v1860
        %v1884 = vpack.c.bf16 %v1863, %v1862
        %v1885 = vpack.c.bf16 %v1865, %v1864
        %v1886 = vpack.c.bf16 %v1867, %v1866
        %v1887 = vpack.c.bf16 %v1869, %v1868
        %v1888 = vpack.c.bf16 %v1871, %v1870
        %v1889 = vpack.c.bf16 %v1873, %v1872
        %v1890 = vld [vmem:[%s4] sm:$0xf]
        %v1891 = vld [vmem:[%s4 + $0x4] sm:$0xf]
        %v1892 = vld [vmem:[%s4 + $0x8] sm:$0xf]
        %v1893 = vld [vmem:[%s4 + $0xc] sm:$0xf]
        %v1894 = vld [vmem:[%s4 + $0x10] sm:$0xf]
        %v1895 = vld [vmem:[%s4 + $0x14] sm:$0xf]
        %v1896 = vld [vmem:[%s4 + $0x18] sm:$0xf]
        %v1897 = vld [vmem:[%s4 + $0x1c] sm:$0xf]
        %v1898 = vld [vmem:[%s4 + $0x20] sm:$0xf]
        %v1899 = vld [vmem:[%s4 + $0x24] sm:$0xf]
        %v1900 = vld [vmem:[%s4 + $0x28] sm:$0xf]
        %v1901 = vld [vmem:[%s4 + $0x2c] sm:$0xf]
        %v1902 = vld [vmem:[%s4 + $0x30] sm:$0xf]
        %v1903 = vld [vmem:[%s4 + $0x34] sm:$0xf]
        %v1904 = vld [vmem:[%s4 + $0x38] sm:$0xf]
        %v1905 = vld [vmem:[%s4 + $0x3c] sm:$0xf]
        %v1906 = vld [vmem:[%s5] sm:$0x1]
        %v1908 = vlaneseq
        %v1909 = vshrl.u32 %v1908, 7
        %v1910 = vsub.s32 0, %v1909
        %v1911 = vrot.slane %v1906, %v1910
        %v1929 = vunpack.c.l.b16 %v1890
        %v1930 = vunpack.c.l.b16 %v1891
        %v1931 = vunpack.c.l.b16 %v1892
        %v1932 = vunpack.c.l.b16 %v1893
        %v1933 = vunpack.c.l.b16 %v1894
        %v1934 = vunpack.c.l.b16 %v1895
        %v1935 = vunpack.c.l.b16 %v1896
        %v1936 = vunpack.c.l.b16 %v1897
        %v1937 = vunpack.c.l.b16 %v1898
        %v1938 = vunpack.c.l.b16 %v1899
        %v1939 = vunpack.c.l.b16 %v1900
        %v1940 = vunpack.c.l.b16 %v1901
        %v1941 = vunpack.c.l.b16 %v1902
        %v1942 = vunpack.c.l.b16 %v1903
        %v1943 = vunpack.c.l.b16 %v1904
        %v1944 = vunpack.c.l.b16 %v1905
        %v1945 = vpack.c.b16 %v1930, %v1929
        %v1946 = vpack.c.b16 %v1932, %v1931
        %v1947 = vpack.c.b16 %v1934, %v1933
        %v1948 = vpack.c.b16 %v1936, %v1935
        %v1949 = vpack.c.b16 %v1938, %v1937
        %v1950 = vpack.c.b16 %v1940, %v1939
        %v1951 = vpack.c.b16 %v1942, %v1941
        %v1952 = vpack.c.b16 %v1944, %v1943
        %1961 = vmatprep.subr.bf16.mxu0 0
        %1962 = vmatpush1.bf16.msra.mxu0 %v1945
        %1963 = vmatprep.subr.bf16.mxu0 0
        %1964 = vmatpush1.bf16.msra.mxu0 %v1946
        %1965 = vmatprep.subr.bf16.mxu0 0
        %1966 = vmatpush1.bf16.msra.mxu0 %v1947
        %1967 = vmatprep.subr.bf16.mxu0 0
        %1968 = vmatpush1.bf16.msra.mxu0 %v1948
        %1969 = vmatprep.subr.bf16.mxu0 0
        %1970 = vmatpush1.bf16.msra.mxu0 %v1949
        %1971 = vmatprep.subr.bf16.mxu0 0
        %1972 = vmatpush1.bf16.msra.mxu0 %v1950
        %1973 = vmatprep.subr.bf16.mxu0 0
        %1974 = vmatpush1.bf16.msra.mxu0 %v1951
        %1975 = vmatprep.subr.bf16.mxu0 0
        %1976 = vmatpush1.bf16.msra.mxu0 %v1952
        %1977 = vmatprep.subr.bf16.mxu0 0
        %1978 = vmatpush1.bf16.msra.mxu0 0
        %1979 = vmatprep.subr.bf16.mxu0 0
        %1980 = vmatpush1.bf16.msra.mxu0 0
        %1981 = vmatprep.subr.bf16.mxu0 0
        %1982 = vmatpush1.bf16.msra.mxu0 0
        %1983 = vmatprep.subr.bf16.mxu0 0
        %1984 = vmatpush1.bf16.msra.mxu0 0
        %1985 = vmatprep.subr.bf16.mxu0 0
        %1986 = vmatpush1.bf16.msra.mxu0 0
        %1987 = vmatprep.subr.bf16.mxu0 0
        %1988 = vmatpush1.bf16.msra.mxu0 0
        %1989 = vmatprep.subr.bf16.mxu0 0
        %1990 = vmatpush1.bf16.msra.mxu0 0
        %1991 = vmatprep.subr.bf16.mxu0 0
        %1992 = vmatpush1.bf16.msra.mxu0 0
        %1993 = vmatprep.mubr.bf16.mxu0 0
        %1994 = vmatmul.mubr.bf16.gmra.mrb[0].mxu0 %v1874
        %v1995 = vpop.f32.mrb[0].mxu0
        %v1996 = vadd.f32 %v1911, %v1995
        %v1997 = vpop.f32.mrb[0].mxu0
        %v1998 = vpop.f32.mrb[0].mxu0
        %v1999 = vadd.f32 %v1911, %v1998
        %v2000 = vpop.f32.mrb[0].mxu0
        %2001 = vmatprep.mubr.bf16.mxu0 0
        %2002 = vmatmul.mubr.bf16.gmra.mrb[0].mxu0 %v1875
        %v2003 = vpop.f32.mrb[0].mxu0
        %v2004 = vadd.f32 %v1911, %v2003
        %v2005 = vpop.f32.mrb[0].mxu0
        %v2006 = vpop.f32.mrb[0].mxu0
        %v2007 = vadd.f32 %v1911, %v2006
        %v2008 = vpop.f32.mrb[0].mxu0
        %2009 = vmatprep.mubr.bf16.mxu0 0
        %2010 = vmatmul.mubr.bf16.gmra.mrb[0].mxu0 %v1876
        %v2011 = vpop.f32.mrb[0].mxu0
        %v2012 = vadd.f32 %v1911, %v2011
        %v2013 = vpop.f32.mrb[0].mxu0
        %v2014 = vpop.f32.mrb[0].mxu0
        %v2015 = vadd.f32 %v1911, %v2014
        %v2016 = vpop.f32.mrb[0].mxu0
        %2017 = vmatprep.mubr.bf16.mxu0 0
        %2018 = vmatmul.mubr.bf16.gmra.mrb[0].mxu0 %v1877
        %v2019 = vpop.f32.mrb[0].mxu0
        %v2020 = vadd.f32 %v1911, %v2019
        %v2021 = vpop.f32.mrb[0].mxu0
        %v2022 = vpop.f32.mrb[0].mxu0
        %v2023 = vadd.f32 %v1911, %v2022
        %v2024 = vpop.f32.mrb[0].mxu0
        %2025 = vmatprep.mubr.bf16.mxu0 0
        %2026 = vmatmul.mubr.bf16.gmra.mrb[0].mxu0 %v1878
        %v2027 = vpop.f32.mrb[0].mxu0
        %v2028 = vadd.f32 %v1911, %v2027
        %v2029 = vpop.f32.mrb[0].mxu0
        %v2030 = vpop.f32.mrb[0].mxu0
        %v2031 = vadd.f32 %v1911, %v2030
        %v2032 = vpop.f32.mrb[0].mxu0
        %2033 = vmatprep.mubr.bf16.mxu0 0
        %2034 = vmatmul.mubr.bf16.gmra.mrb[0].mxu0 %v1879
        %v2035 = vpop.f32.mrb[0].mxu0
        %v2036 = vadd.f32 %v1911, %v2035
        %v2037 = vpop.f32.mrb[0].mxu0
        %v2038 = vpop.f32.mrb[0].mxu0
        %v2039 = vadd.f32 %v1911, %v2038
        %v2040 = vpop.f32.mrb[0].mxu0
        %2041 = vmatprep.mubr.bf16.mxu0 0
        %2042 = vmatmul.mubr.bf16.gmra.mrb[0].mxu0 %v1880
        %v2043 = vpop.f32.mrb[0].mxu0
        %v2044 = vadd.f32 %v1911, %v2043
        %v2045 = vpop.f32.mrb[0].mxu0
        %v2046 = vpop.f32.mrb[0].mxu0
        %v2047 = vadd.f32 %v1911, %v2046
        %v2048 = vpop.f32.mrb[0].mxu0
        %2049 = vmatprep.mubr.bf16.mxu0 0
        %2050 = vmatmul.mubr.bf16.gmra.mrb[0].mxu0 %v1881
        %v2051 = vpop.f32.mrb[0].mxu0
        %v2052 = vadd.f32 %v1911, %v2051
        %v2053 = vpop.f32.mrb[0].mxu0
        %v2054 = vpop.f32.mrb[0].mxu0
        %v2055 = vadd.f32 %v1911, %v2054
        %v2056 = vpop.f32.mrb[0].mxu0
        %2057 = vmatprep.mubr.bf16.mxu0 0
        %2058 = vmatmul.mubr.bf16.gmra.mrb[0].mxu0 %v1882
        %v2059 = vpop.f32.mrb[0].mxu0
        %v2060 = vadd.f32 %v1911, %v2059
        %v2061 = vpop.f32.mrb[0].mxu0
        %v2062 = vpop.f32.mrb[0].mxu0
        %v2063 = vadd.f32 %v1911, %v2062
        %v2064 = vpop.f32.mrb[0].mxu0
        %2065 = vmatprep.mubr.bf16.mxu0 0
        %2066 = vmatmul.mubr.bf16.gmra.mrb[0].mxu0 %v1883
        %v2067 = vpop.f32.mrb[0].mxu0
        %v2068 = vadd.f32 %v1911, %v2067
        %v2069 = vpop.f32.mrb[0].mxu0
        %v2070 = vpop.f32.mrb[0].mxu0
        %v2071 = vadd.f32 %v1911, %v2070
        %v2072 = vpop.f32.mrb[0].mxu0
        %2073 = vmatprep.mubr.bf16.mxu0 0
        %2074 = vmatmul.mubr.bf16.gmra.mrb[0].mxu0 %v1884
        %v2075 = vpop.f32.mrb[0].mxu0
        %v2076 = vadd.f32 %v1911, %v2075
        %v2077 = vpop.f32.mrb[0].mxu0
        %v2078 = vpop.f32.mrb[0].mxu0
        %v2079 = vadd.f32 %v1911, %v2078
        %v2080 = vpop.f32.mrb[0].mxu0
        %2081 = vmatprep.mubr.bf16.mxu0 0
        %2082 = vmatmul.mubr.bf16.gmra.mrb[0].mxu0 %v1885
        %v2083 = vpop.f32.mrb[0].mxu0
        %v2084 = vadd.f32 %v1911, %v2083
        %v2085 = vpop.f32.mrb[0].mxu0
        %v2086 = vpop.f32.mrb[0].mxu0
        %v2087 = vadd.f32 %v1911, %v2086
        %v2088 = vpop.f32.mrb[0].mxu0
        %2089 = vmatprep.mubr.bf16.mxu0 0
        %2090 = vmatmul.mubr.bf16.gmra.mrb[0].mxu0 %v1886
        %v2091 = vpop.f32.mrb[0].mxu0
        %v2092 = vadd.f32 %v1911, %v2091
        %v2093 = vpop.f32.mrb[0].mxu0
        %v2094 = vpop.f32.mrb[0].mxu0
        %v2095 = vadd.f32 %v1911, %v2094
        %v2096 = vpop.f32.mrb[0].mxu0
        %2097 = vmatprep.mubr.bf16.mxu0 0
        %2098 = vmatmul.mubr.bf16.gmra.mrb[0].mxu0 %v1887
        %v2099 = vpop.f32.mrb[0].mxu0
        %v2100 = vadd.f32 %v1911, %v2099
        %v2101 = vpop.f32.mrb[0].mxu0
        %v2102 = vpop.f32.mrb[0].mxu0
        %v2103 = vadd.f32 %v1911, %v2102
        %v2104 = vpop.f32.mrb[0].mxu0
        %2105 = vmatprep.mubr.bf16.mxu0 0
        %2106 = vmatmul.mubr.bf16.gmra.mrb[0].mxu0 %v1888
        %v2107 = vpop.f32.mrb[0].mxu0
        %v2108 = vadd.f32 %v1911, %v2107
        %v2109 = vpop.f32.mrb[0].mxu0
        %v2110 = vpop.f32.mrb[0].mxu0
        %v2111 = vadd.f32 %v1911, %v2110
        %v2112 = vpop.f32.mrb[0].mxu0
        %2113 = vmatprep.mubr.bf16.mxu0 0
        %2114 = vmatmul.mubr.bf16.gmra.mrb[0].mxu0 %v1889
        %v2115 = vpop.f32.mrb[0].mxu0
        %v2116 = vadd.f32 %v1911, %v2115
        %v2117 = vpop.f32.mrb[0].mxu0
        %v2118 = vpop.f32.mrb[0].mxu0
        %v2119 = vadd.f32 %v1911, %v2118
        %v2120 = vpop.f32.mrb[0].mxu0
        %2121 = vdwg.mxu0
        %2122 = vst [vmem:[%s285] sm:$0xff] %v1996
        %2123 = vst [vmem:[%s285 + $0x8] sm:$0xff] %v1999
        %2124 = vst [vmem:[%s285 + $0x10] sm:$0xff] %v2004
        %2125 = vst [vmem:[%s285 + $0x18] sm:$0xff] %v2007
        %2126 = vst [vmem:[%s285 + $0x20] sm:$0xff] %v2012
        %2127 = vst [vmem:[%s285 + $0x28] sm:$0xff] %v2015
        %2128 = vst [vmem:[%s285 + $0x30] sm:$0xff] %v2020
        %2129 = vst [vmem:[%s285 + $0x38] sm:$0xff] %v2023
        %2130 = vst [vmem:[%s285 + $0x40] sm:$0xff] %v2028
        %2131 = vst [vmem:[%s285 + $0x48] sm:$0xff] %v2031
        %2132 = vst [vmem:[%s285 + $0x50] sm:$0xff] %v2036
        %2133 = vst [vmem:[%s285 + $0x58] sm:$0xff] %v2039
        %2134 = vst [vmem:[%s285 + $0x60] sm:$0xff] %v2044
        %2135 = vst [vmem:[%s285 + $0x68] sm:$0xff] %v2047
        %2136 = vst [vmem:[%s285 + $0x70] sm:$0xff] %v2052
        %2137 = vst [vmem:[%s285 + $0x78] sm:$0xff] %v2055
        %2138 = vst [vmem:[%s285 + $0x80] sm:$0xff] %v2060
        %2139 = vst [vmem:[%s285 + $0x88] sm:$0xff] %v2063
        %2140 = vst [vmem:[%s285 + $0x90] sm:$0xff] %v2068
        %2141 = vst [vmem:[%s285 + $0x98] sm:$0xff] %v2071
        %2142 = vst [vmem:[%s285 + $0xa0] sm:$0xff] %v2076
        %2143 = vst [vmem:[%s285 + $0xa8] sm:$0xff] %v2079
        %2144 = vst [vmem:[%s285 + $0xb0] sm:$0xff] %v2084
        %2145 = vst [vmem:[%s285 + $0xb8] sm:$0xff] %v2087
        %2146 = vst [vmem:[%s285 + $0xc0] sm:$0xff] %v2092
        %2147 = vst [vmem:[%s285 + $0xc8] sm:$0xff] %v2095
        %2148 = vst [vmem:[%s285 + $0xd0] sm:$0xff] %v2100
        %2149 = vst [vmem:[%s285 + $0xd8] sm:$0xff] %v2103
        %2150 = vst [vmem:[%s285 + $0xe0] sm:$0xff] %v2108
        %2151 = vst [vmem:[%s285 + $0xe8] sm:$0xff] %v2111
        %2152 = vst [vmem:[%s285 + $0xf0] sm:$0xff] %v2116
        %2153 = vst [vmem:[%s285 + $0xf8] sm:$0xff] %v2119
        %s2154 = sand.u32 %s167, 1
        %s2155 = scalar_lea.sflag [#allocation4], %s2154
        %s2156 = sand.u32 %s167, 1
        %s2157 = smul.addr %s2156, 256
        %s2158 = scalar_lea.vmem [#allocation5], %s2157
        // Predicated region
        $region49: #{tpu_custom_call.1} parent=43 // pred_check
          %p2159 = pneg %p177
        $region50: #{tpu_custom_call.1} parent=43 // pred_check_branch
          %2161 = sbr.rel (%p2159) target = $region52
        $region51: #{tpu_custom_call.1} parent=43 // pred_region
          %s2162 = smul.u32 32, %s23
          %s2164 = ssub.s32 4096, 4096
          %2165 = vsyncadd %s2155, %s2164
          %s2166 = smul.addr %s2162, 128
          %s2167 = scalar_lea.hbm %s6, %s2166
          %s2168 = sshll.u32 %s2158, 4
          %s2169 = int_to_ptr.vmem [resolvable:$true] %s2168
          %2174 = dma.vmem_to_hbm [thread:$0]  %s2169, 4096, %s2167, %s2155, 128, 128, 8
        $region52: #{tpu_custom_call.1} parent=43 // pred_fallthru
          _
      $region44: #{tpu_custom_call.1} parent=5 // pred_fallthru
        _
      %p2175 = scmp.le.s32.totalorder 2, %s18
      // Predicated region
      $region53: #{tpu_custom_call.1} parent=5 // pred_check
        %p2176 = pneg %p2175
      $region54: #{tpu_custom_call.1} parent=5 // pred_check_branch
        %2178 = sbr.rel (%p2176) target = $region56
      $region55: #{tpu_custom_call.1} parent=5 // pred_region
        %s2179 = ssub.s32 %s18, 2
        // Predicated region
        $region57: #{tpu_custom_call.1} parent=55 // pred_check
          %p2180 = pneg %p183
        $region58: #{tpu_custom_call.1} parent=55 // pred_check_branch
          %2182 = sbr.rel (%p2180) target = $region60
        $region59: #{tpu_custom_call.1} parent=55 // pred_region
          %s2183 = sand.u32 %s168, 1
          %s2184 = scalar_lea.sflag [#allocation4], %s2183
          %s2185 = sand.u32 %s168, 1
          %s2186 = smul.addr %s2185, 256
          %s2187 = scalar_lea.vmem [#allocation5], %s2186
          %2188 = dma.done %s2184, 4096
        $region60: #{tpu_custom_call.1} parent=55 // pred_fallthru
          _
      $region56: #{tpu_custom_call.1} parent=5 // pred_fallthru
        _
    $region6: #{tpu_custom_call.1} parent=1 // loop_footer
      %s22 = sadd.s32 1, %s18
    $region7: #{tpu_custom_call.1} parent=1 // loop_footer_branch
      %17 = sbr.rel target = $region3
    $region8: #{tpu_custom_call.1} parent=1 // loop_exit
      _
    %2189 = vsyncpa [#allocation3], 1
    %s2190 = scalar_lea.sflag [#allocation3], 1
    %2191 = vsyncpa %s2190, 1
    %2192 = vsyncpa [#allocation4], 1
    %s2193 = scalar_lea.sflag [#allocation4], 1
    %2194 = vsyncpa %s2193, 1

// kernel: tpu_custom_call.1
$region0: #{tpu_custom_call.1}
  #allocation0 [shape = 'u32[]', space=smem, size = 0x4, offset = 0x4, fixed_abs, tag = 'smem constant byte address 0x4 - core index']
  #allocation1 [shape = 'u32[144,128]{1,0:T(1,128)}', space=vmem, size = 0x12000, scoped, tag = 'internal scratch']
  %s0 = inlined_call_operand.hbm [shape: f32[512,128], index: 0, kind: input, shape index: {}]
  %s1 = inlined_call_operand.vmem [shape: bf16[512,64], index: 1, kind: input, shape index: {}]
  %s2 = inlined_call_operand.vmem [shape: bf16[64,128], index: 2, kind: input, shape index: {}]
  %s3 = inlined_call_operand.vmem [shape: f32[1,128], index: 3, kind: input, shape index: {}]
  %s4 = inlined_call_operand.vmem [shape: bf16[128,128], index: 4, kind: input, shape index: {}]
  %s5 = inlined_call_operand.vmem [shape: f32[1,128], index: 5, kind: input, shape index: {}]
  %s6 = inlined_call_operand.hbm [shape: f32[512,128], index: 6, kind: output, shape index: {}]
  %s7 = sld [smem:[#allocation0]]
  $region61: #{tpu_custom_call.1} parent=0
    _
  %s9 = ssub.s32 1, %s7
  %s10 = scalar_select 0, %s9, %s7
  $region1: #{tpu_custom_call.1} parent=0
    #allocation2 [shape = 'u8[262144]{0}', space=vmem, size = 0x40000, scoped, tag = 'input window, operand 0']
    #allocation3 [shape = 's32[2]{0}', space=sflag, size = 0x8, scoped, tag = 'scoped memory for tpu_custom_call.1']
    #allocation4 [shape = 's32[2]{0}', space=sflag, size = 0x8, scoped, tag = 'scoped memory for tpu_custom_call.1']
    #allocation5 [shape = 'u8[262144]{0}', space=vmem, size = 0x40000, scoped, tag = 'output window, operand 0']
    %11 = vsyncpa [#allocation3], 0
    %s12 = scalar_lea.sflag [#allocation3], 1
    %13 = vsyncpa %s12, 0
    %14 = vsyncpa [#allocation4], 0
    %s15 = scalar_lea.sflag [#allocation4], 1
    %16 = vsyncpa %s15, 0
    loop: start=0, step=1, limit=4
    $region2: #{tpu_custom_call.1} parent=1 // loop_pre_header
      _
    $region3: #{tpu_custom_call.1} parent=1 // loop_header
      %s18 = sphi 0, %s22
      %p19 = scmp.ge.s32.totalorder %s18, 4
      %s28 = sphi 0, %s30
      %s31 = sphi 0, %s28
      %s32 = sphi 0, %s31
      %s48 = sphi 0, %s32
      %s54 = sphi 0, %s56
      %s57 = sphi 0, %s54
      %s58 = sphi 0, %s57
      %s74 = sphi 0, %s58
      %s78 = sphi 0, %s78
      %s80 = sphi 0, %s78
      %s81 = sphi 0, %s80
      %s95 = sphi 0, %s81
      %s99 = sphi 0, %s99
      %s101 = sphi 0, %s99
      %s102 = sphi 0, %s101
      %s116 = sphi 0, %s102
      %s120 = sphi 0, %s120
      %s122 = sphi 0, %s120
      %s123 = sphi 0, %s122
      %s137 = sphi 0, %s123
      %s141 = sphi 0, %s141
      %s143 = sphi 0, %s141
      %s144 = sphi 0, %s143
      %s158 = sphi 0, %s144
      %s164 = sphi 0, %s166
      %s167 = sphi 0, %s164
      %s168 = sphi 0, %s167
      %s184 = sphi 0, %s168
    $region4: #{tpu_custom_call.1} parent=1 // loop_header_branch
      %21 = sbr.rel (%p19) target = $region8
    $region5: #{tpu_custom_call.1} parent=1 // loop_body
      %s23 = ssub.s32 %s18, 1
      %s24 = ssub.s32 %s18, 2
      %s25 = sadd.s32 %s18, 1
      %s26 = ssub.s32 %s18, %s25
      %p27 = scmp.eq.s32.totalorder %s26, 0
      %s29 = sadd.s32 %s28, 1
      %s30 = scalar_select %p27, %s28, %s29
      %p33 = pneg %p27
      %p34 = scmp.eq.s32.totalorder %s18, 1
      %p35 = por %p33, %p34
      %p36 = scmp.ne.s32.totalorder %s28, %s31
      %p37 = scmp.eq.s32.totalorder %s18, 0
      %p38 = por %p36, %p37
      %p39 = scmp.ne.s32.totalorder %s28, %s31
      %p40 = scmp.eq.s32.totalorder %s23, 1
      %p41 = por %p39, %p40
      %p42 = scmp.ne.s32.totalorder %s31, %s32
      %p43 = scmp.eq.s32.totalorder %s23, 0
      %p44 = por %p42, %p43
      %p45 = scmp.ne.s32.totalorder %s31, %s32
      %p46 = scmp.eq.s32.totalorder %s24, 1
      %p47 = por %p45, %p46
      %p49 = scmp.ne.s32.totalorder %s32, %s48
      %p50 = scmp.eq.s32.totalorder %s24, 0
      %p51 = por %p49, %p50
      %s52 = ssub.s32 %s18, %s25
      %p53 = scmp.eq.s32.totalorder %s52, 0
      %s55 = sadd.s32 %s54, 1
      %s56 = scalar_select %p53, %s54, %s55
      %p59 = pneg %p53
      %p60 = scmp.eq.s32.totalorder %s18, 1
      %p61 = por %p59, %p60
      %p62 = scmp.ne.s32.totalorder %s54, %s57
      %p63 = scmp.eq.s32.totalorder %s18, 0
      %p64 = por %p62, %p63
      %p65 = scmp.ne.s32.totalorder %s54, %s57
      %p66 = scmp.eq.s32.totalorder %s23, 1
      %p67 = por %p65, %p66
      %p68 = scmp.ne.s32.totalorder %s57, %s58
      %p69 = scmp.eq.s32.totalorder %s23, 0
      %p70 = por %p68, %p69
      %p71 = scmp.ne.s32.totalorder %s57, %s58
      %p72 = scmp.eq.s32.totalorder %s24, 1
      %p73 = por %p71, %p72
      %p75 = scmp.ne.s32.totalorder %s58, %s74
      %p76 = scmp.eq.s32.totalorder %s24, 0
      %p77 = por %p75, %p76
      %s79 = sadd.s32 %s78, 1
      %p82 = scmp.eq.s32.totalorder %s18, 1
      %p83 = scmp.ne.s32.totalorder %s78, %s80
      %p84 = scmp.eq.s32.totalorder %s18, 0
      %p85 = por %p83, %p84
      %p86 = scmp.ne.s32.totalorder %s78, %s80
      %p87 = scmp.eq.s32.totalorder %s23, 1
      %p88 = por %p86, %p87
      %p89 = scmp.ne.s32.totalorder %s80, %s81
      %p90 = scmp.eq.s32.totalorder %s23, 0
      %p91 = por %p89, %p90
      %p92 = scmp.ne.s32.totalorder %s80, %s81
      %p93 = scmp.eq.s32.totalorder %s24, 1
      %p94 = por %p92, %p93
      %p96 = scmp.ne.s32.totalorder %s81, %s95
      %p97 = scmp.eq.s32.totalorder %s24, 0
      %p98 = por %p96, %p97
      %s100 = sadd.s32 %s99, 1
      %p103 = scmp.eq.s32.totalorder %s18, 1
      %p104 = scmp.ne.s32.totalorder %s99, %s101
      %p105 = scmp.eq.s32.totalorder %s18, 0
      %p106 = por %p104, %p105
      %p107 = scmp.ne.s32.totalorder %s99, %s101
      %p108 = scmp.eq.s32.totalorder %s23, 1
      %p109 = por %p107, %p108
      %p110 = scmp.ne.s32.totalorder %s101, %s102
      %p111 = scmp.eq.s32.totalorder %s23, 0
      %p112 = por %p110, %p111
      %p113 = scmp.ne.s32.totalorder %s101, %s102
      %p114 = scmp.eq.s32.totalorder %s24, 1
      %p115 = por %p113, %p114
      %p117 = scmp.ne.s32.totalorder %s102, %s116
      %p118 = scmp.eq.s32.totalorder %s24, 0
      %p119 = por %p117, %p118
      %s121 = sadd.s32 %s120, 1
      %p124 = scmp.eq.s32.totalorder %s18, 1
      %p125 = scmp.ne.s32.totalorder %s120, %s122
      %p126 = scmp.eq.s32.totalorder %s18, 0
      %p127 = por %p125, %p126
      %p128 = scmp.ne.s32.totalorder %s120, %s122
      %p129 = scmp.eq.s32.totalorder %s23, 1
      %p130 = por %p128, %p129
      %p131 = scmp.ne.s32.totalorder %s122, %s123
      %p132 = scmp.eq.s32.totalorder %s23, 0
      %p133 = por %p131, %p132
      %p134 = scmp.ne.s32.totalorder %s122, %s123
      %p135 = scmp.eq.s32.totalorder %s24, 1
      %p136 = por %p134, %p135
      %p138 = scmp.ne.s32.totalorder %s123, %s137
      %p139 = scmp.eq.s32.totalorder %s24, 0
      %p140 = por %p138, %p139
      %s142 = sadd.s32 %s141, 1
      %p145 = scmp.eq.s32.totalorder %s18, 1
      %p146 = scmp.ne.s32.totalorder %s141, %s143
      %p147 = scmp.eq.s32.totalorder %s18, 0
      %p148 = por %p146, %p147
      %p149 = scmp.ne.s32.totalorder %s141, %s143
      %p150 = scmp.eq.s32.totalorder %s23, 1
      %p151 = por %p149, %p150
      %p152 = scmp.ne.s32.totalorder %s143, %s144
      %p153 = scmp.eq.s32.totalorder %s23, 0
      %p154 = por %p152, %p153
      %p155 = scmp.ne.s32.totalorder %s143, %s144
      %p156 = scmp.eq.s32.totalorder %s24, 1
      %p157 = por %p155, %p156
      %p159 = scmp.ne.s32.totalorder %s144, %s158
      %p160 = scmp.eq.s32.totalorder %s24, 0
      %p161 = por %p159, %p160
      %s162 = ssub.s32 %s18, %s25
      %p163 = scmp.eq.s32.totalorder %s162, 0
      %s165 = sadd.s32 %s164, 1
      %s166 = scalar_select %p163, %s164, %s165
      %p169 = pneg %p163
      %p170 = scmp.eq.s32.totalorder %s18, 1
      %p171 = por %p169, %p170
      %p172 = scmp.ne.s32.totalorder %s164, %s167
      %p173 = scmp.eq.s32.totalorder %s18, 0
      %p174 = por %p172, %p173
      %p175 = scmp.ne.s32.totalorder %s164, %s167
      %p176 = scmp.eq.s32.totalorder %s23, 1
      %p177 = por %p175, %p176
      %p178 = scmp.ne.s32.totalorder %s167, %s168
      %p179 = scmp.eq.s32.totalorder %s23, 0
      %p180 = por %p178, %p179
      %p181 = scmp.ne.s32.totalorder %s167, %s168
      %p182 = scmp.eq.s32.totalorder %s24, 1
      %p183 = por %p181, %p182
      %p185 = scmp.ne.s32.totalorder %s168, %s184
      %p186 = scmp.eq.s32.totalorder %s24, 0
      %p187 = por %p185, %p186
      %p188 = scmp.le.s32.totalorder 1, %s18
      %p189 = scmp.lt.s32.totalorder %s18, 3
      %p190 = pnand %p188, %p189
      %p191 = pneg %p190
      // Predicated region
      $region9: #{tpu_custom_call.1} parent=5 // pred_check
        _
      $region10: #{tpu_custom_call.1} parent=5 // pred_check_branch
        %193 = sbr.rel (%p190) target = $region12
      $region11: #{tpu_custom_call.1} parent=5 // pred_region
        %s194 = ssub.s32 %s18, 1
        // Predicated region
        $region13: #{tpu_custom_call.1} parent=11 // pred_check
          %p195 = pneg %p91
        $region14: #{tpu_custom_call.1} parent=11 // pred_check_branch
          %197 = sbr.rel (%p195) target = $region16
        $region15: #{tpu_custom_call.1} parent=11 // pred_region
          _
        $region16: #{tpu_custom_call.1} parent=11 // pred_fallthru
          _
        // Predicated region
        $region17: #{tpu_custom_call.1} parent=11 // pred_check
          %p198 = pneg %p112
        $region18: #{tpu_custom_call.1} parent=11 // pred_check_branch
          %200 = sbr.rel (%p198) target = $region20
        $region19: #{tpu_custom_call.1} parent=11 // pred_region
          _
        $region20: #{tpu_custom_call.1} parent=11 // pred_fallthru
          _
        // Predicated region
        $region21: #{tpu_custom_call.1} parent=11 // pred_check
          %p201 = pneg %p133
        $region22: #{tpu_custom_call.1} parent=11 // pred_check_branch
          %203 = sbr.rel (%p201) target = $region24
        $region23: #{tpu_custom_call.1} parent=11 // pred_region
          _
        $region24: #{tpu_custom_call.1} parent=11 // pred_fallthru
          _
        // Predicated region
        $region25: #{tpu_custom_call.1} parent=11 // pred_check
          %p204 = pneg %p154
        $region26: #{tpu_custom_call.1} parent=11 // pred_check_branch
          %206 = sbr.rel (%p204) target = $region28
        $region27: #{tpu_custom_call.1} parent=11 // pred_region
          _
        $region28: #{tpu_custom_call.1} parent=11 // pred_fallthru
          _
      $region12: #{tpu_custom_call.1} parent=5 // pred_fallthru
        _
      %p207 = scmp.lt.s32.totalorder %s18, 2
      // Predicated region
      $region29: #{tpu_custom_call.1} parent=5 // pred_check
        %p208 = pneg %p207
      $region30: #{tpu_custom_call.1} parent=5 // pred_check_branch
        %210 = sbr.rel (%p208) target = $region32
      $region31: #{tpu_custom_call.1} parent=5 // pred_region
        // Predicated region
        $region33: #{tpu_custom_call.1} parent=31 // pred_check
          %p211 = pneg %p38
        $region34: #{tpu_custom_call.1} parent=31 // pred_check_branch
          %213 = sbr.rel (%p211) target = $region36
        $region35: #{tpu_custom_call.1} parent=31 // pred_region
          %s214 = sand.u32 %s28, 1
          %s215 = scalar_lea.sflag [#allocation3], %s214
          %s216 = sand.u32 %s28, 1
          %s217 = smul.addr %s216, 256
          %s218 = scalar_lea.vmem [#allocation2], %s217
          %s219 = smul.u32 32, %s18
          %s221 = ssub.s32 4096, 4096
          %222 = vsyncadd %s215, %s221
          %s223 = smul.addr %s219, 128
          %s224 = scalar_lea.hbm %s0, %s223
          %s225 = sshll.u32 %s218, 4
          %s226 = int_to_ptr.vmem [resolvable:$true] %s225
          %231 = dma.hbm_to_vmem [thread:$0]  %s224, 4096, %s226, %s215, 128, 128, 8
        $region36: #{tpu_custom_call.1} parent=31 // pred_fallthru
          _
        // Predicated region
        $region37: #{tpu_custom_call.1} parent=31 // pred_check
          %p232 = pneg %p64
        $region38: #{tpu_custom_call.1} parent=31 // pred_check_branch
          %234 = sbr.rel (%p232) target = $region40
        $region39: #{tpu_custom_call.1} parent=31 // pred_region
          %s235 = smul.u32 32, %s18
          %p236 = scmp.lt.s32.totalorder %s235, 63
          %s237 = scalar_select %p236, %s235, 63
          %s238 = smul.addr %s237, 4
          %s239 = scalar_lea.vmem %s1, %s238
          %s240 = smul.u32 32, %s18
        $region40: #{tpu_custom_call.1} parent=31 // pred_fallthru
          _
      $region32: #{tpu_custom_call.1} parent=5 // pred_fallthru
        _
      %p241 = scmp.le.s32.totalorder 1, %s18
      %p242 = scmp.lt.s32.totalorder %s18, 3
      %p243 = pnand %p241, %p242
      %p244 = pneg %p243
      // Predicated region
      $region41: #{tpu_custom_call.1} parent=5 // pred_check
        _
      $region42: #{tpu_custom_call.1} parent=5 // pred_check_branch
        %246 = sbr.rel (%p243) target = $region44
      $region43: #{tpu_custom_call.1} parent=5 // pred_region
        %s247 = ssub.s32 %s18, 1
        %s248 = sand.u32 %s31, 1
        %s249 = scalar_lea.sflag [#allocation3], %s248
        %s250 = sand.u32 %s31, 1
        %s251 = smul.addr %s250, 256
        %s252 = scalar_lea.vmem [#allocation2], %s251
        // Predicated region
        $region45: #{tpu_custom_call.1} parent=43 // pred_check
          %p253 = pneg %p44
        $region46: #{tpu_custom_call.1} parent=43 // pred_check_branch
          %255 = sbr.rel (%p253) target = $region48
        $region47: #{tpu_custom_call.1} parent=43 // pred_region
          %256 = dma.done %s249, 4096
        $region48: #{tpu_custom_call.1} parent=43 // pred_fallthru
          _
        %s257 = sand.u32 %s31, 1
        %s258 = scalar_lea.sflag [#allocation3], %s257
        %s259 = sand.u32 %s31, 1
        %s260 = smul.addr %s259, 256
        %s261 = scalar_lea.vmem [#allocation2], %s260
        %p262 = pneg %p44
        %p263 = pneg %p41
        %s264 = smul.u32 32, %s23
        %p265 = scmp.lt.s32.totalorder %s264, 63
        %s266 = scalar_select %p265, %s264, 63
        %s267 = smul.addr %s266, 4
        %s268 = scalar_lea.vmem %s1, %s267
        %p269 = pneg %p70
        %p270 = pneg %p67
        %p271 = pneg %p91
        %p272 = pneg %p88
        %p273 = pneg %p112
        %p274 = pneg %p109
        %p275 = pneg %p133
        %p276 = pneg %p130
        %p277 = pneg %p154
        %p278 = pneg %p151
        %p279 = pneg %p180
        %p280 = pneg %p177
        %s281 = sand.u32 %s167, 1
        %s282 = scalar_lea.sflag [#allocation4], %s281
        %s283 = sand.u32 %s167, 1
        %s284 = smul.addr %s283, 256
        %s285 = scalar_lea.vmem [#allocation5], %s284
        %s286 = smul.u32 32, %s23
        %s287 = smul.u32 32, %s23
        %p288 = scmp.lt.s32.totalorder %s287, 63
        %s289 = scalar_select %p288, %s287, 63
        %s290 = smul.addr %s289, 4
        %s291 = scalar_lea.vmem %s1, %s290
        %s292 = smul.u32 32, %s23
        %s293 = smul.u32 32, %s23
        %v295 = vld [vmem:[%s252] sm:$0xff]
        %v296 = vld [vmem:[%s252 + $0x8] sm:$0xff]
        %v297 = vld [vmem:[%s252 + $0x10] sm:$0xff]
        %v298 = vld [vmem:[%s252 + $0x18] sm:$0xff]
        %v299 = vld [vmem:[%s252 + $0x20] sm:$0xff]
        %v300 = vld [vmem:[%s252 + $0x28] sm:$0xff]
        %v301 = vld [vmem:[%s252 + $0x30] sm:$0xff]
        %v302 = vld [vmem:[%s252 + $0x38] sm:$0xff]
        %v303 = vld [vmem:[%s252 + $0x40] sm:$0xff]
        %v304 = vld [vmem:[%s252 + $0x48] sm:$0xff]
        %v305 = vld [vmem:[%s252 + $0x50] sm:$0xff]
        %v306 = vld [vmem:[%s252 + $0x58] sm:$0xff]
        %v307 = vld [vmem:[%s252 + $0x60] sm:$0xff]
        %v308 = vld [vmem:[%s252 + $0x68] sm:$0xff]
        %v309 = vld [vmem:[%s252 + $0x70] sm:$0xff]
        %v310 = vld [vmem:[%s252 + $0x78] sm:$0xff]
        %v311 = vld [vmem:[%s252 + $0x80] sm:$0xff]
        %v312 = vld [vmem:[%s252 + $0x88] sm:$0xff]
        %v313 = vld [vmem:[%s252 + $0x90] sm:$0xff]
        %v314 = vld [vmem:[%s252 + $0x98] sm:$0xff]
        %v315 = vld [vmem:[%s252 + $0xa0] sm:$0xff]
        %v316 = vld [vmem:[%s252 + $0xa8] sm:$0xff]
        %v317 = vld [vmem:[%s252 + $0xb0] sm:$0xff]
        %v318 = vld [vmem:[%s252 + $0xb8] sm:$0xff]
        %v319 = vld [vmem:[%s252 + $0xc0] sm:$0xff]
        %v320 = vld [vmem:[%s252 + $0xc8] sm:$0xff]
        %v321 = vld [vmem:[%s252 + $0xd0] sm:$0xff]
        %v322 = vld [vmem:[%s252 + $0xd8] sm:$0xff]
        %v323 = vld [vmem:[%s252 + $0xe0] sm:$0xff]
        %v324 = vld [vmem:[%s252 + $0xe8] sm:$0xff]
        %v325 = vld [vmem:[%s252 + $0xf0] sm:$0xff]
        %v326 = vld [vmem:[%s252 + $0xf8] sm:$0xff]
        %v327 = vld [vmem:[%s291] sm:$0xf]
        %v328 = vld [vmem:[%s291 + $0x4] sm:$0xf]
        %v329 = vld [vmem:[%s291 + $0x8] sm:$0xf]
        %v330 = vld [vmem:[%s291 + $0xc] sm:$0xf]
        %v331 = vld [vmem:[%s291 + $0x10] sm:$0xf]
        %v332 = vld [vmem:[%s291 + $0x14] sm:$0xf]
        %v333 = vld [vmem:[%s291 + $0x18] sm:$0xf]
        %v334 = vld [vmem:[%s291 + $0x1c] sm:$0xf]
        %v335 = vld [vmem:[%s291 + $0x20] sm:$0xf]
        %v336 = vld [vmem:[%s291 + $0x24] sm:$0xf]
        %v337 = vld [vmem:[%s291 + $0x28] sm:$0xf]
        %v338 = vld [vmem:[%s291 + $0x2c] sm:$0xf]
        %v339 = vld [vmem:[%s291 + $0x30] sm:$0xf]
        %v340 = vld [vmem:[%s291 + $0x34] sm:$0xf]
        %v341 = vld [vmem:[%s291 + $0x38] sm:$0xf]
        %v342 = vld [vmem:[%s291 + $0x3c] sm:$0xf]
        %v343 = vld [vmem:[%s291 + $0x40] sm:$0xf]
        %v344 = vld [vmem:[%s291 + $0x44] sm:$0xf]
        %v345 = vld [vmem:[%s291 + $0x48] sm:$0xf]
        %v346 = vld [vmem:[%s291 + $0x4c] sm:$0xf]
        %v347 = vld [vmem:[%s291 + $0x50] sm:$0xf]
        %v348 = vld [vmem:[%s291 + $0x54] sm:$0xf]
        %v349 = vld [vmem:[%s291 + $0x58] sm:$0xf]
        %v350 = vld [vmem:[%s291 + $0x5c] sm:$0xf]
        %v351 = vld [vmem:[%s291 + $0x60] sm:$0xf]
        %v352 = vld [vmem:[%s291 + $0x64] sm:$0xf]
        %v353 = vld [vmem:[%s291 + $0x68] sm:$0xf]
        %v354 = vld [vmem:[%s291 + $0x6c] sm:$0xf]
        %v355 = vld [vmem:[%s291 + $0x70] sm:$0xf]
        %v356 = vld [vmem:[%s291 + $0x74] sm:$0xf]
        %v357 = vld [vmem:[%s291 + $0x78] sm:$0xf]
        %v358 = vld [vmem:[%s291 + $0x7c] sm:$0xf]
        %v359 = vld [vmem:[%s2] sm:$0xf]
        %v360 = vld [vmem:[%s2 + $0x4] sm:$0xf]
        %v361 = vld [vmem:[%s2 + $0x8] sm:$0xf]
        %v362 = vld [vmem:[%s2 + $0xc] sm:$0xf]
        %v363 = vld [vmem:[%s2 + $0x10] sm:$0xf]
        %v364 = vld [vmem:[%s2 + $0x14] sm:$0xf]
        %v365 = vld [vmem:[%s2 + $0x18] sm:$0xf]
        %v366 = vld [vmem:[%s2 + $0x1c] sm:$0xf]
        %v367 = vld [vmem:[%s3] sm:$0x1]
        %v369 = vlaneseq
        %v370 = vshrl.u32 %v369, 7
        %v371 = vsub.s32 0, %v370
        %v372 = vrot.slane %v367, %v371
        %v406 = vunpack.c.l.b16 %v327
        %v407 = vunpack.c.l.b16 %v328
        %v408 = vunpack.c.l.b16 %v329
        %v409 = vunpack.c.l.b16 %v330
        %v410 = vunpack.c.l.b16 %v331
        %v411 = vunpack.c.l.b16 %v332
        %v412 = vunpack.c.l.b16 %v333
        %v413 = vunpack.c.l.b16 %v334
        %v414 = vunpack.c.l.b16 %v335
        %v415 = vunpack.c.l.b16 %v336
        %v416 = vunpack.c.l.b16 %v337
        %v417 = vunpack.c.l.b16 %v338
        %v418 = vunpack.c.l.b16 %v339
        %v419 = vunpack.c.l.b16 %v340
        %v420 = vunpack.c.l.b16 %v341
        %v421 = vunpack.c.l.b16 %v342
        %v422 = vunpack.c.l.b16 %v343
        %v423 = vunpack.c.l.b16 %v344
        %v424 = vunpack.c.l.b16 %v345
        %v425 = vunpack.c.l.b16 %v346
        %v426 = vunpack.c.l.b16 %v347
        %v427 = vunpack.c.l.b16 %v348
        %v428 = vunpack.c.l.b16 %v349
        %v429 = vunpack.c.l.b16 %v350
        %v430 = vunpack.c.l.b16 %v351
        %v431 = vunpack.c.l.b16 %v352
        %v432 = vunpack.c.l.b16 %v353
        %v433 = vunpack.c.l.b16 %v354
        %v434 = vunpack.c.l.b16 %v355
        %v435 = vunpack.c.l.b16 %v356
        %v436 = vunpack.c.l.b16 %v357
        %v437 = vunpack.c.l.b16 %v358
        %v438 = vpack.c.b16 %v407, %v406
        %v439 = vpack.c.b16 %v409, %v408
        %v440 = vpack.c.b16 %v411, %v410
        %v441 = vpack.c.b16 %v413, %v412
        %v442 = vpack.c.b16 %v415, %v414
        %v443 = vpack.c.b16 %v417, %v416
        %v444 = vpack.c.b16 %v419, %v418
        %v445 = vpack.c.b16 %v421, %v420
        %v446 = vpack.c.b16 %v423, %v422
        %v447 = vpack.c.b16 %v425, %v424
        %v448 = vpack.c.b16 %v427, %v426
        %v449 = vpack.c.b16 %v429, %v428
        %v450 = vpack.c.b16 %v431, %v430
        %v451 = vpack.c.b16 %v433, %v432
        %v452 = vpack.c.b16 %v435, %v434
        %v453 = vpack.c.b16 %v437, %v436
        %v462 = vunpack.c.l.b16 %v359
        %v463 = vunpack.c.l.b16 %v360
        %v464 = vunpack.c.l.b16 %v361
        %v465 = vunpack.c.l.b16 %v362
        %v466 = vunpack.c.l.b16 %v363
        %v467 = vunpack.c.l.b16 %v364
        %v468 = vunpack.c.l.b16 %v365
        %v469 = vunpack.c.l.b16 %v366
        %v470 = vpack.c.b16 %v463, %v462
        %v471 = vpack.c.b16 %v465, %v464
        %v472 = vpack.c.b16 %v467, %v466
        %v473 = vpack.c.b16 %v469, %v468
        %vm478 = vcmask 523264
        %v480 = vsel %vm478, %v438, 0
        %v483 = vsel %vm478, %v439, 0
        %v486 = vsel %vm478, %v440, 0
        %v489 = vsel %vm478, %v441, 0
        %v492 = vsel %vm478, %v442, 0
        %v495 = vsel %vm478, %v443, 0
        %v498 = vsel %vm478, %v444, 0
        %v501 = vsel %vm478, %v445, 0
        %v504 = vsel %vm478, %v446, 0
        %v507 = vsel %vm478, %v447, 0
        %v510 = vsel %vm478, %v448, 0
        %v513 = vsel %vm478, %v449, 0
        %v516 = vsel %vm478, %v450, 0
        %v519 = vsel %vm478, %v451, 0
        %v522 = vsel %vm478, %v452, 0
        %v525 = vsel %vm478, %v453, 0
        %527 = vmatprep.subr.bf16.mxu0 0
        %528 = vmatpush1.bf16.msra.mxu0 %v470
        %529 = vmatprep.subr.bf16.mxu0 0
        %530 = vmatpush1.bf16.msra.mxu0 %v471
        %531 = vmatprep.subr.bf16.mxu0 0
        %532 = vmatpush1.bf16.msra.mxu0 %v472
        %533 = vmatprep.subr.bf16.mxu0 0
        %534 = vmatpush1.bf16.msra.mxu0 %v473
        %535 = vmatprep.subr.bf16.mxu0 0
        %536 = vmatpush1.bf16.msra.mxu0 0
        %537 = vmatprep.subr.bf16.mxu0 0
        %538 = vmatpush1.bf16.msra.mxu0 0
        %539 = vmatprep.subr.bf16.mxu0 0
        %540 = vmatpush1.bf16.msra.mxu0 0
        %541 = vmatprep.subr.bf16.mxu0 0
        %542 = vmatpush1.bf16.msra.mxu0 0
        %543 = vmatprep.subr.bf16.mxu0 0
        %544 = vmatpush1.bf16.msra.mxu0 0
        %545 = vmatprep.subr.bf16.mxu0 0
        %546 = vmatpush1.bf16.msra.mxu0 0
        %547 = vmatprep.subr.bf16.mxu0 0
        %548 = vmatpush1.bf16.msra.mxu0 0
        %549 = vmatprep.subr.bf16.mxu0 0
        %550 = vmatpush1.bf16.msra.mxu0 0
        %551 = vmatprep.subr.bf16.mxu0 0
        %552 = vmatpush1.bf16.msra.mxu0 0
        %553 = vmatprep.subr.bf16.mxu0 0
        %554 = vmatpush1.bf16.msra.mxu0 0
        %555 = vmatprep.subr.bf16.mxu0 0
        %556 = vmatpush1.bf16.msra.mxu0 0
        %557 = vmatprep.subr.bf16.mxu0 0
        %558 = vmatpush1.bf16.msra.mxu0 0
        %559 = vmatprep.mubr.bf16.mxu0 0
        %560 = vmatmul.mubr.bf16.gmra.mrb[0].mxu0 %v480
        %v561 = vpop.f32.mrb[0].mxu0
        %v562 = vadd.f32 %v372, %v561
        %v563 = vpop.f32.mrb[0].mxu0
        %v564 = vpop.f32.mrb[0].mxu0
        %v565 = vadd.f32 %v372, %v564
        %v566 = vpop.f32.mrb[0].mxu0
        %567 = vmatprep.mubr.bf16.mxu0 0
        %568 = vmatmul.mubr.bf16.gmra.mrb[0].mxu0 %v483
        %v569 = vpop.f32.mrb[0].mxu0
        %v570 = vadd.f32 %v372, %v569
        %v571 = vpop.f32.mrb[0].mxu0
        %v572 = vpop.f32.mrb[0].mxu0
        %v573 = vadd.f32 %v372, %v572
        %v574 = vpop.f32.mrb[0].mxu0
        %575 = vmatprep.mubr.bf16.mxu0 0
        %576 = vmatmul.mubr.bf16.gmra.mrb[0].mxu0 %v486
        %v577 = vpop.f32.mrb[0].mxu0
        %v578 = vadd.f32 %v372, %v577
        %v579 = vpop.f32.mrb[0].mxu0
        %v580 = vpop.f32.mrb[0].mxu0
        %v581 = vadd.f32 %v372, %v580
        %v582 = vpop.f32.mrb[0].mxu0
        %583 = vmatprep.mubr.bf16.mxu0 0
        %584 = vmatmul.mubr.bf16.gmra.mrb[0].mxu0 %v489
        %v585 = vpop.f32.mrb[0].mxu0
        %v586 = vadd.f32 %v372, %v585
        %v587 = vpop.f32.mrb[0].mxu0
        %v588 = vpop.f32.mrb[0].mxu0
        %v589 = vadd.f32 %v372, %v588
        %v590 = vpop.f32.mrb[0].mxu0
        %591 = vmatprep.mubr.bf16.mxu0 0
        %592 = vmatmul.mubr.bf16.gmra.mrb[0].mxu0 %v492
        %v593 = vpop.f32.mrb[0].mxu0
        %v594 = vadd.f32 %v372, %v593
        %v595 = vpop.f32.mrb[0].mxu0
        %v596 = vpop.f32.mrb[0].mxu0
        %v597 = vadd.f32 %v372, %v596
        %v598 = vpop.f32.mrb[0].mxu0
        %599 = vmatprep.mubr.bf16.mxu0 0
        %600 = vmatmul.mubr.bf16.gmra.mrb[0].mxu0 %v495
        %v601 = vpop.f32.mrb[0].mxu0
        %v602 = vadd.f32 %v372, %v601
        %v603 = vpop.f32.mrb[0].mxu0
        %v604 = vpop.f32.mrb[0].mxu0
        %v605 = vadd.f32 %v372, %v604
        %v606 = vpop.f32.mrb[0].mxu0
        %607 = vmatprep.mubr.bf16.mxu0 0
        %608 = vmatmul.mubr.bf16.gmra.mrb[0].mxu0 %v498
        %v609 = vpop.f32.mrb[0].mxu0
        %v610 = vadd.f32 %v372, %v609
        %v611 = vpop.f32.mrb[0].mxu0
        %v612 = vpop.f32.mrb[0].mxu0
        %v613 = vadd.f32 %v372, %v612
        %v614 = vpop.f32.mrb[0].mxu0
        %615 = vmatprep.mubr.bf16.mxu0 0
        %616 = vmatmul.mubr.bf16.gmra.mrb[0].mxu0 %v501
        %v617 = vpop.f32.mrb[0].mxu0
        %v618 = vadd.f32 %v372, %v617
        %v619 = vpop.f32.mrb[0].mxu0
        %v620 = vpop.f32.mrb[0].mxu0
        %v621 = vadd.f32 %v372, %v620
        %v622 = vpop.f32.mrb[0].mxu0
        %623 = vmatprep.mubr.bf16.mxu0 0
        %624 = vmatmul.mubr.bf16.gmra.mrb[0].mxu0 %v504
        %v625 = vpop.f32.mrb[0].mxu0
        %v626 = vadd.f32 %v372, %v625
        %v627 = vpop.f32.mrb[0].mxu0
        %v628 = vpop.f32.mrb[0].mxu0
        %v629 = vadd.f32 %v372, %v628
        %v630 = vpop.f32.mrb[0].mxu0
        %631 = vmatprep.mubr.bf16.mxu0 0
        %632 = vmatmul.mubr.bf16.gmra.mrb[0].mxu0 %v507
        %v633 = vpop.f32.mrb[0].mxu0
        %v634 = vadd.f32 %v372, %v633
        %v635 = vpop.f32.mrb[0].mxu0
        %v636 = vpop.f32.mrb[0].mxu0
        %v637 = vadd.f32 %v372, %v636
        %v638 = vpop.f32.mrb[0].mxu0
        %639 = vmatprep.mubr.bf16.mxu0 0
        %640 = vmatmul.mubr.bf16.gmra.mrb[0].mxu0 %v510
        %v641 = vpop.f32.mrb[0].mxu0
        %v642 = vadd.f32 %v372, %v641
        %v643 = vpop.f32.mrb[0].mxu0
        %v644 = vpop.f32.mrb[0].mxu0
        %v645 = vadd.f32 %v372, %v644
        %v646 = vpop.f32.mrb[0].mxu0
        %647 = vmatprep.mubr.bf16.mxu0 0
        %648 = vmatmul.mubr.bf16.gmra.mrb[0].mxu0 %v513
        %v649 = vpop.f32.mrb[0].mxu0
        %v650 = vadd.f32 %v372, %v649
        %v651 = vpop.f32.mrb[0].mxu0
        %v652 = vpop.f32.mrb[0].mxu0
        %v653 = vadd.f32 %v372, %v652
        %v654 = vpop.f32.mrb[0].mxu0
        %655 = vmatprep.mubr.bf16.mxu0 0
        %656 = vmatmul.mubr.bf16.gmra.mrb[0].mxu0 %v516
        %v657 = vpop.f32.mrb[0].mxu0
        %v658 = vadd.f32 %v372, %v657
        %v659 = vpop.f32.mrb[0].mxu0
        %v660 = vpop.f32.mrb[0].mxu0
        %v661 = vadd.f32 %v372, %v660
        %v662 = vpop.f32.mrb[0].mxu0
        %663 = vmatprep.mubr.bf16.mxu0 0
        %664 = vmatmul.mubr.bf16.gmra.mrb[0].mxu0 %v519
        %v665 = vpop.f32.mrb[0].mxu0
        %v666 = vadd.f32 %v372, %v665
        %v667 = vpop.f32.mrb[0].mxu0
        %v668 = vpop.f32.mrb[0].mxu0
        %v669 = vadd.f32 %v372, %v668
        %v670 = vpop.f32.mrb[0].mxu0
        %671 = vmatprep.mubr.bf16.mxu0 0
        %672 = vmatmul.mubr.bf16.gmra.mrb[0].mxu0 %v522
        %v673 = vpop.f32.mrb[0].mxu0
        %v674 = vadd.f32 %v372, %v673
        %v675 = vpop.f32.mrb[0].mxu0
        %v676 = vpop.f32.mrb[0].mxu0
        %v677 = vadd.f32 %v372, %v676
        %v678 = vpop.f32.mrb[0].mxu0
        %679 = vmatprep.mubr.bf16.mxu0 0
        %680 = vmatmul.mubr.bf16.gmra.mrb[0].mxu0 %v525
        %v681 = vpop.f32.mrb[0].mxu0
        %v682 = vadd.f32 %v372, %v681
        %v683 = vpop.f32.mrb[0].mxu0
        %v684 = vpop.f32.mrb[0].mxu0
        %v685 = vadd.f32 %v372, %v684
        %v686 = vpop.f32.mrb[0].mxu0
        %687 = vdwg.mxu0
        %688 = vadd.xlane.f32.xlu0 %v295
        %v689 = vpop.xlane.xlu0 %688
        %690 = vadd.xlane.f32.xlu0 %v296
        %v691 = vpop.xlane.xlu0 %690
        %692 = vadd.xlane.f32.xlu0 %v297
        %v693 = vpop.xlane.xlu0 %692
        %694 = vadd.xlane.f32.xlu0 %v298
        %v695 = vpop.xlane.xlu0 %694
        %696 = vadd.xlane.f32.xlu0 %v299
        %v697 = vpop.xlane.xlu0 %696
        %698 = vadd.xlane.f32.xlu0 %v300
        %v699 = vpop.xlane.xlu0 %698
        %700 = vadd.xlane.f32.xlu0 %v301
        %v701 = vpop.xlane.xlu0 %700
        %702 = vadd.xlane.f32.xlu0 %v302
        %v703 = vpop.xlane.xlu0 %702
        %704 = vadd.xlane.f32.xlu0 %v303
        %v705 = vpop.xlane.xlu0 %704
        %706 = vadd.xlane.f32.xlu0 %v304
        %v707 = vpop.xlane.xlu0 %706
        %708 = vadd.xlane.f32.xlu0 %v305
        %v709 = vpop.xlane.xlu0 %708
        %710 = vadd.xlane.f32.xlu0 %v306
        %v711 = vpop.xlane.xlu0 %710
        %712 = vadd.xlane.f32.xlu0 %v307
        %v713 = vpop.xlane.xlu0 %712
        %714 = vadd.xlane.f32.xlu0 %v308
        %v715 = vpop.xlane.xlu0 %714
        %716 = vadd.xlane.f32.xlu0 %v309
        %v717 = vpop.xlane.xlu0 %716
        %718 = vadd.xlane.f32.xlu0 %v310
        %v719 = vpop.xlane.xlu0 %718
        %720 = vadd.xlane.f32.xlu0 %v311
        %v721 = vpop.xlane.xlu0 %720
        %722 = vadd.xlane.f32.xlu0 %v312
        %v723 = vpop.xlane.xlu0 %722
        %724 = vadd.xlane.f32.xlu0 %v313
        %v725 = vpop.xlane.xlu0 %724
        %726 = vadd.xlane.f32.xlu0 %v314
        %v727 = vpop.xlane.xlu0 %726
        %728 = vadd.xlane.f32.xlu0 %v315
        %v729 = vpop.xlane.xlu0 %728
        %730 = vadd.xlane.f32.xlu0 %v316
        %v731 = vpop.xlane.xlu0 %730
        %732 = vadd.xlane.f32.xlu0 %v317
        %v733 = vpop.xlane.xlu0 %732
        %734 = vadd.xlane.f32.xlu0 %v318
        %v735 = vpop.xlane.xlu0 %734
        %736 = vadd.xlane.f32.xlu0 %v319
        %v737 = vpop.xlane.xlu0 %736
        %738 = vadd.xlane.f32.xlu0 %v320
        %v739 = vpop.xlane.xlu0 %738
        %740 = vadd.xlane.f32.xlu0 %v321
        %v741 = vpop.xlane.xlu0 %740
        %742 = vadd.xlane.f32.xlu0 %v322
        %v743 = vpop.xlane.xlu0 %742
        %744 = vadd.xlane.f32.xlu0 %v323
        %v745 = vpop.xlane.xlu0 %744
        %746 = vadd.xlane.f32.xlu0 %v324
        %v747 = vpop.xlane.xlu0 %746
        %748 = vadd.xlane.f32.xlu0 %v325
        %v749 = vpop.xlane.xlu0 %748
        %750 = vadd.xlane.f32.xlu0 %v326
        %v751 = vpop.xlane.xlu0 %750
        %v752 = vrcp.pop 128.0
        %v753 = vmul.f32 %v689, %v752
        %v754 = vmul.f32 %v691, %v752
        %v755 = vmul.f32 %v693, %v752
        %v756 = vmul.f32 %v695, %v752
        %v757 = vmul.f32 %v697, %v752
        %v758 = vmul.f32 %v699, %v752
        %v759 = vmul.f32 %v701, %v752
        %v760 = vmul.f32 %v703, %v752
        %v761 = vmul.f32 %v705, %v752
        %v762 = vmul.f32 %v707, %v752
        %v763 = vmul.f32 %v709, %v752
        %v764 = vmul.f32 %v711, %v752
        %v765 = vmul.f32 %v713, %v752
        %v766 = vmul.f32 %v715, %v752
        %v767 = vmul.f32 %v717, %v752
        %v768 = vmul.f32 %v719, %v752
        %v769 = vmul.f32 %v721, %v752
        %v770 = vmul.f32 %v723, %v752
        %v771 = vmul.f32 %v725, %v752
        %v772 = vmul.f32 %v727, %v752
        %v773 = vmul.f32 %v729, %v752
        %v774 = vmul.f32 %v731, %v752
        %v775 = vmul.f32 %v733, %v752
        %v776 = vmul.f32 %v735, %v752
        %v777 = vmul.f32 %v737, %v752
        %v778 = vmul.f32 %v739, %v752
        %v779 = vmul.f32 %v741, %v752
        %v780 = vmul.f32 %v743, %v752
        %v781 = vmul.f32 %v745, %v752
        %v782 = vmul.f32 %v747, %v752
        %v783 = vmul.f32 %v749, %v752
        %v784 = vmul.f32 %v751, %v752
        %v785 = vsub.f32 %v295, %v753
        %v786 = vsub.f32 %v296, %v754
        %v787 = vsub.f32 %v297, %v755
        %v788 = vsub.f32 %v298, %v756
        %v789 = vsub.f32 %v299, %v757
        %v790 = vsub.f32 %v300, %v758
        %v791 = vsub.f32 %v301, %v759
        %v792 = vsub.f32 %v302, %v760
        %v793 = vsub.f32 %v303, %v761
        %v794 = vsub.f32 %v304, %v762
        %v795 = vsub.f32 %v305, %v763
        %v796 = vsub.f32 %v306, %v764
        %v797 = vsub.f32 %v307, %v765
        %v798 = vsub.f32 %v308, %v766
        %v799 = vsub.f32 %v309, %v767
        %v800 = vsub.f32 %v310, %v768
        %v801 = vsub.f32 %v311, %v769
        %v802 = vsub.f32 %v312, %v770
        %v803 = vsub.f32 %v313, %v771
        %v804 = vsub.f32 %v314, %v772
        %v805 = vsub.f32 %v315, %v773
        %v806 = vsub.f32 %v316, %v774
        %v807 = vsub.f32 %v317, %v775
        %v808 = vsub.f32 %v318, %v776
        %v809 = vsub.f32 %v319, %v777
        %v810 = vsub.f32 %v320, %v778
        %v811 = vsub.f32 %v321, %v779
        %v812 = vsub.f32 %v322, %v780
        %v813 = vsub.f32 %v323, %v781
        %v814 = vsub.f32 %v324, %v782
        %v815 = vsub.f32 %v325, %v783
        %v816 = vsub.f32 %v326, %v784
        %v817 = vmul.f32 %v785, %v785
        %v818 = vmul.f32 %v786, %v786
        %v819 = vmul.f32 %v787, %v787
        %v820 = vmul.f32 %v788, %v788
        %v821 = vmul.f32 %v789, %v789
        %v822 = vmul.f32 %v790, %v790
        %v823 = vmul.f32 %v791, %v791
        %v824 = vmul.f32 %v792, %v792
        %v825 = vmul.f32 %v793, %v793
        %v826 = vmul.f32 %v794, %v794
        %v827 = vmul.f32 %v795, %v795
        %v828 = vmul.f32 %v796, %v796
        %v829 = vmul.f32 %v797, %v797
        %v830 = vmul.f32 %v798, %v798
        %v831 = vmul.f32 %v799, %v799
        %v832 = vmul.f32 %v800, %v800
        %v833 = vmul.f32 %v801, %v801
        %v834 = vmul.f32 %v802, %v802
        %v835 = vmul.f32 %v803, %v803
        %v836 = vmul.f32 %v804, %v804
        %v837 = vmul.f32 %v805, %v805
        %v838 = vmul.f32 %v806, %v806
        %v839 = vmul.f32 %v807, %v807
        %v840 = vmul.f32 %v808, %v808
        %v841 = vmul.f32 %v809, %v809
        %v842 = vmul.f32 %v810, %v810
        %v843 = vmul.f32 %v811, %v811
        %v844 = vmul.f32 %v812, %v812
        %v845 = vmul.f32 %v813, %v813
        %v846 = vmul.f32 %v814, %v814
        %v847 = vmul.f32 %v815, %v815
        %v848 = vmul.f32 %v816, %v816
        %849 = vadd.xlane.f32.xlu0 %v817
        %v850 = vpop.xlane.xlu0 %849
        %851 = vadd.xlane.f32.xlu0 %v818
        %v852 = vpop.xlane.xlu0 %851
        %853 = vadd.xlane.f32.xlu0 %v819
        %v854 = vpop.xlane.xlu0 %853
        %855 = vadd.xlane.f32.xlu0 %v820
        %v856 = vpop.xlane.xlu0 %855
        %857 = vadd.xlane.f32.xlu0 %v821
        %v858 = vpop.xlane.xlu0 %857
        %859 = vadd.xlane.f32.xlu0 %v822
        %v860 = vpop.xlane.xlu0 %859
        %861 = vadd.xlane.f32.xlu0 %v823
        %v862 = vpop.xlane.xlu0 %861
        %863 = vadd.xlane.f32.xlu0 %v824
        %v864 = vpop.xlane.xlu0 %863
        %865 = vadd.xlane.f32.xlu0 %v825
        %v866 = vpop.xlane.xlu0 %865
        %867 = vadd.xlane.f32.xlu0 %v826
        %v868 = vpop.xlane.xlu0 %867
        %869 = vadd.xlane.f32.xlu0 %v827
        %v870 = vpop.xlane.xlu0 %869
        %871 = vadd.xlane.f32.xlu0 %v828
        %v872 = vpop.xlane.xlu0 %871
        %873 = vadd.xlane.f32.xlu0 %v829
        %v874 = vpop.xlane.xlu0 %873
        %875 = vadd.xlane.f32.xlu0 %v830
        %v876 = vpop.xlane.xlu0 %875
        %877 = vadd.xlane.f32.xlu0 %v831
        %v878 = vpop.xlane.xlu0 %877
        %879 = vadd.xlane.f32.xlu0 %v832
        %v880 = vpop.xlane.xlu0 %879
        %881 = vadd.xlane.f32.xlu0 %v833
        %v882 = vpop.xlane.xlu0 %881
        %883 = vadd.xlane.f32.xlu0 %v834
        %v884 = vpop.xlane.xlu0 %883
        %885 = vadd.xlane.f32.xlu0 %v835
        %v886 = vpop.xlane.xlu0 %885
        %887 = vadd.xlane.f32.xlu0 %v836
        %v888 = vpop.xlane.xlu0 %887
        %889 = vadd.xlane.f32.xlu0 %v837
        %v890 = vpop.xlane.xlu0 %889
        %891 = vadd.xlane.f32.xlu0 %v838
        %v892 = vpop.xlane.xlu0 %891
        %893 = vadd.xlane.f32.xlu0 %v839
        %v894 = vpop.xlane.xlu0 %893
        %895 = vadd.xlane.f32.xlu0 %v840
        %v896 = vpop.xlane.xlu0 %895
        %897 = vadd.xlane.f32.xlu0 %v841
        %v898 = vpop.xlane.xlu0 %897
        %899 = vadd.xlane.f32.xlu0 %v842
        %v900 = vpop.xlane.xlu0 %899
        %901 = vadd.xlane.f32.xlu0 %v843
        %v902 = vpop.xlane.xlu0 %901
        %903 = vadd.xlane.f32.xlu0 %v844
        %v904 = vpop.xlane.xlu0 %903
        %905 = vadd.xlane.f32.xlu0 %v845
        %v906 = vpop.xlane.xlu0 %905
        %907 = vadd.xlane.f32.xlu0 %v846
        %v908 = vpop.xlane.xlu0 %907
        %909 = vadd.xlane.f32.xlu0 %v847
        %v910 = vpop.xlane.xlu0 %909
        %911 = vadd.xlane.f32.xlu0 %v848
        %v912 = vpop.xlane.xlu0 %911
        %v913 = vrcp.pop 127.0
        %v914 = vmul.f32 %v850, %v913
        %v915 = vmul.f32 %v852, %v913
        %v916 = vmul.f32 %v854, %v913
        %v917 = vmul.f32 %v856, %v913
        %v918 = vmul.f32 %v858, %v913
        %v919 = vmul.f32 %v860, %v913
        %v920 = vmul.f32 %v862, %v913
        %v921 = vmul.f32 %v864, %v913
        %v922 = vmul.f32 %v866, %v913
        %v923 = vmul.f32 %v868, %v913
        %v924 = vmul.f32 %v870, %v913
        %v925 = vmul.f32 %v872, %v913
        %v926 = vmul.f32 %v874, %v913
        %v927 = vmul.f32 %v876, %v913
        %v928 = vmul.f32 %v878, %v913
        %v929 = vmul.f32 %v880, %v913
        %v930 = vmul.f32 %v882, %v913
        %v931 = vmul.f32 %v884, %v913
        %v932 = vmul.f32 %v886, %v913
        %v933 = vmul.f32 %v888, %v913
        %v934 = vmul.f32 %v890, %v913
        %v935 = vmul.f32 %v892, %v913
        %v936 = vmul.f32 %v894, %v913
        %v937 = vmul.f32 %v896, %v913
        %v938 = vmul.f32 %v898, %v913
        %v939 = vmul.f32 %v900, %v913
        %v940 = vmul.f32 %v902, %v913
        %v941 = vmul.f32 %v904, %v913
        %v942 = vmul.f32 %v906, %v913
        %v943 = vmul.f32 %v908, %v913
        %v944 = vmul.f32 %v910, %v913
        %v945 = vmul.f32 %v912, %v913
        %v946 = vrsqrt.pop %v914
        %v947 = vmul.f32 %v914, %v946
        %vm948 = vcmp.eq.f32.partialorder %v914, inf
        %v949 = vsel %vm948, %v914, %v947
        %vm950 = vcmp.eq.f32.partialorder %v914, 0.0
        %v951 = vand.u32 %v914, 2147483648
        %v952 = vsel %vm950, %v951, %v949
        %v953 = vrsqrt.pop %v915
        %v954 = vmul.f32 %v915, %v953
        %vm955 = vcmp.eq.f32.partialorder %v915, inf
        %v956 = vsel %vm955, %v915, %v954
        %vm957 = vcmp.eq.f32.partialorder %v915, 0.0
        %v958 = vand.u32 %v915, 2147483648
        %v959 = vsel %vm957, %v958, %v956
        %v960 = vrsqrt.pop %v916
        %v961 = vmul.f32 %v916, %v960
        %vm962 = vcmp.eq.f32.partialorder %v916, inf
        %v963 = vsel %vm962, %v916, %v961
        %vm964 = vcmp.eq.f32.partialorder %v916, 0.0
        %v965 = vand.u32 %v916, 2147483648
        %v966 = vsel %vm964, %v965, %v963
        %v967 = vrsqrt.pop %v917
        %v968 = vmul.f32 %v917, %v967
        %vm969 = vcmp.eq.f32.partialorder %v917, inf
        %v970 = vsel %vm969, %v917, %v968
        %vm971 = vcmp.eq.f32.partialorder %v917, 0.0
        %v972 = vand.u32 %v917, 2147483648
        %v973 = vsel %vm971, %v972, %v970
        %v974 = vrsqrt.pop %v918
        %v975 = vmul.f32 %v918, %v974
        %vm976 = vcmp.eq.f32.partialorder %v918, inf
        %v977 = vsel %vm976, %v918, %v975
        %vm978 = vcmp.eq.f32.partialorder %v918, 0.0
        %v979 = vand.u32 %v918, 2147483648
        %v980 = vsel %vm978, %v979, %v977
        %v981 = vrsqrt.pop %v919
        %v982 = vmul.f32 %v919, %v981
        %vm983 = vcmp.eq.f32.partialorder %v919, inf
        %v984 = vsel %vm983, %v919, %v982
        %vm985 = vcmp.eq.f32.partialorder %v919, 0.0
        %v986 = vand.u32 %v919, 2147483648
        %v987 = vsel %vm985, %v986, %v984
        %v988 = vrsqrt.pop %v920
        %v989 = vmul.f32 %v920, %v988
        %vm990 = vcmp.eq.f32.partialorder %v920, inf
        %v991 = vsel %vm990, %v920, %v989
        %vm992 = vcmp.eq.f32.partialorder %v920, 0.0
        %v993 = vand.u32 %v920, 2147483648
        %v994 = vsel %vm992, %v993, %v991
        %v995 = vrsqrt.pop %v921
        %v996 = vmul.f32 %v921, %v995
        %vm997 = vcmp.eq.f32.partialorder %v921, inf
        %v998 = vsel %vm997, %v921, %v996
        %vm999 = vcmp.eq.f32.partialorder %v921, 0.0
        %v1000 = vand.u32 %v921, 2147483648
        %v1001 = vsel %vm999, %v1000, %v998
        %v1002 = vrsqrt.pop %v922
        %v1003 = vmul.f32 %v922, %v1002
        %vm1004 = vcmp.eq.f32.partialorder %v922, inf
        %v1005 = vsel %vm1004, %v922, %v1003
        %vm1006 = vcmp.eq.f32.partialorder %v922, 0.0
        %v1007 = vand.u32 %v922, 2147483648
        %v1008 = vsel %vm1006, %v1007, %v1005
        %v1009 = vrsqrt.pop %v923
        %v1010 = vmul.f32 %v923, %v1009
        %vm1011 = vcmp.eq.f32.partialorder %v923, inf
        %v1012 = vsel %vm1011, %v923, %v1010
        %vm1013 = vcmp.eq.f32.partialorder %v923, 0.0
        %v1014 = vand.u32 %v923, 2147483648
        %v1015 = vsel %vm1013, %v1014, %v1012
        %v1016 = vrsqrt.pop %v924
        %v1017 = vmul.f32 %v924, %v1016
        %vm1018 = vcmp.eq.f32.partialorder %v924, inf
        %v1019 = vsel %vm1018, %v924, %v1017
        %vm1020 = vcmp.eq.f32.partialorder %v924, 0.0
        %v1021 = vand.u32 %v924, 2147483648
        %v1022 = vsel %vm1020, %v1021, %v1019
        %v1023 = vrsqrt.pop %v925
        %v1024 = vmul.f32 %v925, %v1023
        %vm1025 = vcmp.eq.f32.partialorder %v925, inf
        %v1026 = vsel %vm1025, %v925, %v1024
        %vm1027 = vcmp.eq.f32.partialorder %v925, 0.0
        %v1028 = vand.u32 %v925, 2147483648
        %v1029 = vsel %vm1027, %v1028, %v1026
        %v1030 = vrsqrt.pop %v926
        %v1031 = vmul.f32 %v926, %v1030
        %vm1032 = vcmp.eq.f32.partialorder %v926, inf
        %v1033 = vsel %vm1032, %v926, %v1031
        %vm1034 = vcmp.eq.f32.partialorder %v926, 0.0
        %v1035 = vand.u32 %v926, 2147483648
        %v1036 = vsel %vm1034, %v1035, %v1033
        %v1037 = vrsqrt.pop %v927
        %v1038 = vmul.f32 %v927, %v1037
        %vm1039 = vcmp.eq.f32.partialorder %v927, inf
        %v1040 = vsel %vm1039, %v927, %v1038
        %vm1041 = vcmp.eq.f32.partialorder %v927, 0.0
        %v1042 = vand.u32 %v927, 2147483648
        %v1043 = vsel %vm1041, %v1042, %v1040
        %v1044 = vrsqrt.pop %v928
        %v1045 = vmul.f32 %v928, %v1044
        %vm1046 = vcmp.eq.f32.partialorder %v928, inf
        %v1047 = vsel %vm1046, %v928, %v1045
        %vm1048 = vcmp.eq.f32.partialorder %v928, 0.0
        %v1049 = vand.u32 %v928, 2147483648
        %v1050 = vsel %vm1048, %v1049, %v1047
        %v1051 = vrsqrt.pop %v929
        %v1052 = vmul.f32 %v929, %v1051
        %vm1053 = vcmp.eq.f32.partialorder %v929, inf
        %v1054 = vsel %vm1053, %v929, %v1052
        %vm1055 = vcmp.eq.f32.partialorder %v929, 0.0
        %v1056 = vand.u32 %v929, 2147483648
        %v1057 = vsel %vm1055, %v1056, %v1054
        %v1058 = vrsqrt.pop %v930
        %v1059 = vmul.f32 %v930, %v1058
        %vm1060 = vcmp.eq.f32.partialorder %v930, inf
        %v1061 = vsel %vm1060, %v930, %v1059
        %vm1062 = vcmp.eq.f32.partialorder %v930, 0.0
        %v1063 = vand.u32 %v930, 2147483648
        %v1064 = vsel %vm1062, %v1063, %v1061
        %v1065 = vrsqrt.pop %v931
        %v1066 = vmul.f32 %v931, %v1065
        %vm1067 = vcmp.eq.f32.partialorder %v931, inf
        %v1068 = vsel %vm1067, %v931, %v1066
        %vm1069 = vcmp.eq.f32.partialorder %v931, 0.0
        %v1070 = vand.u32 %v931, 2147483648
        %v1071 = vsel %vm1069, %v1070, %v1068
        %v1072 = vrsqrt.pop %v932
        %v1073 = vmul.f32 %v932, %v1072
        %vm1074 = vcmp.eq.f32.partialorder %v932, inf
        %v1075 = vsel %vm1074, %v932, %v1073
        %vm1076 = vcmp.eq.f32.partialorder %v932, 0.0
        %v1077 = vand.u32 %v932, 2147483648
        %v1078 = vsel %vm1076, %v1077, %v1075
        %v1079 = vrsqrt.pop %v933
        %v1080 = vmul.f32 %v933, %v1079
        %vm1081 = vcmp.eq.f32.partialorder %v933, inf
        %v1082 = vsel %vm1081, %v933, %v1080
        %vm1083 = vcmp.eq.f32.partialorder %v933, 0.0
        %v1084 = vand.u32 %v933, 2147483648
        %v1085 = vsel %vm1083, %v1084, %v1082
        %v1086 = vrsqrt.pop %v934
        %v1087 = vmul.f32 %v934, %v1086
        %vm1088 = vcmp.eq.f32.partialorder %v934, inf
        %v1089 = vsel %vm1088, %v934, %v1087
        %vm1090 = vcmp.eq.f32.partialorder %v934, 0.0
        %v1091 = vand.u32 %v934, 2147483648
        %v1092 = vsel %vm1090, %v1091, %v1089
        %v1093 = vrsqrt.pop %v935
        %v1094 = vmul.f32 %v935, %v1093
        %vm1095 = vcmp.eq.f32.partialorder %v935, inf
        %v1096 = vsel %vm1095, %v935, %v1094
        %vm1097 = vcmp.eq.f32.partialorder %v935, 0.0
        %v1098 = vand.u32 %v935, 2147483648
        %v1099 = vsel %vm1097, %v1098, %v1096
        %v1100 = vrsqrt.pop %v936
        %v1101 = vmul.f32 %v936, %v1100
        %vm1102 = vcmp.eq.f32.partialorder %v936, inf
        %v1103 = vsel %vm1102, %v936, %v1101
        %vm1104 = vcmp.eq.f32.partialorder %v936, 0.0
        %v1105 = vand.u32 %v936, 2147483648
        %v1106 = vsel %vm1104, %v1105, %v1103
        %v1107 = vrsqrt.pop %v937
        %v1108 = vmul.f32 %v937, %v1107
        %vm1109 = vcmp.eq.f32.partialorder %v937, inf
        %v1110 = vsel %vm1109, %v937, %v1108
        %vm1111 = vcmp.eq.f32.partialorder %v937, 0.0
        %v1112 = vand.u32 %v937, 2147483648
        %v1113 = vsel %vm1111, %v1112, %v1110
        %v1114 = vrsqrt.pop %v938
        %v1115 = vmul.f32 %v938, %v1114
        %vm1116 = vcmp.eq.f32.partialorder %v938, inf
        %v1117 = vsel %vm1116, %v938, %v1115
        %vm1118 = vcmp.eq.f32.partialorder %v938, 0.0
        %v1119 = vand.u32 %v938, 2147483648
        %v1120 = vsel %vm1118, %v1119, %v1117
        %v1121 = vrsqrt.pop %v939
        %v1122 = vmul.f32 %v939, %v1121
        %vm1123 = vcmp.eq.f32.partialorder %v939, inf
        %v1124 = vsel %vm1123, %v939, %v1122
        %vm1125 = vcmp.eq.f32.partialorder %v939, 0.0
        %v1126 = vand.u32 %v939, 2147483648
        %v1127 = vsel %vm1125, %v1126, %v1124
        %v1128 = vrsqrt.pop %v940
        %v1129 = vmul.f32 %v940, %v1128
        %vm1130 = vcmp.eq.f32.partialorder %v940, inf
        %v1131 = vsel %vm1130, %v940, %v1129
        %vm1132 = vcmp.eq.f32.partialorder %v940, 0.0
        %v1133 = vand.u32 %v940, 2147483648
        %v1134 = vsel %vm1132, %v1133, %v1131
        %v1135 = vrsqrt.pop %v941
        %v1136 = vmul.f32 %v941, %v1135
        %vm1137 = vcmp.eq.f32.partialorder %v941, inf
        %v1138 = vsel %vm1137, %v941, %v1136
        %vm1139 = vcmp.eq.f32.partialorder %v941, 0.0
        %v1140 = vand.u32 %v941, 2147483648
        %v1141 = vsel %vm1139, %v1140, %v1138
        %v1142 = vrsqrt.pop %v942
        %v1143 = vmul.f32 %v942, %v1142
        %vm1144 = vcmp.eq.f32.partialorder %v942, inf
        %v1145 = vsel %vm1144, %v942, %v1143
        %vm1146 = vcmp.eq.f32.partialorder %v942, 0.0
        %v1147 = vand.u32 %v942, 2147483648
        %v1148 = vsel %vm1146, %v1147, %v1145
        %v1149 = vrsqrt.pop %v943
        %v1150 = vmul.f32 %v943, %v1149
        %vm1151 = vcmp.eq.f32.partialorder %v943, inf
        %v1152 = vsel %vm1151, %v943, %v1150
        %vm1153 = vcmp.eq.f32.partialorder %v943, 0.0
        %v1154 = vand.u32 %v943, 2147483648
        %v1155 = vsel %vm1153, %v1154, %v1152
        %v1156 = vrsqrt.pop %v944
        %v1157 = vmul.f32 %v944, %v1156
        %vm1158 = vcmp.eq.f32.partialorder %v944, inf
        %v1159 = vsel %vm1158, %v944, %v1157
        %vm1160 = vcmp.eq.f32.partialorder %v944, 0.0
        %v1161 = vand.u32 %v944, 2147483648
        %v1162 = vsel %vm1160, %v1161, %v1159
        %v1163 = vrsqrt.pop %v945
        %v1164 = vmul.f32 %v945, %v1163
        %vm1165 = vcmp.eq.f32.partialorder %v945, inf
        %v1166 = vsel %vm1165, %v945, %v1164
        %vm1167 = vcmp.eq.f32.partialorder %v945, 0.0
        %v1168 = vand.u32 %v945, 2147483648
        %v1169 = vsel %vm1167, %v1168, %v1166
        %1170 = vadd.xlane.f32.xlu0 %v562
        %v1171 = vpop.xlane.xlu0 %1170
        %1172 = vadd.xlane.f32.xlu0 %v565
        %v1173 = vpop.xlane.xlu0 %1172
        %1174 = vadd.xlane.f32.xlu0 %v570
        %v1175 = vpop.xlane.xlu0 %1174
        %1176 = vadd.xlane.f32.xlu0 %v573
        %v1177 = vpop.xlane.xlu0 %1176
        %1178 = vadd.xlane.f32.xlu0 %v578
        %v1179 = vpop.xlane.xlu0 %1178
        %1180 = vadd.xlane.f32.xlu0 %v581
        %v1181 = vpop.xlane.xlu0 %1180
        %1182 = vadd.xlane.f32.xlu0 %v586
        %v1183 = vpop.xlane.xlu0 %1182
        %1184 = vadd.xlane.f32.xlu0 %v589
        %v1185 = vpop.xlane.xlu0 %1184
        %1186 = vadd.xlane.f32.xlu0 %v594
        %v1187 = vpop.xlane.xlu0 %1186
        %1188 = vadd.xlane.f32.xlu0 %v597
        %v1189 = vpop.xlane.xlu0 %1188
        %1190 = vadd.xlane.f32.xlu0 %v602
        %v1191 = vpop.xlane.xlu0 %1190
        %1192 = vadd.xlane.f32.xlu0 %v605
        %v1193 = vpop.xlane.xlu0 %1192
        %1194 = vadd.xlane.f32.xlu0 %v610
        %v1195 = vpop.xlane.xlu0 %1194
        %1196 = vadd.xlane.f32.xlu0 %v613
        %v1197 = vpop.xlane.xlu0 %1196
        %1198 = vadd.xlane.f32.xlu0 %v618
        %v1199 = vpop.xlane.xlu0 %1198
        %1200 = vadd.xlane.f32.xlu0 %v621
        %v1201 = vpop.xlane.xlu0 %1200
        %1202 = vadd.xlane.f32.xlu0 %v626
        %v1203 = vpop.xlane.xlu0 %1202
        %1204 = vadd.xlane.f32.xlu0 %v629
        %v1205 = vpop.xlane.xlu0 %1204
        %1206 = vadd.xlane.f32.xlu0 %v634
        %v1207 = vpop.xlane.xlu0 %1206
        %1208 = vadd.xlane.f32.xlu0 %v637
        %v1209 = vpop.xlane.xlu0 %1208
        %1210 = vadd.xlane.f32.xlu0 %v642
        %v1211 = vpop.xlane.xlu0 %1210
        %1212 = vadd.xlane.f32.xlu0 %v645
        %v1213 = vpop.xlane.xlu0 %1212
        %1214 = vadd.xlane.f32.xlu0 %v650
        %v1215 = vpop.xlane.xlu0 %1214
        %1216 = vadd.xlane.f32.xlu0 %v653
        %v1217 = vpop.xlane.xlu0 %1216
        %1218 = vadd.xlane.f32.xlu0 %v658
        %v1219 = vpop.xlane.xlu0 %1218
        %1220 = vadd.xlane.f32.xlu0 %v661
        %v1221 = vpop.xlane.xlu0 %1220
        %1222 = vadd.xlane.f32.xlu0 %v666
        %v1223 = vpop.xlane.xlu0 %1222
        %1224 = vadd.xlane.f32.xlu0 %v669
        %v1225 = vpop.xlane.xlu0 %1224
        %1226 = vadd.xlane.f32.xlu0 %v674
        %v1227 = vpop.xlane.xlu0 %1226
        %1228 = vadd.xlane.f32.xlu0 %v677
        %v1229 = vpop.xlane.xlu0 %1228
        %1230 = vadd.xlane.f32.xlu0 %v682
        %v1231 = vpop.xlane.xlu0 %1230
        %1232 = vadd.xlane.f32.xlu0 %v685
        %v1233 = vpop.xlane.xlu0 %1232
        %v1234 = vmul.f32 %v1171, %v752
        %v1235 = vmul.f32 %v1173, %v752
        %v1236 = vmul.f32 %v1175, %v752
        %v1237 = vmul.f32 %v1177, %v752
        %v1238 = vmul.f32 %v1179, %v752
        %v1239 = vmul.f32 %v1181, %v752
        %v1240 = vmul.f32 %v1183, %v752
        %v1241 = vmul.f32 %v1185, %v752
        %v1242 = vmul.f32 %v1187, %v752
        %v1243 = vmul.f32 %v1189, %v752
        %v1244 = vmul.f32 %v1191, %v752
        %v1245 = vmul.f32 %v1193, %v752
        %v1246 = vmul.f32 %v1195, %v752
        %v1247 = vmul.f32 %v1197, %v752
        %v1248 = vmul.f32 %v1199, %v752
        %v1249 = vmul.f32 %v1201, %v752
        %v1250 = vmul.f32 %v1203, %v752
        %v1251 = vmul.f32 %v1205, %v752
        %v1252 = vmul.f32 %v1207, %v752
        %v1253 = vmul.f32 %v1209, %v752
        %v1254 = vmul.f32 %v1211, %v752
        %v1255 = vmul.f32 %v1213, %v752
        %v1256 = vmul.f32 %v1215, %v752
        %v1257 = vmul.f32 %v1217, %v752
        %v1258 = vmul.f32 %v1219, %v752
        %v1259 = vmul.f32 %v1221, %v752
        %v1260 = vmul.f32 %v1223, %v752
        %v1261 = vmul.f32 %v1225, %v752
        %v1262 = vmul.f32 %v1227, %v752
        %v1263 = vmul.f32 %v1229, %v752
        %v1264 = vmul.f32 %v1231, %v752
        %v1265 = vmul.f32 %v1233, %v752
        %v1266 = vsub.f32 %v562, %v1234
        %v1267 = vsub.f32 %v565, %v1235
        %v1268 = vsub.f32 %v570, %v1236
        %v1269 = vsub.f32 %v573, %v1237
        %v1270 = vsub.f32 %v578, %v1238
        %v1271 = vsub.f32 %v581, %v1239
        %v1272 = vsub.f32 %v586, %v1240
        %v1273 = vsub.f32 %v589, %v1241
        %v1274 = vsub.f32 %v594, %v1242
        %v1275 = vsub.f32 %v597, %v1243
        %v1276 = vsub.f32 %v602, %v1244
        %v1277 = vsub.f32 %v605, %v1245
        %v1278 = vsub.f32 %v610, %v1246
        %v1279 = vsub.f32 %v613, %v1247
        %v1280 = vsub.f32 %v618, %v1248
        %v1281 = vsub.f32 %v621, %v1249
        %v1282 = vsub.f32 %v626, %v1250
        %v1283 = vsub.f32 %v629, %v1251
        %v1284 = vsub.f32 %v634, %v1252
        %v1285 = vsub.f32 %v637, %v1253
        %v1286 = vsub.f32 %v642, %v1254
        %v1287 = vsub.f32 %v645, %v1255
        %v1288 = vsub.f32 %v650, %v1256
        %v1289 = vsub.f32 %v653, %v1257
        %v1290 = vsub.f32 %v658, %v1258
        %v1291 = vsub.f32 %v661, %v1259
        %v1292 = vsub.f32 %v666, %v1260
        %v1293 = vsub.f32 %v669, %v1261
        %v1294 = vsub.f32 %v674, %v1262
        %v1295 = vsub.f32 %v677, %v1263
        %v1296 = vsub.f32 %v682, %v1264
        %v1297 = vsub.f32 %v685, %v1265
        %v1298 = vmul.f32 %v1266, %v1266
        %v1299 = vmul.f32 %v1267, %v1267
        %v1300 = vmul.f32 %v1268, %v1268
        %v1301 = vmul.f32 %v1269, %v1269
        %v1302 = vmul.f32 %v1270, %v1270
        %v1303 = vmul.f32 %v1271, %v1271
        %v1304 = vmul.f32 %v1272, %v1272
        %v1305 = vmul.f32 %v1273, %v1273
        %v1306 = vmul.f32 %v1274, %v1274
        %v1307 = vmul.f32 %v1275, %v1275
        %v1308 = vmul.f32 %v1276, %v1276
        %v1309 = vmul.f32 %v1277, %v1277
        %v1310 = vmul.f32 %v1278, %v1278
        %v1311 = vmul.f32 %v1279, %v1279
        %v1312 = vmul.f32 %v1280, %v1280
        %v1313 = vmul.f32 %v1281, %v1281
        %v1314 = vmul.f32 %v1282, %v1282
        %v1315 = vmul.f32 %v1283, %v1283
        %v1316 = vmul.f32 %v1284, %v1284
        %v1317 = vmul.f32 %v1285, %v1285
        %v1318 = vmul.f32 %v1286, %v1286
        %v1319 = vmul.f32 %v1287, %v1287
        %v1320 = vmul.f32 %v1288, %v1288
        %v1321 = vmul.f32 %v1289, %v1289
        %v1322 = vmul.f32 %v1290, %v1290
        %v1323 = vmul.f32 %v1291, %v1291
        %v1324 = vmul.f32 %v1292, %v1292
        %v1325 = vmul.f32 %v1293, %v1293
        %v1326 = vmul.f32 %v1294, %v1294
        %v1327 = vmul.f32 %v1295, %v1295
        %v1328 = vmul.f32 %v1296, %v1296
        %v1329 = vmul.f32 %v1297, %v1297
        %1330 = vadd.xlane.f32.xlu0 %v1298
        %v1331 = vpop.xlane.xlu0 %1330
        %1332 = vadd.xlane.f32.xlu0 %v1299
        %v1333 = vpop.xlane.xlu0 %1332
        %1334 = vadd.xlane.f32.xlu0 %v1300
        %v1335 = vpop.xlane.xlu0 %1334
        %1336 = vadd.xlane.f32.xlu0 %v1301
        %v1337 = vpop.xlane.xlu0 %1336
        %1338 = vadd.xlane.f32.xlu0 %v1302
        %v1339 = vpop.xlane.xlu0 %1338
        %1340 = vadd.xlane.f32.xlu0 %v1303
        %v1341 = vpop.xlane.xlu0 %1340
        %1342 = vadd.xlane.f32.xlu0 %v1304
        %v1343 = vpop.xlane.xlu0 %1342
        %1344 = vadd.xlane.f32.xlu0 %v1305
        %v1345 = vpop.xlane.xlu0 %1344
        %1346 = vadd.xlane.f32.xlu0 %v1306
        %v1347 = vpop.xlane.xlu0 %1346
        %1348 = vadd.xlane.f32.xlu0 %v1307
        %v1349 = vpop.xlane.xlu0 %1348
        %1350 = vadd.xlane.f32.xlu0 %v1308
        %v1351 = vpop.xlane.xlu0 %1350
        %1352 = vadd.xlane.f32.xlu0 %v1309
        %v1353 = vpop.xlane.xlu0 %1352
        %1354 = vadd.xlane.f32.xlu0 %v1310
        %v1355 = vpop.xlane.xlu0 %1354
        %1356 = vadd.xlane.f32.xlu0 %v1311
        %v1357 = vpop.xlane.xlu0 %1356
        %1358 = vadd.xlane.f32.xlu0 %v1312
        %v1359 = vpop.xlane.xlu0 %1358
        %1360 = vadd.xlane.f32.xlu0 %v1313
        %v1361 = vpop.xlane.xlu0 %1360
        %1362 = vadd.xlane.f32.xlu0 %v1314
        %v1363 = vpop.xlane.xlu0 %1362
        %1364 = vadd.xlane.f32.xlu0 %v1315
        %v1365 = vpop.xlane.xlu0 %1364
        %1366 = vadd.xlane.f32.xlu0 %v1316
        %v1367 = vpop.xlane.xlu0 %1366
        %1368 = vadd.xlane.f32.xlu0 %v1317
        %v1369 = vpop.xlane.xlu0 %1368
        %1370 = vadd.xlane.f32.xlu0 %v1318
        %v1371 = vpop.xlane.xlu0 %1370
        %1372 = vadd.xlane.f32.xlu0 %v1319
        %v1373 = vpop.xlane.xlu0 %1372
        %1374 = vadd.xlane.f32.xlu0 %v1320
        %v1375 = vpop.xlane.xlu0 %1374
        %1376 = vadd.xlane.f32.xlu0 %v1321
        %v1377 = vpop.xlane.xlu0 %1376
        %1378 = vadd.xlane.f32.xlu0 %v1322
        %v1379 = vpop.xlane.xlu0 %1378
        %1380 = vadd.xlane.f32.xlu0 %v1323
        %v1381 = vpop.xlane.xlu0 %1380
        %1382 = vadd.xlane.f32.xlu0 %v1324
        %v1383 = vpop.xlane.xlu0 %1382
        %1384 = vadd.xlane.f32.xlu0 %v1325
        %v1385 = vpop.xlane.xlu0 %1384
        %1386 = vadd.xlane.f32.xlu0 %v1326
        %v1387 = vpop.xlane.xlu0 %1386
        %1388 = vadd.xlane.f32.xlu0 %v1327
        %v1389 = vpop.xlane.xlu0 %1388
        %1390 = vadd.xlane.f32.xlu0 %v1328
        %v1391 = vpop.xlane.xlu0 %1390
        %1392 = vadd.xlane.f32.xlu0 %v1329
        %v1393 = vpop.xlane.xlu0 %1392
        %v1394 = vmul.f32 %v1331, %v913
        %v1395 = vmul.f32 %v1333, %v913
        %v1396 = vmul.f32 %v1335, %v913
        %v1397 = vmul.f32 %v1337, %v913
        %v1398 = vmul.f32 %v1339, %v913
        %v1399 = vmul.f32 %v1341, %v913
        %v1400 = vmul.f32 %v1343, %v913
        %v1401 = vmul.f32 %v1345, %v913
        %v1402 = vmul.f32 %v1347, %v913
        %v1403 = vmul.f32 %v1349, %v913
        %v1404 = vmul.f32 %v1351, %v913
        %v1405 = vmul.f32 %v1353, %v913
        %v1406 = vmul.f32 %v1355, %v913
        %v1407 = vmul.f32 %v1357, %v913
        %v1408 = vmul.f32 %v1359, %v913
        %v1409 = vmul.f32 %v1361, %v913
        %v1410 = vmul.f32 %v1363, %v913
        %v1411 = vmul.f32 %v1365, %v913
        %v1412 = vmul.f32 %v1367, %v913
        %v1413 = vmul.f32 %v1369, %v913
        %v1414 = vmul.f32 %v1371, %v913
        %v1415 = vmul.f32 %v1373, %v913
        %v1416 = vmul.f32 %v1375, %v913
        %v1417 = vmul.f32 %v1377, %v913
        %v1418 = vmul.f32 %v1379, %v913
        %v1419 = vmul.f32 %v1381, %v913
        %v1420 = vmul.f32 %v1383, %v913
        %v1421 = vmul.f32 %v1385, %v913
        %v1422 = vmul.f32 %v1387, %v913
        %v1423 = vmul.f32 %v1389, %v913
        %v1424 = vmul.f32 %v1391, %v913
        %v1425 = vmul.f32 %v1393, %v913
        %v1426 = vrsqrt.pop %v1394
        %v1427 = vmul.f32 %v1394, %v1426
        %vm1428 = vcmp.eq.f32.partialorder %v1394, inf
        %v1429 = vsel %vm1428, %v1394, %v1427
        %vm1430 = vcmp.eq.f32.partialorder %v1394, 0.0
        %v1431 = vand.u32 %v1394, 2147483648
        %v1432 = vsel %vm1430, %v1431, %v1429
        %v1433 = vrsqrt.pop %v1395
        %v1434 = vmul.f32 %v1395, %v1433
        %vm1435 = vcmp.eq.f32.partialorder %v1395, inf
        %v1436 = vsel %vm1435, %v1395, %v1434
        %vm1437 = vcmp.eq.f32.partialorder %v1395, 0.0
        %v1438 = vand.u32 %v1395, 2147483648
        %v1439 = vsel %vm1437, %v1438, %v1436
        %v1440 = vrsqrt.pop %v1396
        %v1441 = vmul.f32 %v1396, %v1440
        %vm1442 = vcmp.eq.f32.partialorder %v1396, inf
        %v1443 = vsel %vm1442, %v1396, %v1441
        %vm1444 = vcmp.eq.f32.partialorder %v1396, 0.0
        %v1445 = vand.u32 %v1396, 2147483648
        %v1446 = vsel %vm1444, %v1445, %v1443
        %v1447 = vrsqrt.pop %v1397
        %v1448 = vmul.f32 %v1397, %v1447
        %vm1449 = vcmp.eq.f32.partialorder %v1397, inf
        %v1450 = vsel %vm1449, %v1397, %v1448
        %vm1451 = vcmp.eq.f32.partialorder %v1397, 0.0
        %v1452 = vand.u32 %v1397, 2147483648
        %v1453 = vsel %vm1451, %v1452, %v1450
        %v1454 = vrsqrt.pop %v1398
        %v1455 = vmul.f32 %v1398, %v1454
        %vm1456 = vcmp.eq.f32.partialorder %v1398, inf
        %v1457 = vsel %vm1456, %v1398, %v1455
        %vm1458 = vcmp.eq.f32.partialorder %v1398, 0.0
        %v1459 = vand.u32 %v1398, 2147483648
        %v1460 = vsel %vm1458, %v1459, %v1457
        %v1461 = vrsqrt.pop %v1399
        %v1462 = vmul.f32 %v1399, %v1461
        %vm1463 = vcmp.eq.f32.partialorder %v1399, inf
        %v1464 = vsel %vm1463, %v1399, %v1462
        %vm1465 = vcmp.eq.f32.partialorder %v1399, 0.0
        %v1466 = vand.u32 %v1399, 2147483648
        %v1467 = vsel %vm1465, %v1466, %v1464
        %v1468 = vrsqrt.pop %v1400
        %v1469 = vmul.f32 %v1400, %v1468
        %vm1470 = vcmp.eq.f32.partialorder %v1400, inf
        %v1471 = vsel %vm1470, %v1400, %v1469
        %vm1472 = vcmp.eq.f32.partialorder %v1400, 0.0
        %v1473 = vand.u32 %v1400, 2147483648
        %v1474 = vsel %vm1472, %v1473, %v1471
        %v1475 = vrsqrt.pop %v1401
        %v1476 = vmul.f32 %v1401, %v1475
        %vm1477 = vcmp.eq.f32.partialorder %v1401, inf
        %v1478 = vsel %vm1477, %v1401, %v1476
        %vm1479 = vcmp.eq.f32.partialorder %v1401, 0.0
        %v1480 = vand.u32 %v1401, 2147483648
        %v1481 = vsel %vm1479, %v1480, %v1478
        %v1482 = vrsqrt.pop %v1402
        %v1483 = vmul.f32 %v1402, %v1482
        %vm1484 = vcmp.eq.f32.partialorder %v1402, inf
        %v1485 = vsel %vm1484, %v1402, %v1483
        %vm1486 = vcmp.eq.f32.partialorder %v1402, 0.0
        %v1487 = vand.u32 %v1402, 2147483648
        %v1488 = vsel %vm1486, %v1487, %v1485
        %v1489 = vrsqrt.pop %v1403
        %v1490 = vmul.f32 %v1403, %v1489
        %vm1491 = vcmp.eq.f32.partialorder %v1403, inf
        %v1492 = vsel %vm1491, %v1403, %v1490
        %vm1493 = vcmp.eq.f32.partialorder %v1403, 0.0
        %v1494 = vand.u32 %v1403, 2147483648
        %v1495 = vsel %vm1493, %v1494, %v1492
        %v1496 = vrsqrt.pop %v1404
        %v1497 = vmul.f32 %v1404, %v1496
        %vm1498 = vcmp.eq.f32.partialorder %v1404, inf
        %v1499 = vsel %vm1498, %v1404, %v1497
        %vm1500 = vcmp.eq.f32.partialorder %v1404, 0.0
        %v1501 = vand.u32 %v1404, 2147483648
        %v1502 = vsel %vm1500, %v1501, %v1499
        %v1503 = vrsqrt.pop %v1405
        %v1504 = vmul.f32 %v1405, %v1503
        %vm1505 = vcmp.eq.f32.partialorder %v1405, inf
        %v1506 = vsel %vm1505, %v1405, %v1504
        %vm1507 = vcmp.eq.f32.partialorder %v1405, 0.0
        %v1508 = vand.u32 %v1405, 2147483648
        %v1509 = vsel %vm1507, %v1508, %v1506
        %v1510 = vrsqrt.pop %v1406
        %v1511 = vmul.f32 %v1406, %v1510
        %vm1512 = vcmp.eq.f32.partialorder %v1406, inf
        %v1513 = vsel %vm1512, %v1406, %v1511
        %vm1514 = vcmp.eq.f32.partialorder %v1406, 0.0
        %v1515 = vand.u32 %v1406, 2147483648
        %v1516 = vsel %vm1514, %v1515, %v1513
        %v1517 = vrsqrt.pop %v1407
        %v1518 = vmul.f32 %v1407, %v1517
        %vm1519 = vcmp.eq.f32.partialorder %v1407, inf
        %v1520 = vsel %vm1519, %v1407, %v1518
        %vm1521 = vcmp.eq.f32.partialorder %v1407, 0.0
        %v1522 = vand.u32 %v1407, 2147483648
        %v1523 = vsel %vm1521, %v1522, %v1520
        %v1524 = vrsqrt.pop %v1408
        %v1525 = vmul.f32 %v1408, %v1524
        %vm1526 = vcmp.eq.f32.partialorder %v1408, inf
        %v1527 = vsel %vm1526, %v1408, %v1525
        %vm1528 = vcmp.eq.f32.partialorder %v1408, 0.0
        %v1529 = vand.u32 %v1408, 2147483648
        %v1530 = vsel %vm1528, %v1529, %v1527
        %v1531 = vrsqrt.pop %v1409
        %v1532 = vmul.f32 %v1409, %v1531
        %vm1533 = vcmp.eq.f32.partialorder %v1409, inf
        %v1534 = vsel %vm1533, %v1409, %v1532
        %vm1535 = vcmp.eq.f32.partialorder %v1409, 0.0
        %v1536 = vand.u32 %v1409, 2147483648
        %v1537 = vsel %vm1535, %v1536, %v1534
        %v1538 = vrsqrt.pop %v1410
        %v1539 = vmul.f32 %v1410, %v1538
        %vm1540 = vcmp.eq.f32.partialorder %v1410, inf
        %v1541 = vsel %vm1540, %v1410, %v1539
        %vm1542 = vcmp.eq.f32.partialorder %v1410, 0.0
        %v1543 = vand.u32 %v1410, 2147483648
        %v1544 = vsel %vm1542, %v1543, %v1541
        %v1545 = vrsqrt.pop %v1411
        %v1546 = vmul.f32 %v1411, %v1545
        %vm1547 = vcmp.eq.f32.partialorder %v1411, inf
        %v1548 = vsel %vm1547, %v1411, %v1546
        %vm1549 = vcmp.eq.f32.partialorder %v1411, 0.0
        %v1550 = vand.u32 %v1411, 2147483648
        %v1551 = vsel %vm1549, %v1550, %v1548
        %v1552 = vrsqrt.pop %v1412
        %v1553 = vmul.f32 %v1412, %v1552
        %vm1554 = vcmp.eq.f32.partialorder %v1412, inf
        %v1555 = vsel %vm1554, %v1412, %v1553
        %vm1556 = vcmp.eq.f32.partialorder %v1412, 0.0
        %v1557 = vand.u32 %v1412, 2147483648
        %v1558 = vsel %vm1556, %v1557, %v1555
        %v1559 = vrsqrt.pop %v1413
        %v1560 = vmul.f32 %v1413, %v1559
        %vm1561 = vcmp.eq.f32.partialorder %v1413, inf
        %v1562 = vsel %vm1561, %v1413, %v1560
        %vm1563 = vcmp.eq.f32.partialorder %v1413, 0.0
        %v1564 = vand.u32 %v1413, 2147483648
        %v1565 = vsel %vm1563, %v1564, %v1562
        %v1566 = vrsqrt.pop %v1414
        %v1567 = vmul.f32 %v1414, %v1566
        %vm1568 = vcmp.eq.f32.partialorder %v1414, inf
        %v1569 = vsel %vm1568, %v1414, %v1567
        %vm1570 = vcmp.eq.f32.partialorder %v1414, 0.0
        %v1571 = vand.u32 %v1414, 2147483648
        %v1572 = vsel %vm1570, %v1571, %v1569
        %v1573 = vrsqrt.pop %v1415
        %v1574 = vmul.f32 %v1415, %v1573
        %vm1575 = vcmp.eq.f32.partialorder %v1415, inf
        %v1576 = vsel %vm1575, %v1415, %v1574
        %vm1577 = vcmp.eq.f32.partialorder %v1415, 0.0
        %v1578 = vand.u32 %v1415, 2147483648
        %v1579 = vsel %vm1577, %v1578, %v1576
        %v1580 = vrsqrt.pop %v1416
        %v1581 = vmul.f32 %v1416, %v1580
        %vm1582 = vcmp.eq.f32.partialorder %v1416, inf
        %v1583 = vsel %vm1582, %v1416, %v1581
        %vm1584 = vcmp.eq.f32.partialorder %v1416, 0.0
        %v1585 = vand.u32 %v1416, 2147483648
        %v1586 = vsel %vm1584, %v1585, %v1583
        %v1587 = vrsqrt.pop %v1417
        %v1588 = vmul.f32 %v1417, %v1587
        %vm1589 = vcmp.eq.f32.partialorder %v1417, inf
        %v1590 = vsel %vm1589, %v1417, %v1588
        %vm1591 = vcmp.eq.f32.partialorder %v1417, 0.0
        %v1592 = vand.u32 %v1417, 2147483648
        %v1593 = vsel %vm1591, %v1592, %v1590
        %v1594 = vrsqrt.pop %v1418
        %v1595 = vmul.f32 %v1418, %v1594
        %vm1596 = vcmp.eq.f32.partialorder %v1418, inf
        %v1597 = vsel %vm1596, %v1418, %v1595
        %vm1598 = vcmp.eq.f32.partialorder %v1418, 0.0
        %v1599 = vand.u32 %v1418, 2147483648
        %v1600 = vsel %vm1598, %v1599, %v1597
        %v1601 = vrsqrt.pop %v1419
        %v1602 = vmul.f32 %v1419, %v1601
        %vm1603 = vcmp.eq.f32.partialorder %v1419, inf
        %v1604 = vsel %vm1603, %v1419, %v1602
        %vm1605 = vcmp.eq.f32.partialorder %v1419, 0.0
        %v1606 = vand.u32 %v1419, 2147483648
        %v1607 = vsel %vm1605, %v1606, %v1604
        %v1608 = vrsqrt.pop %v1420
        %v1609 = vmul.f32 %v1420, %v1608
        %vm1610 = vcmp.eq.f32.partialorder %v1420, inf
        %v1611 = vsel %vm1610, %v1420, %v1609
        %vm1612 = vcmp.eq.f32.partialorder %v1420, 0.0
        %v1613 = vand.u32 %v1420, 2147483648
        %v1614 = vsel %vm1612, %v1613, %v1611
        %v1615 = vrsqrt.pop %v1421
        %v1616 = vmul.f32 %v1421, %v1615
        %vm1617 = vcmp.eq.f32.partialorder %v1421, inf
        %v1618 = vsel %vm1617, %v1421, %v1616
        %vm1619 = vcmp.eq.f32.partialorder %v1421, 0.0
        %v1620 = vand.u32 %v1421, 2147483648
        %v1621 = vsel %vm1619, %v1620, %v1618
        %v1622 = vrsqrt.pop %v1422
        %v1623 = vmul.f32 %v1422, %v1622
        %vm1624 = vcmp.eq.f32.partialorder %v1422, inf
        %v1625 = vsel %vm1624, %v1422, %v1623
        %vm1626 = vcmp.eq.f32.partialorder %v1422, 0.0
        %v1627 = vand.u32 %v1422, 2147483648
        %v1628 = vsel %vm1626, %v1627, %v1625
        %v1629 = vrsqrt.pop %v1423
        %v1630 = vmul.f32 %v1423, %v1629
        %vm1631 = vcmp.eq.f32.partialorder %v1423, inf
        %v1632 = vsel %vm1631, %v1423, %v1630
        %vm1633 = vcmp.eq.f32.partialorder %v1423, 0.0
        %v1634 = vand.u32 %v1423, 2147483648
        %v1635 = vsel %vm1633, %v1634, %v1632
        %v1636 = vrsqrt.pop %v1424
        %v1637 = vmul.f32 %v1424, %v1636
        %vm1638 = vcmp.eq.f32.partialorder %v1424, inf
        %v1639 = vsel %vm1638, %v1424, %v1637
        %vm1640 = vcmp.eq.f32.partialorder %v1424, 0.0
        %v1641 = vand.u32 %v1424, 2147483648
        %v1642 = vsel %vm1640, %v1641, %v1639
        %v1643 = vrsqrt.pop %v1425
        %v1644 = vmul.f32 %v1425, %v1643
        %vm1645 = vcmp.eq.f32.partialorder %v1425, inf
        %v1646 = vsel %vm1645, %v1425, %v1644
        %vm1647 = vcmp.eq.f32.partialorder %v1425, 0.0
        %v1648 = vand.u32 %v1425, 2147483648
        %v1649 = vsel %vm1647, %v1648, %v1646
        %v1650 = vadd.f32 %v952, 1e-05
        %v1651 = vadd.f32 %v959, 1e-05
        %v1652 = vadd.f32 %v966, 1e-05
        %v1653 = vadd.f32 %v973, 1e-05
        %v1654 = vadd.f32 %v980, 1e-05
        %v1655 = vadd.f32 %v987, 1e-05
        %v1656 = vadd.f32 %v994, 1e-05
        %v1657 = vadd.f32 %v1001, 1e-05
        %v1658 = vadd.f32 %v1008, 1e-05
        %v1659 = vadd.f32 %v1015, 1e-05
        %v1660 = vadd.f32 %v1022, 1e-05
        %v1661 = vadd.f32 %v1029, 1e-05
        %v1662 = vadd.f32 %v1036, 1e-05
        %v1663 = vadd.f32 %v1043, 1e-05
        %v1664 = vadd.f32 %v1050, 1e-05
        %v1665 = vadd.f32 %v1057, 1e-05
        %v1666 = vadd.f32 %v1064, 1e-05
        %v1667 = vadd.f32 %v1071, 1e-05
        %v1668 = vadd.f32 %v1078, 1e-05
        %v1669 = vadd.f32 %v1085, 1e-05
        %v1670 = vadd.f32 %v1092, 1e-05
        %v1671 = vadd.f32 %v1099, 1e-05
        %v1672 = vadd.f32 %v1106, 1e-05
        %v1673 = vadd.f32 %v1113, 1e-05
        %v1674 = vadd.f32 %v1120, 1e-05
        %v1675 = vadd.f32 %v1127, 1e-05
        %v1676 = vadd.f32 %v1134, 1e-05
        %v1677 = vadd.f32 %v1141, 1e-05
        %v1678 = vadd.f32 %v1148, 1e-05
        %v1679 = vadd.f32 %v1155, 1e-05
        %v1680 = vadd.f32 %v1162, 1e-05
        %v1681 = vadd.f32 %v1169, 1e-05
        %v1682 = vrcp.pop %v1650
        %v1683 = vrcp.pop %v1651
        %v1684 = vrcp.pop %v1652
        %v1685 = vrcp.pop %v1653
        %v1686 = vrcp.pop %v1654
        %v1687 = vrcp.pop %v1655
        %v1688 = vrcp.pop %v1656
        %v1689 = vrcp.pop %v1657
        %v1690 = vrcp.pop %v1658
        %v1691 = vrcp.pop %v1659
        %v1692 = vrcp.pop %v1660
        %v1693 = vrcp.pop %v1661
        %v1694 = vrcp.pop %v1662
        %v1695 = vrcp.pop %v1663
        %v1696 = vrcp.pop %v1664
        %v1697 = vrcp.pop %v1665
        %v1698 = vrcp.pop %v1666
        %v1699 = vrcp.pop %v1667
        %v1700 = vrcp.pop %v1668
        %v1701 = vrcp.pop %v1669
        %v1702 = vrcp.pop %v1670
        %v1703 = vrcp.pop %v1671
        %v1704 = vrcp.pop %v1672
        %v1705 = vrcp.pop %v1673
        %v1706 = vrcp.pop %v1674
        %v1707 = vrcp.pop %v1675
        %v1708 = vrcp.pop %v1676
        %v1709 = vrcp.pop %v1677
        %v1710 = vrcp.pop %v1678
        %v1711 = vrcp.pop %v1679
        %v1712 = vrcp.pop %v1680
        %v1713 = vrcp.pop %v1681
        %v1714 = vmul.f32 %v1432, %v1682
        %v1715 = vmul.f32 %v1439, %v1683
        %v1716 = vmul.f32 %v1446, %v1684
        %v1717 = vmul.f32 %v1453, %v1685
        %v1718 = vmul.f32 %v1460, %v1686
        %v1719 = vmul.f32 %v1467, %v1687
        %v1720 = vmul.f32 %v1474, %v1688
        %v1721 = vmul.f32 %v1481, %v1689
        %v1722 = vmul.f32 %v1488, %v1690
        %v1723 = vmul.f32 %v1495, %v1691
        %v1724 = vmul.f32 %v1502, %v1692
        %v1725 = vmul.f32 %v1509, %v1693
        %v1726 = vmul.f32 %v1516, %v1694
        %v1727 = vmul.f32 %v1523, %v1695
        %v1728 = vmul.f32 %v1530, %v1696
        %v1729 = vmul.f32 %v1537, %v1697
        %v1730 = vmul.f32 %v1544, %v1698
        %v1731 = vmul.f32 %v1551, %v1699
        %v1732 = vmul.f32 %v1558, %v1700
        %v1733 = vmul.f32 %v1565, %v1701
        %v1734 = vmul.f32 %v1572, %v1702
        %v1735 = vmul.f32 %v1579, %v1703
        %v1736 = vmul.f32 %v1586, %v1704
        %v1737 = vmul.f32 %v1593, %v1705
        %v1738 = vmul.f32 %v1600, %v1706
        %v1739 = vmul.f32 %v1607, %v1707
        %v1740 = vmul.f32 %v1614, %v1708
        %v1741 = vmul.f32 %v1621, %v1709
        %v1742 = vmul.f32 %v1628, %v1710
        %v1743 = vmul.f32 %v1635, %v1711
        %v1744 = vmul.f32 %v1642, %v1712
        %v1745 = vmul.f32 %v1649, %v1713
        %v1746 = vmul.f32 %v785, %v1714
        %v1747 = vmul.f32 %v786, %v1715
        %v1748 = vmul.f32 %v787, %v1716
        %v1749 = vmul.f32 %v788, %v1717
        %v1750 = vmul.f32 %v789, %v1718
        %v1751 = vmul.f32 %v790, %v1719
        %v1752 = vmul.f32 %v791, %v1720
        %v1753 = vmul.f32 %v792, %v1721
        %v1754 = vmul.f32 %v793, %v1722
        %v1755 = vmul.f32 %v794, %v1723
        %v1756 = vmul.f32 %v795, %v1724
        %v1757 = vmul.f32 %v796, %v1725
        %v1758 = vmul.f32 %v797, %v1726
        %v1759 = vmul.f32 %v798, %v1727
        %v1760 = vmul.f32 %v799, %v1728
        %v1761 = vmul.f32 %v800, %v1729
        %v1762 = vmul.f32 %v801, %v1730
        %v1763 = vmul.f32 %v802, %v1731
        %v1764 = vmul.f32 %v803, %v1732
        %v1765 = vmul.f32 %v804, %v1733
        %v1766 = vmul.f32 %v805, %v1734
        %v1767 = vmul.f32 %v806, %v1735
        %v1768 = vmul.f32 %v807, %v1736
        %v1769 = vmul.f32 %v808, %v1737
        %v1770 = vmul.f32 %v809, %v1738
        %v1771 = vmul.f32 %v810, %v1739
        %v1772 = vmul.f32 %v811, %v1740
        %v1773 = vmul.f32 %v812, %v1741
        %v1774 = vmul.f32 %v813, %v1742
        %v1775 = vmul.f32 %v814, %v1743
        %v1776 = vmul.f32 %v815, %v1744
        %v1777 = vmul.f32 %v816, %v1745
        %v1778 = vadd.f32 %v1746, %v1234
        %v1779 = vadd.f32 %v1747, %v1235
        %v1780 = vadd.f32 %v1748, %v1236
        %v1781 = vadd.f32 %v1749, %v1237
        %v1782 = vadd.f32 %v1750, %v1238
        %v1783 = vadd.f32 %v1751, %v1239
        %v1784 = vadd.f32 %v1752, %v1240
        %v1785 = vadd.f32 %v1753, %v1241
        %v1786 = vadd.f32 %v1754, %v1242
        %v1787 = vadd.f32 %v1755, %v1243
        %v1788 = vadd.f32 %v1756, %v1244
        %v1789 = vadd.f32 %v1757, %v1245
        %v1790 = vadd.f32 %v1758, %v1246
        %v1791 = vadd.f32 %v1759, %v1247
        %v1792 = vadd.f32 %v1760, %v1248
        %v1793 = vadd.f32 %v1761, %v1249
        %v1794 = vadd.f32 %v1762, %v1250
        %v1795 = vadd.f32 %v1763, %v1251
        %v1796 = vadd.f32 %v1764, %v1252
        %v1797 = vadd.f32 %v1765, %v1253
        %v1798 = vadd.f32 %v1766, %v1254
        %v1799 = vadd.f32 %v1767, %v1255
        %v1800 = vadd.f32 %v1768, %v1256
        %v1801 = vadd.f32 %v1769, %v1257
        %v1802 = vadd.f32 %v1770, %v1258
        %v1803 = vadd.f32 %v1771, %v1259
        %v1804 = vadd.f32 %v1772, %v1260
        %v1805 = vadd.f32 %v1773, %v1261
        %v1806 = vadd.f32 %v1774, %v1262
        %v1807 = vadd.f32 %v1775, %v1263
        %v1808 = vadd.f32 %v1776, %v1264
        %v1809 = vadd.f32 %v1777, %v1265
        %v1810 = vmul.f32 %v1778, 0.2
        %v1811 = vmul.f32 %v1779, 0.2
        %v1812 = vmul.f32 %v1780, 0.2
        %v1813 = vmul.f32 %v1781, 0.2
        %v1814 = vmul.f32 %v1782, 0.2
        %v1815 = vmul.f32 %v1783, 0.2
        %v1816 = vmul.f32 %v1784, 0.2
        %v1817 = vmul.f32 %v1785, 0.2
        %v1818 = vmul.f32 %v1786, 0.2
        %v1819 = vmul.f32 %v1787, 0.2
        %v1820 = vmul.f32 %v1788, 0.2
        %v1821 = vmul.f32 %v1789, 0.2
        %v1822 = vmul.f32 %v1790, 0.2
        %v1823 = vmul.f32 %v1791, 0.2
        %v1824 = vmul.f32 %v1792, 0.2
        %v1825 = vmul.f32 %v1793, 0.2
        %v1826 = vmul.f32 %v1794, 0.2
        %v1827 = vmul.f32 %v1795, 0.2
        %v1828 = vmul.f32 %v1796, 0.2
        %v1829 = vmul.f32 %v1797, 0.2
        %v1830 = vmul.f32 %v1798, 0.2
        %v1831 = vmul.f32 %v1799, 0.2
        %v1832 = vmul.f32 %v1800, 0.2
        %v1833 = vmul.f32 %v1801, 0.2
        %v1834 = vmul.f32 %v1802, 0.2
        %v1835 = vmul.f32 %v1803, 0.2
        %v1836 = vmul.f32 %v1804, 0.2
        %v1837 = vmul.f32 %v1805, 0.2
        %v1838 = vmul.f32 %v1806, 0.2
        %v1839 = vmul.f32 %v1807, 0.2
        %v1840 = vmul.f32 %v1808, 0.2
        %v1841 = vmul.f32 %v1809, 0.2
        %v1842 = vmax.f32 %v1778, %v1810
        %v1843 = vmax.f32 %v1779, %v1811
        %v1844 = vmax.f32 %v1780, %v1812
        %v1845 = vmax.f32 %v1781, %v1813
        %v1846 = vmax.f32 %v1782, %v1814
        %v1847 = vmax.f32 %v1783, %v1815
        %v1848 = vmax.f32 %v1784, %v1816
        %v1849 = vmax.f32 %v1785, %v1817
        %v1850 = vmax.f32 %v1786, %v1818
        %v1851 = vmax.f32 %v1787, %v1819
        %v1852 = vmax.f32 %v1788, %v1820
        %v1853 = vmax.f32 %v1789, %v1821
        %v1854 = vmax.f32 %v1790, %v1822
        %v1855 = vmax.f32 %v1791, %v1823
        %v1856 = vmax.f32 %v1792, %v1824
        %v1857 = vmax.f32 %v1793, %v1825
        %v1858 = vmax.f32 %v1794, %v1826
        %v1859 = vmax.f32 %v1795, %v1827
        %v1860 = vmax.f32 %v1796, %v1828
        %v1861 = vmax.f32 %v1797, %v1829
        %v1862 = vmax.f32 %v1798, %v1830
        %v1863 = vmax.f32 %v1799, %v1831
        %v1864 = vmax.f32 %v1800, %v1832
        %v1865 = vmax.f32 %v1801, %v1833
        %v1866 = vmax.f32 %v1802, %v1834
        %v1867 = vmax.f32 %v1803, %v1835
        %v1868 = vmax.f32 %v1804, %v1836
        %v1869 = vmax.f32 %v1805, %v1837
        %v1870 = vmax.f32 %v1806, %v1838
        %v1871 = vmax.f32 %v1807, %v1839
        %v1872 = vmax.f32 %v1808, %v1840
        %v1873 = vmax.f32 %v1809, %v1841
        %v1874 = vpack.c.bf16 %v1843, %v1842
        %v1875 = vpack.c.bf16 %v1845, %v1844
        %v1876 = vpack.c.bf16 %v1847, %v1846
        %v1877 = vpack.c.bf16 %v1849, %v1848
        %v1878 = vpack.c.bf16 %v1851, %v1850
        %v1879 = vpack.c.bf16 %v1853, %v1852
        %v1880 = vpack.c.bf16 %v1855, %v1854
        %v1881 = vpack.c.bf16 %v1857, %v1856
        %v1882 = vpack.c.bf16 %v1859, %v1858
        %v1883 = vpack.c.bf16 %v1861, %v1860
        %v1884 = vpack.c.bf16 %v1863, %v1862
        %v1885 = vpack.c.bf16 %v1865, %v1864
        %v1886 = vpack.c.bf16 %v1867, %v1866
        %v1887 = vpack.c.bf16 %v1869, %v1868
        %v1888 = vpack.c.bf16 %v1871, %v1870
        %v1889 = vpack.c.bf16 %v1873, %v1872
        %v1890 = vld [vmem:[%s4] sm:$0xf]
        %v1891 = vld [vmem:[%s4 + $0x4] sm:$0xf]
        %v1892 = vld [vmem:[%s4 + $0x8] sm:$0xf]
        %v1893 = vld [vmem:[%s4 + $0xc] sm:$0xf]
        %v1894 = vld [vmem:[%s4 + $0x10] sm:$0xf]
        %v1895 = vld [vmem:[%s4 + $0x14] sm:$0xf]
        %v1896 = vld [vmem:[%s4 + $0x18] sm:$0xf]
        %v1897 = vld [vmem:[%s4 + $0x1c] sm:$0xf]
        %v1898 = vld [vmem:[%s4 + $0x20] sm:$0xf]
        %v1899 = vld [vmem:[%s4 + $0x24] sm:$0xf]
        %v1900 = vld [vmem:[%s4 + $0x28] sm:$0xf]
        %v1901 = vld [vmem:[%s4 + $0x2c] sm:$0xf]
        %v1902 = vld [vmem:[%s4 + $0x30] sm:$0xf]
        %v1903 = vld [vmem:[%s4 + $0x34] sm:$0xf]
        %v1904 = vld [vmem:[%s4 + $0x38] sm:$0xf]
        %v1905 = vld [vmem:[%s4 + $0x3c] sm:$0xf]
        %v1906 = vld [vmem:[%s5] sm:$0x1]
        %v1908 = vlaneseq
        %v1909 = vshrl.u32 %v1908, 7
        %v1910 = vsub.s32 0, %v1909
        %v1911 = vrot.slane %v1906, %v1910
        %v1929 = vunpack.c.l.b16 %v1890
        %v1930 = vunpack.c.l.b16 %v1891
        %v1931 = vunpack.c.l.b16 %v1892
        %v1932 = vunpack.c.l.b16 %v1893
        %v1933 = vunpack.c.l.b16 %v1894
        %v1934 = vunpack.c.l.b16 %v1895
        %v1935 = vunpack.c.l.b16 %v1896
        %v1936 = vunpack.c.l.b16 %v1897
        %v1937 = vunpack.c.l.b16 %v1898
        %v1938 = vunpack.c.l.b16 %v1899
        %v1939 = vunpack.c.l.b16 %v1900
        %v1940 = vunpack.c.l.b16 %v1901
        %v1941 = vunpack.c.l.b16 %v1902
        %v1942 = vunpack.c.l.b16 %v1903
        %v1943 = vunpack.c.l.b16 %v1904
        %v1944 = vunpack.c.l.b16 %v1905
        %v1945 = vpack.c.b16 %v1930, %v1929
        %v1946 = vpack.c.b16 %v1932, %v1931
        %v1947 = vpack.c.b16 %v1934, %v1933
        %v1948 = vpack.c.b16 %v1936, %v1935
        %v1949 = vpack.c.b16 %v1938, %v1937
        %v1950 = vpack.c.b16 %v1940, %v1939
        %v1951 = vpack.c.b16 %v1942, %v1941
        %v1952 = vpack.c.b16 %v1944, %v1943
        %1961 = vmatprep.subr.bf16.mxu0 0
        %1962 = vmatpush1.bf16.msra.mxu0 %v1945
        %1963 = vmatprep.subr.bf16.mxu0 0
        %1964 = vmatpush1.bf16.msra.mxu0 %v1946
        %1965 = vmatprep.subr.bf16.mxu0 0
        %1966 = vmatpush1.bf16.msra.mxu0 %v1947
        %1967 = vmatprep.subr.bf16.mxu0 0
        %1968 = vmatpush1.bf16.msra.mxu0 %v1948
        %1969 = vmatprep.subr.bf16.mxu0 0
        %1970 = vmatpush1.bf16.msra.mxu0 %v1949
        %1971 = vmatprep.subr.bf16.mxu0 0
        %1972 = vmatpush1.bf16.msra.mxu0 %v1950
        %1973 = vmatprep.subr.bf16.mxu0 0
        %1974 = vmatpush1.bf16.msra.mxu0 %v1951
        %1975 = vmatprep.subr.bf16.mxu0 0
        %1976 = vmatpush1.bf16.msra.mxu0 %v1952
        %1977 = vmatprep.subr.bf16.mxu0 0
        %1978 = vmatpush1.bf16.msra.mxu0 0
        %1979 = vmatprep.subr.bf16.mxu0 0
        %1980 = vmatpush1.bf16.msra.mxu0 0
        %1981 = vmatprep.subr.bf16.mxu0 0
        %1982 = vmatpush1.bf16.msra.mxu0 0
        %1983 = vmatprep.subr.bf16.mxu0 0
        %1984 = vmatpush1.bf16.msra.mxu0 0
        %1985 = vmatprep.subr.bf16.mxu0 0
        %1986 = vmatpush1.bf16.msra.mxu0 0
        %1987 = vmatprep.subr.bf16.mxu0 0
        %1988 = vmatpush1.bf16.msra.mxu0 0
        %1989 = vmatprep.subr.bf16.mxu0 0
        %1990 = vmatpush1.bf16.msra.mxu0 0
        %1991 = vmatprep.subr.bf16.mxu0 0
        %1992 = vmatpush1.bf16.msra.mxu0 0
        %1993 = vmatprep.mubr.bf16.mxu0 0
        %1994 = vmatmul.mubr.bf16.gmra.mrb[0].mxu0 %v1874
        %v1995 = vpop.f32.mrb[0].mxu0
        %v1996 = vadd.f32 %v1911, %v1995
        %v1997 = vpop.f32.mrb[0].mxu0
        %v1998 = vpop.f32.mrb[0].mxu0
        %v1999 = vadd.f32 %v1911, %v1998
        %v2000 = vpop.f32.mrb[0].mxu0
        %2001 = vmatprep.mubr.bf16.mxu0 0
        %2002 = vmatmul.mubr.bf16.gmra.mrb[0].mxu0 %v1875
        %v2003 = vpop.f32.mrb[0].mxu0
        %v2004 = vadd.f32 %v1911, %v2003
        %v2005 = vpop.f32.mrb[0].mxu0
        %v2006 = vpop.f32.mrb[0].mxu0
        %v2007 = vadd.f32 %v1911, %v2006
        %v2008 = vpop.f32.mrb[0].mxu0
        %2009 = vmatprep.mubr.bf16.mxu0 0
        %2010 = vmatmul.mubr.bf16.gmra.mrb[0].mxu0 %v1876
        %v2011 = vpop.f32.mrb[0].mxu0
        %v2012 = vadd.f32 %v1911, %v2011
        %v2013 = vpop.f32.mrb[0].mxu0
        %v2014 = vpop.f32.mrb[0].mxu0
        %v2015 = vadd.f32 %v1911, %v2014
        %v2016 = vpop.f32.mrb[0].mxu0
        %2017 = vmatprep.mubr.bf16.mxu0 0
        %2018 = vmatmul.mubr.bf16.gmra.mrb[0].mxu0 %v1877
        %v2019 = vpop.f32.mrb[0].mxu0
        %v2020 = vadd.f32 %v1911, %v2019
        %v2021 = vpop.f32.mrb[0].mxu0
        %v2022 = vpop.f32.mrb[0].mxu0
        %v2023 = vadd.f32 %v1911, %v2022
        %v2024 = vpop.f32.mrb[0].mxu0
        %2025 = vmatprep.mubr.bf16.mxu0 0
        %2026 = vmatmul.mubr.bf16.gmra.mrb[0].mxu0 %v1878
        %v2027 = vpop.f32.mrb[0].mxu0
        %v2028 = vadd.f32 %v1911, %v2027
        %v2029 = vpop.f32.mrb[0].mxu0
        %v2030 = vpop.f32.mrb[0].mxu0
        %v2031 = vadd.f32 %v1911, %v2030
        %v2032 = vpop.f32.mrb[0].mxu0
        %2033 = vmatprep.mubr.bf16.mxu0 0
        %2034 = vmatmul.mubr.bf16.gmra.mrb[0].mxu0 %v1879
        %v2035 = vpop.f32.mrb[0].mxu0
        %v2036 = vadd.f32 %v1911, %v2035
        %v2037 = vpop.f32.mrb[0].mxu0
        %v2038 = vpop.f32.mrb[0].mxu0
        %v2039 = vadd.f32 %v1911, %v2038
        %v2040 = vpop.f32.mrb[0].mxu0
        %2041 = vmatprep.mubr.bf16.mxu0 0
        %2042 = vmatmul.mubr.bf16.gmra.mrb[0].mxu0 %v1880
        %v2043 = vpop.f32.mrb[0].mxu0
        %v2044 = vadd.f32 %v1911, %v2043
        %v2045 = vpop.f32.mrb[0].mxu0
        %v2046 = vpop.f32.mrb[0].mxu0
        %v2047 = vadd.f32 %v1911, %v2046
        %v2048 = vpop.f32.mrb[0].mxu0
        %2049 = vmatprep.mubr.bf16.mxu0 0
        %2050 = vmatmul.mubr.bf16.gmra.mrb[0].mxu0 %v1881
        %v2051 = vpop.f32.mrb[0].mxu0
        %v2052 = vadd.f32 %v1911, %v2051
        %v2053 = vpop.f32.mrb[0].mxu0
        %v2054 = vpop.f32.mrb[0].mxu0
        %v2055 = vadd.f32 %v1911, %v2054
        %v2056 = vpop.f32.mrb[0].mxu0
        %2057 = vmatprep.mubr.bf16.mxu0 0
        %2058 = vmatmul.mubr.bf16.gmra.mrb[0].mxu0 %v1882
        %v2059 = vpop.f32.mrb[0].mxu0
        %v2060 = vadd.f32 %v1911, %v2059
        %v2061 = vpop.f32.mrb[0].mxu0
        %v2062 = vpop.f32.mrb[0].mxu0
        %v2063 = vadd.f32 %v1911, %v2062
        %v2064 = vpop.f32.mrb[0].mxu0
        %2065 = vmatprep.mubr.bf16.mxu0 0
        %2066 = vmatmul.mubr.bf16.gmra.mrb[0].mxu0 %v1883
        %v2067 = vpop.f32.mrb[0].mxu0
        %v2068 = vadd.f32 %v1911, %v2067
        %v2069 = vpop.f32.mrb[0].mxu0
        %v2070 = vpop.f32.mrb[0].mxu0
        %v2071 = vadd.f32 %v1911, %v2070
        %v2072 = vpop.f32.mrb[0].mxu0
        %2073 = vmatprep.mubr.bf16.mxu0 0
        %2074 = vmatmul.mubr.bf16.gmra.mrb[0].mxu0 %v1884
        %v2075 = vpop.f32.mrb[0].mxu0
        %v2076 = vadd.f32 %v1911, %v2075
        %v2077 = vpop.f32.mrb[0].mxu0
        %v2078 = vpop.f32.mrb[0].mxu0
        %v2079 = vadd.f32 %v1911, %v2078
        %v2080 = vpop.f32.mrb[0].mxu0
        %2081 = vmatprep.mubr.bf16.mxu0 0
        %2082 = vmatmul.mubr.bf16.gmra.mrb[0].mxu0 %v1885
        %v2083 = vpop.f32.mrb[0].mxu0
        %v2084 = vadd.f32 %v1911, %v2083
        %v2085 = vpop.f32.mrb[0].mxu0
        %v2086 = vpop.f32.mrb[0].mxu0
        %v2087 = vadd.f32 %v1911, %v2086
        %v2088 = vpop.f32.mrb[0].mxu0
        %2089 = vmatprep.mubr.bf16.mxu0 0
        %2090 = vmatmul.mubr.bf16.gmra.mrb[0].mxu0 %v1886
        %v2091 = vpop.f32.mrb[0].mxu0
        %v2092 = vadd.f32 %v1911, %v2091
        %v2093 = vpop.f32.mrb[0].mxu0
        %v2094 = vpop.f32.mrb[0].mxu0
        %v2095 = vadd.f32 %v1911, %v2094
        %v2096 = vpop.f32.mrb[0].mxu0
        %2097 = vmatprep.mubr.bf16.mxu0 0
        %2098 = vmatmul.mubr.bf16.gmra.mrb[0].mxu0 %v1887
        %v2099 = vpop.f32.mrb[0].mxu0
        %v2100 = vadd.f32 %v1911, %v2099
        %v2101 = vpop.f32.mrb[0].mxu0
        %v2102 = vpop.f32.mrb[0].mxu0
        %v2103 = vadd.f32 %v1911, %v2102
        %v2104 = vpop.f32.mrb[0].mxu0
        %2105 = vmatprep.mubr.bf16.mxu0 0
        %2106 = vmatmul.mubr.bf16.gmra.mrb[0].mxu0 %v1888
        %v2107 = vpop.f32.mrb[0].mxu0
        %v2108 = vadd.f32 %v1911, %v2107
        %v2109 = vpop.f32.mrb[0].mxu0
        %v2110 = vpop.f32.mrb[0].mxu0
        %v2111 = vadd.f32 %v1911, %v2110
        %v2112 = vpop.f32.mrb[0].mxu0
        %2113 = vmatprep.mubr.bf16.mxu0 0
        %2114 = vmatmul.mubr.bf16.gmra.mrb[0].mxu0 %v1889
        %v2115 = vpop.f32.mrb[0].mxu0
        %v2116 = vadd.f32 %v1911, %v2115
        %v2117 = vpop.f32.mrb[0].mxu0
        %v2118 = vpop.f32.mrb[0].mxu0
        %v2119 = vadd.f32 %v1911, %v2118
        %v2120 = vpop.f32.mrb[0].mxu0
        %2121 = vdwg.mxu0
        %2122 = vst [vmem:[%s285] sm:$0xff] %v1996
        %2123 = vst [vmem:[%s285 + $0x8] sm:$0xff] %v1999
        %2124 = vst [vmem:[%s285 + $0x10] sm:$0xff] %v2004
        %2125 = vst [vmem:[%s285 + $0x18] sm:$0xff] %v2007
        %2126 = vst [vmem:[%s285 + $0x20] sm:$0xff] %v2012
        %2127 = vst [vmem:[%s285 + $0x28] sm:$0xff] %v2015
        %2128 = vst [vmem:[%s285 + $0x30] sm:$0xff] %v2020
        %2129 = vst [vmem:[%s285 + $0x38] sm:$0xff] %v2023
        %2130 = vst [vmem:[%s285 + $0x40] sm:$0xff] %v2028
        %2131 = vst [vmem:[%s285 + $0x48] sm:$0xff] %v2031
        %2132 = vst [vmem:[%s285 + $0x50] sm:$0xff] %v2036
        %2133 = vst [vmem:[%s285 + $0x58] sm:$0xff] %v2039
        %2134 = vst [vmem:[%s285 + $0x60] sm:$0xff] %v2044
        %2135 = vst [vmem:[%s285 + $0x68] sm:$0xff] %v2047
        %2136 = vst [vmem:[%s285 + $0x70] sm:$0xff] %v2052
        %2137 = vst [vmem:[%s285 + $0x78] sm:$0xff] %v2055
        %2138 = vst [vmem:[%s285 + $0x80] sm:$0xff] %v2060
        %2139 = vst [vmem:[%s285 + $0x88] sm:$0xff] %v2063
        %2140 = vst [vmem:[%s285 + $0x90] sm:$0xff] %v2068
        %2141 = vst [vmem:[%s285 + $0x98] sm:$0xff] %v2071
        %2142 = vst [vmem:[%s285 + $0xa0] sm:$0xff] %v2076
        %2143 = vst [vmem:[%s285 + $0xa8] sm:$0xff] %v2079
        %2144 = vst [vmem:[%s285 + $0xb0] sm:$0xff] %v2084
        %2145 = vst [vmem:[%s285 + $0xb8] sm:$0xff] %v2087
        %2146 = vst [vmem:[%s285 + $0xc0] sm:$0xff] %v2092
        %2147 = vst [vmem:[%s285 + $0xc8] sm:$0xff] %v2095
        %2148 = vst [vmem:[%s285 + $0xd0] sm:$0xff] %v2100
        %2149 = vst [vmem:[%s285 + $0xd8] sm:$0xff] %v2103
        %2150 = vst [vmem:[%s285 + $0xe0] sm:$0xff] %v2108
        %2151 = vst [vmem:[%s285 + $0xe8] sm:$0xff] %v2111
        %2152 = vst [vmem:[%s285 + $0xf0] sm:$0xff] %v2116
        %2153 = vst [vmem:[%s285 + $0xf8] sm:$0xff] %v2119
        %s2154 = sand.u32 %s167, 1
        %s2155 = scalar_lea.sflag [#allocation4], %s2154
        %s2156 = sand.u32 %s167, 1
        %s2157 = smul.addr %s2156, 256
        %s2158 = scalar_lea.vmem [#allocation5], %s2157
        // Predicated region
        $region49: #{tpu_custom_call.1} parent=43 // pred_check
          %p2159 = pneg %p177
        $region50: #{tpu_custom_call.1} parent=43 // pred_check_branch
          %2161 = sbr.rel (%p2159) target = $region52
        $region51: #{tpu_custom_call.1} parent=43 // pred_region
          %s2162 = smul.u32 32, %s23
          %s2164 = ssub.s32 4096, 4096
          %2165 = vsyncadd %s2155, %s2164
          %s2166 = smul.addr %s2162, 128
          %s2167 = scalar_lea.hbm %s6, %s2166
          %s2168 = sshll.u32 %s2158, 4
          %s2169 = int_to_ptr.vmem [resolvable:$true] %s2168
          %2174 = dma.vmem_to_hbm [thread:$0]  %s2169, 4096, %s2167, %s2155, 128, 128, 8
        $region52: #{tpu_custom_call.1} parent=43 // pred_fallthru
          _
      $region44: #{tpu_custom_call.1} parent=5 // pred_fallthru
        _
      %p2175 = scmp.le.s32.totalorder 2, %s18
      // Predicated region
      $region53: #{tpu_custom_call.1} parent=5 // pred_check
        %p2176 = pneg %p2175
      $region54: #{tpu_custom_call.1} parent=5 // pred_check_branch
        %2178 = sbr.rel (%p2176) target = $region56
      $region55: #{tpu_custom_call.1} parent=5 // pred_region
        %s2179 = ssub.s32 %s18, 2
        // Predicated region
        $region57: #{tpu_custom_call.1} parent=55 // pred_check
          %p2180 = pneg %p183
        $region58: #{tpu_custom_call.1} parent=55 // pred_check_branch
          %2182 = sbr.rel (%p2180) target = $region60
        $region59: #{tpu_custom_call.1} parent=55 // pred_region
          %s2183 = sand.u32 %s168, 1
          %s2184 = scalar_lea.sflag [#allocation4], %s2183
          %s2185 = sand.u32 %s168, 1
          %s2186 = smul.addr %s2185, 256
          %s2187 = scalar_lea.vmem [#allocation5], %s2186
          %2188 = dma.done %s2184, 4096
        $region60: #{tpu_custom_call.1} parent=55 // pred_fallthru
          _
      $region56: #{tpu_custom_call.1} parent=5 // pred_fallthru
        _
    $region6: #{tpu_custom_call.1} parent=1 // loop_footer
      %s22 = sadd.s32 1, %s18
    $region7: #{tpu_custom_call.1} parent=1 // loop_footer_branch
      %17 = sbr.rel target = $region3
    $region8: #{tpu_custom_call.1} parent=1 // loop_exit
      _
    %2189 = vsyncpa [#allocation3], 1
    %s2190 = scalar_lea.sflag [#allocation3], 1
    %2191 = vsyncpa %s2190, 1
    %2192 = vsyncpa [#allocation4], 1
    %s2193 = scalar_lea.sflag [#allocation4], 1
    %2194 = vsyncpa %s2193, 1

</llo_original>
